<compile_context>
chip_gen: v6e
topology: v6e:2x2x1
jax: 0.10.0
libtpu: 0.0.40
codegen_flags: <defaults>
</compile_context>

<pallas_src>
import functools

import jax
import jax.numpy as jnp
from jax import lax
from jax.experimental import pallas as pl
from jax.experimental.pallas import tpu as pltpu

LN_EPS = 1e-5  # torch.nn.LayerNorm default


# --------------------------- phase 1: context -> CW ---------------------------

def _phase1_kernel(x1_ref, x2_ref, wr_ref, cw_ref, m_sc, l_sc, acc_sc,
                   *, head_count, hkc, hvc, mxu_dtype, precision):
    t = pl.program_id(1)

    @pl.when(t == 0)
    def _():
        m_sc[...] = jnp.full_like(m_sc, -jnp.inf)
        l_sc[...] = jnp.zeros_like(l_sc)
        acc_sc[...] = jnp.zeros_like(acc_sc)

    k = x2_ref[0]                                   # [tn, KC]  keys (full width)
    v = x1_ref[0]                                   # [tn, D]   values

    # Online softmax over the token axis, full-width over all KC channels.
    m_tile = jnp.max(k, axis=0, keepdims=True)      # [1, KC]
    m_new = jnp.maximum(m_sc[...], m_tile)
    alpha = jnp.exp(m_sc[...] - m_new)              # [1, KC] rescale factor
    p = jnp.exp(k - m_new)                          # [tn, KC]
    l_sc[...] = l_sc[...] * alpha + jnp.sum(p, axis=0, keepdims=True)

    # acc holds context^T ([D, KC]) so the per-channel rescale/normalize
    # broadcasts along lanes; contraction over tokens with dims (0,0) — the
    # transpose (if any) is per N-tile and overlaps with MXU work.
    acc_sc[...] = acc_sc[...] * alpha + lax.dot_general(
        v.astype(mxu_dtype), p.astype(mxu_dtype),
        (((0,), (0,)), ((), ())),
        preferred_element_type=jnp.float32, precision=precision)
    m_sc[...] = m_new

    @pl.when(t == pl.num_programs(1) - 1)
    def _():
        ctx_t = acc_sc[...] / l_sc[...]             # [D, KC] = context^T
        wr = wr_ref[...]                            # [D, 2D]
        blocks = []
        for h in range(head_count):                 # static, tiny matmuls
            ctx_h = ctx_t[h * hvc:(h + 1) * hvc, h * hkc:(h + 1) * hkc]
            wr_h = wr[h * hvc:(h + 1) * hvc, :]
            blocks.append(lax.dot_general(
                ctx_h, wr_h, (((0,), (0,)), ((), ())),
                preferred_element_type=jnp.float32,
                precision=precision))               # [hkc, 2D]
        cw = blocks[0] if head_count == 1 else jnp.concatenate(blocks, axis=0)
        cw_ref[0] = cw                              # [KC, 2D]


# ------------------- phase 2: query softmax, @CW, LayerNorm -------------------

def _phase2_kernel(x2_ref, cw_ref, br_ref, g_ref, b_ref, o_ref,
                   *, head_count, hkc, mxu_dtype, precision):
    k = x2_ref[0]                                   # [tn, KC] queries

    if head_count == 1:
        mrow = jnp.max(k, axis=1, keepdims=True)
        eq = jnp.exp(k - mrow)
        q = eq / jnp.sum(eq, axis=1, keepdims=True)
    else:
        qs = []
        for h in range(head_count):
            kh = k[:, h * hkc:(h + 1) * hkc]
            mrow = jnp.max(kh, axis=1, keepdims=True)
            eqh = jnp.exp(kh - mrow)
            qs.append(eqh / jnp.sum(eqh, axis=1, keepdims=True))
        q = jnp.concatenate(qs, axis=1)             # merged [tn, KC] slab

    cw = cw_ref[0]                                  # [KC, 2D]
    # ONE merged matmul: full K=KC contraction, 2D (=128-lane) output.
    y = jnp.dot(q.astype(mxu_dtype), cw.astype(mxu_dtype),
                preferred_element_type=jnp.float32,
                precision=precision) + br_ref[...]

    # LayerNorm over the 2*D channel axis.
    mu = jnp.mean(y, axis=-1, keepdims=True)
    yc = y - mu
    var = jnp.mean(yc * yc, axis=-1, keepdims=True)
    o_ref[0] = yc * lax.rsqrt(var + LN_EPS) * g_ref[...] + b_ref[...]


# ----------------------------- wrapper -----------------------------

def cross_attention_forward(x1, x2, params, *, height, width, head_count=1,
                            block_n=None, mxu_dtype=jnp.float32):
    """x1: [B, N, D] (values), x2: [B, N, KC] (keys/queries) -> [B, N, 2*D]."""
    B, N, D = x1.shape
    KC = x2.shape[-1]
    assert N == height * width
    assert KC % head_count == 0 and D % head_count == 0
    hkc = KC // head_count
    hvc = D // head_count
    Dout = 2 * D

    if block_n is None:
        block_n = N if N <= 512 else 512
    # TODO(synk): ragged N (N % block_n != 0) needs a masked tail tile.
    assert N % block_n == 0 and (block_n % 8 == 0 or block_n == N)
    nt = N // block_n

    precision = (lax.Precision.HIGHEST if mxu_dtype == jnp.float32
                 else lax.Precision.DEFAULT)
    vmem_limit = 32 * 1024 * 1024  # bounded tiles -> fits all generations

    # ----- phase 1: CW[b] = blockdiag-context(b) @ Wr, shape [B, KC, 2D] -----
    p1 = functools.partial(_phase1_kernel, head_count=head_count, hkc=hkc,
                           hvc=hvc, mxu_dtype=mxu_dtype, precision=precision)
    cw = pl.pallas_call(
        p1,
        out_shape=jax.ShapeDtypeStruct((B, KC, Dout), jnp.float32),
        grid=(B, nt),
        in_specs=[
            pl.BlockSpec((1, block_n, D), lambda b, t: (b, t, 0)),   # values
            pl.BlockSpec((1, block_n, KC), lambda b, t: (b, t, 0)),  # keys
            pl.BlockSpec((D, Dout), lambda b, t: (0, 0)),            # Wr
        ],
        out_specs=pl.BlockSpec((1, KC, Dout), lambda b, t: (b, 0, 0)),
        scratch_shapes=[
            pltpu.VMEM((1, KC), jnp.float32),   # running column max
            pltpu.VMEM((1, KC), jnp.float32),   # running column sum
            pltpu.VMEM((D, KC), jnp.float32),   # running context^T
        ],
        compiler_params=pltpu.CompilerParams(
            dimension_semantics=("parallel", "arbitrary"),
            vmem_limit_bytes=vmem_limit),
        cost_estimate=pl.CostEstimate(
            flops=B * (2 * N * KC * D + head_count * 2 * hkc * hvc * Dout),
            transcendentals=B * N * KC,
            bytes_accessed=4 * (x1.size + x2.size + params["wr"].size
                                + B * KC * Dout)),
    )(x1, x2, params["wr"])

    # ----- phase 2: row-parallel query softmax -> @CW -> bias -> LayerNorm -----
    p2 = functools.partial(_phase2_kernel, head_count=head_count, hkc=hkc,
                           mxu_dtype=mxu_dtype, precision=precision)
    out = pl.pallas_call(
        p2,
        out_shape=jax.ShapeDtypeStruct((B, N, Dout), jnp.float32),
        grid=(B, nt),
        in_specs=[
            pl.BlockSpec((1, block_n, KC), lambda b, t: (b, t, 0)),  # queries
            pl.BlockSpec((1, KC, Dout), lambda b, t: (b, 0, 0)),     # CW
            pl.BlockSpec((1, Dout), lambda b, t: (0, 0)),            # conv bias
            pl.BlockSpec((1, Dout), lambda b, t: (0, 0)),            # ln gamma
            pl.BlockSpec((1, Dout), lambda b, t: (0, 0)),            # ln beta
        ],
        out_specs=pl.BlockSpec((1, block_n, Dout), lambda b, t: (b, t, 0)),
        compiler_params=pltpu.CompilerParams(
            # N-tile axis parallel too -> v7x megacore has work even at B==1.
            dimension_semantics=("parallel", "parallel"),
            vmem_limit_bytes=vmem_limit),
        cost_estimate=pl.CostEstimate(
            flops=B * 2 * N * KC * Dout,
            transcendentals=B * N * KC,
            bytes_accessed=4 * (x2.size + B * KC * Dout + 3 * Dout
                                + B * N * Dout)),
    )(x2, cw, params["br"], params["ln_g"], params["ln_b"])
    return out


# ----------------------------- pure-JAX reference -----------------------------

def _ref_cross_attention(x1, x2, params, head_count):
    """Mirrors the PyTorch forward exactly (f32, exact softmax)."""
    B, N, D = x1.shape
    KC = x2.shape[-1]
    hkc = KC // head_count
    hvc = D // head_count

    keys = jnp.swapaxes(x2, 1, 2)        # [B, KC, N]
    queries = keys
    values = jnp.swapaxes(x1, 1, 2)      # [B, D, N]

    outs = []
    for h in range(head_count):
        key = jax.nn.softmax(keys[:, h * hkc:(h + 1) * hkc, :], axis=2)
        query = jax.nn.softmax(queries[:, h * hkc:(h + 1) * hkc, :], axis=1)
        value = values[:, h * hvc:(h + 1) * hvc, :]
        context = jnp.einsum("bkn,bvn->bkv", key, value)      # [B, hkc, hvc]
        att = jnp.einsum("bkv,bkn->bvn", context, query)      # [B, hvc, N]
        outs.append(att)
    agg = jnp.concatenate(outs, axis=1)                       # [B, D, N]
    agg_cl = jnp.swapaxes(agg, 1, 2)                          # [B, N, D]

    y = agg_cl @ params["wr"] + params["br"]                  # 1x1 reprojection
    mu = jnp.mean(y, axis=-1, keepdims=True)
    var = jnp.mean((y - mu) ** 2, axis=-1, keepdims=True)
    return (y - mu) / jnp.sqrt(var + LN_EPS) * params["ln_g"] + params["ln_b"]


# ----------------------------- main -----------------------------

if __name__ == "__main__":
    B, H, W = 2, 8, 8
    N = H * W
    key_channels = value_channels = 64
    D = value_channels

    key = jax.random.PRNGKey(0)
    k1, k2, kw, kb, kg, kbt = jax.random.split(key, 6)
    x1 = jax.random.normal(k1, (B, N, D), jnp.float32)
    x2 = jax.random.normal(k2, (B, N, key_channels), jnp.float32)
    params = {
        # torch Conv2d(D, 2D, 1) weight [2D, D, 1, 1] stored transposed as [D, 2D]
        "wr": jax.random.normal(kw, (D, 2 * D), jnp.float32) * 0.05,
        "br": jax.random.normal(kb, (1, 2 * D), jnp.float32) * 0.02,
        # LayerNorm(2D) affine params
        "ln_g": 1.0 + jax.random.normal(kg, (1, 2 * D), jnp.float32) * 0.05,
        "ln_b": jax.random.normal(kbt, (1, 2 * D), jnp.float32) * 0.05,
    }

    for head_count in (1, 2):   # module default is 1; also exercise multi-head
        ref = jax.block_until_ready(
            _ref_cross_attention(x1, x2, params, head_count))
        for mxu_dtype, tol in ((jnp.float32, 2e-3), (jnp.bfloat16, 1e-1)):
            fwd = jax.jit(functools.partial(
                cross_attention_forward, height=H, width=W,
                head_count=head_count, block_n=16, mxu_dtype=mxu_dtype))
            out = jax.block_until_ready(fwd(x1, x2, params))
            assert out.shape == (B, N, 2 * D)
            err = float(jnp.max(jnp.abs(out - ref)))
            assert jnp.allclose(out, ref, rtol=tol, atol=tol), (
                head_count, str(mxu_dtype), err)

    print("KERNEL_OK")
</pallas_src>

<mosaic_0001>
module attributes {stable_mosaic.version = 11 : i64} {
  func.func @_phase1_kernel(%arg0: i32, %arg1: i32, %arg2: memref<1x16x64xf32, #tpu.memory_space<vmem>>, %arg3: memref<1x16x64xf32, #tpu.memory_space<vmem>>, %arg4: memref<64x128xf32, #tpu.memory_space<vmem>>, %arg5: memref<1x64x128xf32, #tpu.memory_space<vmem>>, %arg6: memref<1x64xf32, #tpu.memory_space<vmem>>, %arg7: memref<1x64xf32, #tpu.memory_space<vmem>>, %arg8: memref<64x64xf32, #tpu.memory_space<vmem>>) attributes {dimension_semantics = [#tpu.dimension_semantics<parallel>, #tpu.dimension_semantics<arbitrary>], iteration_bounds = array<i64: 2, 4>, scalar_prefetch = 0 : i64, scratch_operands = 3 : i64, tpu.core_type = #tpu.core_type<tc>, window_params = [{transform_indices = @transform_0, window_bounds = array<i64: 1, 16, 64>}, {transform_indices = @transform_1, window_bounds = array<i64: 1, 16, 64>}, {pipeline_mode = #tpu.pipeline_mode<synchronous>, transform_indices = @transform_2, window_bounds = array<i64: 64, 128>}, {transform_indices = @transform_3, window_bounds = array<i64: 1, 64, 128>}]} {
    %c0_i32 = arith.constant 0 : i32
    %0 = arith.cmpi eq, %arg1, %c0_i32 : i32
    %1 = arith.extui %0 : i1 to i32
    %c0_i32_0 = arith.constant 0 : i32
    %2 = arith.cmpi ne, %1, %c0_i32_0 : i32
    scf.if %2 {
      %cst_23 = arith.constant 0xFF800000 : f32
      %33 = vector.broadcast %cst_23 : f32 to vector<1x64xf32>
      %c0_24 = arith.constant 0 : index
      %c0_25 = arith.constant 0 : index
      %34 = vector.load %arg6[%c0_24, %c0_25] : memref<1x64xf32, #tpu.memory_space<vmem>>, vector<1x64xf32>
      tpu.vector_store %arg6[%c0_24, %c0_25], %33 {strides = array<i32>} : memref<1x64xf32, #tpu.memory_space<vmem>>, vector<1x64xf32>,
      %cst_26 = arith.constant 0.000000e+00 : f32
      %35 = vector.broadcast %cst_26 : f32 to vector<1x64xf32>
      %c0_27 = arith.constant 0 : index
      %c0_28 = arith.constant 0 : index
      %36 = vector.load %arg7[%c0_27, %c0_28] : memref<1x64xf32, #tpu.memory_space<vmem>>, vector<1x64xf32>
      tpu.vector_store %arg7[%c0_27, %c0_28], %35 {strides = array<i32>} : memref<1x64xf32, #tpu.memory_space<vmem>>, vector<1x64xf32>,
      %cst_29 = arith.constant 0.000000e+00 : f32
      %37 = vector.broadcast %cst_29 : f32 to vector<64x64xf32>
      %c0_30 = arith.constant 0 : index
      %c0_31 = arith.constant 0 : index
      %38 = vector.load %arg8[%c0_30, %c0_31] : memref<64x64xf32, #tpu.memory_space<vmem>>, vector<64x64xf32>
      tpu.vector_store %arg8[%c0_30, %c0_31], %37 {strides = array<i32>} : memref<64x64xf32, #tpu.memory_space<vmem>>, vector<64x64xf32>,
    } else {
    }
    %c0 = arith.constant 0 : index
    %c0_1 = arith.constant 0 : index
    %c0_2 = arith.constant 0 : index
    %3 = vector.load %arg3[%c0, %c0_1, %c0_2] : memref<1x16x64xf32, #tpu.memory_space<vmem>>, vector<1x16x64xf32>
    %4 = vector.shape_cast %3 : vector<1x16x64xf32> to vector<16x64xf32>
    %c0_3 = arith.constant 0 : index
    %c0_4 = arith.constant 0 : index
    %c0_5 = arith.constant 0 : index
    %5 = vector.load %arg2[%c0_3, %c0_4, %c0_5] : memref<1x16x64xf32, #tpu.memory_space<vmem>>, vector<1x16x64xf32>
    %6 = vector.shape_cast %5 : vector<1x16x64xf32> to vector<16x64xf32>
    %cst = arith.constant dense<0xFF800000> : vector<64xf32>
    %7 = vector.multi_reduction <maximumf>, %4, %cst [0] : vector<16x64xf32> to vector<64xf32>
    %8 = vector.shape_cast %7 : vector<64xf32> to vector<1x64xf32>
    %c0_6 = arith.constant 0 : index
    %c0_7 = arith.constant 0 : index
    %9 = vector.load %arg6[%c0_6, %c0_7] : memref<1x64xf32, #tpu.memory_space<vmem>>, vector<1x64xf32>
    %10 = arith.maximumf %9, %8 : vector<1x64xf32>
    %c0_8 = arith.constant 0 : index
    %c0_9 = arith.constant 0 : index
    %11 = vector.load %arg6[%c0_8, %c0_9] : memref<1x64xf32, #tpu.memory_space<vmem>>, vector<1x64xf32>
    %12 = arith.subf %11, %10 : vector<1x64xf32>
    %13 = math.exp %12 : vector<1x64xf32>
    %14 = vector.broadcast %10 : vector<1x64xf32> to vector<16x64xf32>
    %15 = arith.subf %4, %14 : vector<16x64xf32>
    %16 = math.exp %15 : vector<16x64xf32>
    %c0_10 = arith.constant 0 : index
    %c0_11 = arith.constant 0 : index
    %17 = vector.load %arg7[%c0_10, %c0_11] : memref<1x64xf32, #tpu.memory_space<vmem>>, vector<1x64xf32>
    %18 = arith.mulf %17, %13 : vector<1x64xf32>
    %cst_12 = arith.constant dense<0.000000e+00> : vector<64xf32>
    %19 = vector.multi_reduction <add>, %16, %cst_12 [0] : vector<16x64xf32> to vector<64xf32>
    %20 = vector.shape_cast %19 : vector<64xf32> to vector<1x64xf32>
    %21 = arith.addf %18, %20 : vector<1x64xf32>
    %c0_13 = arith.constant 0 : index
    %c0_14 = arith.constant 0 : index
    %22 = vector.load %arg7[%c0_13, %c0_14] : memref<1x64xf32, #tpu.memory_space<vmem>>, vector<1x64xf32>
    tpu.vector_store %arg7[%c0_13, %c0_14], %21 {strides = array<i32>} : memref<1x64xf32, #tpu.memory_space<vmem>>, vector<1x64xf32>,
    %c0_15 = arith.constant 0 : index
    %c0_16 = arith.constant 0 : index
    %23 = vector.load %arg8[%c0_15, %c0_16] : memref<64x64xf32, #tpu.memory_space<vmem>>, vector<64x64xf32>
    %24 = vector.broadcast %13 : vector<1x64xf32> to vector<64x64xf32>
    %25 = arith.mulf %23, %24 : vector<64x64xf32>
    %cst_17 = arith.constant dense<0.000000e+00> : vector<64x64xf32>
    %26 = tpu.matmul %6, %16, %cst_17 {dimension_numbers = #tpu.dot_dimension_numbers<[0], [0], [1], [1], [0, 1, 1, 1], [], []>, precision = #tpu.contract_precision<fp32>} : vector<16x64xf32>, vector<16x64xf32>, vector<64x64xf32> -> vector<64x64xf32>
    %27 = arith.addf %25, %26 : vector<64x64xf32>
    %c0_18 = arith.constant 0 : index
    %c0_19 = arith.constant 0 : index
    %28 = vector.load %arg8[%c0_18, %c0_19] : memref<64x64xf32, #tpu.memory_space<vmem>>, vector<64x64xf32>
    tpu.vector_store %arg8[%c0_18, %c0_19], %27 {strides = array<i32>} : memref<64x64xf32, #tpu.memory_space<vmem>>, vector<64x64xf32>,
    %c0_20 = arith.constant 0 : index
    %c0_21 = arith.constant 0 : index
    %29 = vector.load %arg6[%c0_20, %c0_21] : memref<1x64xf32, #tpu.memory_space<vmem>>, vector<1x64xf32>
    tpu.vector_store %arg6[%c0_20, %c0_21], %10 {strides = array<i32>} : memref<1x64xf32, #tpu.memory_space<vmem>>, vector<1x64xf32>,
    %c3_i32 = arith.constant 3 : i32
    %30 = arith.cmpi eq, %arg1, %c3_i32 : i32
    %31 = arith.extui %30 : i1 to i32
    %c0_i32_22 = arith.constant 0 : i32
    %32 = arith.cmpi ne, %31, %c0_i32_22 : i32
    scf.if %32 {
      %c0_23 = arith.constant 0 : index
      %c0_24 = arith.constant 0 : index
      %33 = vector.load %arg8[%c0_23, %c0_24] : memref<64x64xf32, #tpu.memory_space<vmem>>, vector<64x64xf32>
      %c0_25 = arith.constant 0 : index
      %c0_26 = arith.constant 0 : index
      %34 = vector.load %arg7[%c0_25, %c0_26] : memref<1x64xf32, #tpu.memory_space<vmem>>, vector<1x64xf32>
      %35 = vector.broadcast %34 : vector<1x64xf32> to vector<64x64xf32>
      %36 = arith.divf %33, %35 : vector<64x64xf32>
      %c0_27 = arith.constant 0 : index
      %c0_28 = arith.constant 0 : index
      %37 = vector.load %arg4[%c0_27, %c0_28] : memref<64x128xf32, #tpu.memory_space<vmem>>, vector<64x128xf32>
      %cst_29 = arith.constant dense<0.000000e+00> : vector<64x128xf32>
      %38 = tpu.matmul %36, %37, %cst_29 {dimension_numbers = #tpu.dot_dimension_numbers<[0], [0], [1], [1], [0, 1, 1, 1], [], []>, precision = #tpu.contract_precision<fp32>} : vector<64x64xf32>, vector<64x128xf32>, vector<64x128xf32> -> vector<64x128xf32>
      %c0_30 = arith.constant 0 : index
      %c0_31 = arith.constant 0 : index
      %c0_32 = arith.constant 0 : index
      %39 = vector.load %arg5[%c0_30, %c0_31, %c0_32] : memref<1x64x128xf32, #tpu.memory_space<vmem>>, vector<1x64x128xf32>
      %40 = vector.shape_cast %39 : vector<1x64x128xf32> to vector<64x128xf32>
      %41 = vector.shape_cast %38 : vector<64x128xf32> to vector<1x64x128xf32>
      tpu.vector_store %arg5[%c0_30, %c0_31, %c0_32], %41 {strides = array<i32>} : memref<1x64x128xf32, #tpu.memory_space<vmem>>, vector<1x64x128xf32>,
    } else {
    }
    return
  }
  func.func @transform_0(%arg0: i32, %arg1: i32) -> (i32, i32, i32) {
    %c0_i32 = arith.constant 0 : i32
    %c0_i32_0 = arith.constant 0 : i32
    return %arg0, %arg1, %c0_i32 : i32, i32, i32
  }
  func.func @transform_1(%arg0: i32, %arg1: i32) -> (i32, i32, i32) {
    %c0_i32 = arith.constant 0 : i32
    %c0_i32_0 = arith.constant 0 : i32
    return %arg0, %arg1, %c0_i32 : i32, i32, i32
  }
  func.func @transform_2(%arg0: i32, %arg1: i32) -> (i32, i32) {
    %c0_i32 = arith.constant 0 : i32
    %c0_i32_0 = arith.constant 0 : i32
    %c0_i32_1 = arith.constant 0 : i32
    return %c0_i32, %c0_i32_0 : i32, i32
  }
  func.func @transform_3(%arg0: i32, %arg1: i32) -> (i32, i32, i32) {
    %c0_i32 = arith.constant 0 : i32
    %c0_i32_0 = arith.constant 0 : i32
    %c0_i32_1 = arith.constant 0 : i32
    return %arg0, %c0_i32, %c0_i32_0 : i32, i32, i32
  }
}

module attributes {stable_mosaic.version = 11 : i64} {
  func.func @_phase2_kernel(%arg0: i32, %arg1: i32, %arg2: memref<1x16x64xf32, #tpu.memory_space<vmem>>, %arg3: memref<1x64x128xf32, #tpu.memory_space<vmem>>, %arg4: memref<1x128xf32, #tpu.memory_space<vmem>>, %arg5: memref<1x128xf32, #tpu.memory_space<vmem>>, %arg6: memref<1x128xf32, #tpu.memory_space<vmem>>, %arg7: memref<1x16x128xf32, #tpu.memory_space<vmem>>) attributes {dimension_semantics = [#tpu.dimension_semantics<parallel>, #tpu.dimension_semantics<parallel>], iteration_bounds = array<i64: 2, 4>, scalar_prefetch = 0 : i64, scratch_operands = 0 : i64, tpu.core_type = #tpu.core_type<tc>, window_params = [{transform_indices = @transform_0, window_bounds = array<i64: 1, 16, 64>}, {transform_indices = @transform_1, window_bounds = array<i64: 1, 64, 128>}, {pipeline_mode = #tpu.pipeline_mode<synchronous>, transform_indices = @transform_2, window_bounds = array<i64: 1, 128>}, {pipeline_mode = #tpu.pipeline_mode<synchronous>, transform_indices = @transform_3, window_bounds = array<i64: 1, 128>}, {pipeline_mode = #tpu.pipeline_mode<synchronous>, transform_indices = @transform_4, window_bounds = array<i64: 1, 128>}, {transform_indices = @transform_5, window_bounds = array<i64: 1, 16, 128>}]} {
    %c0 = arith.constant 0 : index
    %c0_0 = arith.constant 0 : index
    %c0_1 = arith.constant 0 : index
    %0 = vector.load %arg2[%c0, %c0_0, %c0_1] : memref<1x16x64xf32, #tpu.memory_space<vmem>>, vector<1x16x64xf32>
    %1 = vector.shape_cast %0 : vector<1x16x64xf32> to vector<16x64xf32>
    %cst = arith.constant dense<0xFF800000> : vector<16xf32>
    %2 = vector.multi_reduction <maximumf>, %1, %cst [1] : vector<16x64xf32> to vector<16xf32>
    %3 = vector.shape_cast %2 : vector<16xf32> to vector<16x1xf32>
    %4 = vector.broadcast %3 : vector<16x1xf32> to vector<16x64xf32>
    %5 = arith.subf %1, %4 : vector<16x64xf32>
    %6 = math.exp %5 : vector<16x64xf32>
    %cst_2 = arith.constant dense<0.000000e+00> : vector<16xf32>
    %7 = vector.multi_reduction <add>, %6, %cst_2 [1] : vector<16x64xf32> to vector<16xf32>
    %8 = vector.shape_cast %7 : vector<16xf32> to vector<16x1xf32>
    %9 = vector.broadcast %8 : vector<16x1xf32> to vector<16x64xf32>
    %10 = arith.divf %6, %9 : vector<16x64xf32>
    %c0_3 = arith.constant 0 : index
    %c0_4 = arith.constant 0 : index
    %c0_5 = arith.constant 0 : index
    %11 = vector.load %arg3[%c0_3, %c0_4, %c0_5] : memref<1x64x128xf32, #tpu.memory_space<vmem>>, vector<1x64x128xf32>
    %12 = vector.shape_cast %11 : vector<1x64x128xf32> to vector<64x128xf32>
    %cst_6 = arith.constant dense<0.000000e+00> : vector<16x128xf32>
    %13 = tpu.matmul %10, %12, %cst_6 {dimension_numbers = #tpu.dot_dimension_numbers<[1], [0], [0], [1], [0, 0, 1, 1], [], []>, precision = #tpu.contract_precision<fp32>} : vector<16x64xf32>, vector<64x128xf32>, vector<16x128xf32> -> vector<16x128xf32>
    %c0_7 = arith.constant 0 : index
    %c0_8 = arith.constant 0 : index
    %14 = vector.load %arg4[%c0_7, %c0_8] : memref<1x128xf32, #tpu.memory_space<vmem>>, vector<1x128xf32>
    %15 = vector.broadcast %14 : vector<1x128xf32> to vector<16x128xf32>
    %16 = arith.addf %13, %15 : vector<16x128xf32>
    %cst_9 = arith.constant dense<0.000000e+00> : vector<16xf32>
    %17 = vector.multi_reduction <add>, %16, %cst_9 [1] : vector<16x128xf32> to vector<16xf32>
    %18 = vector.shape_cast %17 : vector<16xf32> to vector<16x1xf32>
    %cst_10 = arith.constant 1.280000e+02 : f32
    %19 = vector.broadcast %cst_10 : f32 to vector<16x1xf32>
    %20 = arith.divf %18, %19 : vector<16x1xf32>
    %21 = vector.broadcast %20 : vector<16x1xf32> to vector<16x128xf32>
    %22 = arith.subf %16, %21 : vector<16x128xf32>
    %23 = arith.mulf %22, %22 : vector<16x128xf32>
    %cst_11 = arith.constant dense<0.000000e+00> : vector<16xf32>
    %24 = vector.multi_reduction <add>, %23, %cst_11 [1] : vector<16x128xf32> to vector<16xf32>
    %25 = vector.shape_cast %24 : vector<16xf32> to vector<16x1xf32>
    %cst_12 = arith.constant 1.280000e+02 : f32
    %26 = vector.broadcast %cst_12 : f32 to vector<16x1xf32>
    %27 = arith.divf %25, %26 : vector<16x1xf32>
    %cst_13 = arith.constant 9.99999974E-6 : f32
    %28 = vector.broadcast %cst_13 : f32 to vector<16x1xf32>
    %29 = arith.addf %27, %28 : vector<16x1xf32>
    %30 = math.rsqrt %29 : vector<16x1xf32>
    %31 = vector.broadcast %30 : vector<16x1xf32> to vector<16x128xf32>
    %32 = arith.mulf %22, %31 : vector<16x128xf32>
    %c0_14 = arith.constant 0 : index
    %c0_15 = arith.constant 0 : index
    %33 = vector.load %arg5[%c0_14, %c0_15] : memref<1x128xf32, #tpu.memory_space<vmem>>, vector<1x128xf32>
    %34 = vector.broadcast %33 : vector<1x128xf32> to vector<16x128xf32>
    %35 = arith.mulf %32, %34 : vector<16x128xf32>
    %c0_16 = arith.constant 0 : index
    %c0_17 = arith.constant 0 : index
    %36 = vector.load %arg6[%c0_16, %c0_17] : memref<1x128xf32, #tpu.memory_space<vmem>>, vector<1x128xf32>
    %37 = vector.broadcast %36 : vector<1x128xf32> to vector<16x128xf32>
    %38 = arith.addf %35, %37 : vector<16x128xf32>
    %c0_18 = arith.constant 0 : index
    %c0_19 = arith.constant 0 : index
    %c0_20 = arith.constant 0 : index
    %39 = vector.load %arg7[%c0_18, %c0_19, %c0_20] : memref<1x16x128xf32, #tpu.memory_space<vmem>>, vector<1x16x128xf32>
    %40 = vector.shape_cast %39 : vector<1x16x128xf32> to vector<16x128xf32>
    %41 = vector.shape_cast %38 : vector<16x128xf32> to vector<1x16x128xf32>
    tpu.vector_store %arg7[%c0_18, %c0_19, %c0_20], %41 {strides = array<i32>} : memref<1x16x128xf32, #tpu.memory_space<vmem>>, vector<1x16x128xf32>,
    return
  }
  func.func @transform_0(%arg0: i32, %arg1: i32) -> (i32, i32, i32) {
    %c0_i32 = arith.constant 0 : i32
    %c0_i32_0 = arith.constant 0 : i32
    return %arg0, %arg1, %c0_i32 : i32, i32, i32
  }
  func.func @transform_1(%arg0: i32, %arg1: i32) -> (i32, i32, i32) {
    %c0_i32 = arith.constant 0 : i32
    %c0_i32_0 = arith.constant 0 : i32
    %c0_i32_1 = arith.constant 0 : i32
    return %arg0, %c0_i32, %c0_i32_0 : i32, i32, i32
  }
  func.func @transform_2(%arg0: i32, %arg1: i32) -> (i32, i32) {
    %c0_i32 = arith.constant 0 : i32
    %c0_i32_0 = arith.constant 0 : i32
    %c0_i32_1 = arith.constant 0 : i32
    return %c0_i32, %c0_i32_0 : i32, i32
  }
  func.func @transform_3(%arg0: i32, %arg1: i32) -> (i32, i32) {
    %c0_i32 = arith.constant 0 : i32
    %c0_i32_0 = arith.constant 0 : i32
    %c0_i32_1 = arith.constant 0 : i32
    return %c0_i32, %c0_i32_0 : i32, i32
  }
  func.func @transform_4(%arg0: i32, %arg1: i32) -> (i32, i32) {
    %c0_i32 = arith.constant 0 : i32
    %c0_i32_0 = arith.constant 0 : i32
    %c0_i32_1 = arith.constant 0 : i32
    return %c0_i32, %c0_i32_0 : i32, i32
  }
  func.func @transform_5(%arg0: i32, %arg1: i32) -> (i32, i32, i32) {
    %c0_i32 = arith.constant 0 : i32
    %c0_i32_0 = arith.constant 0 : i32
    return %arg0, %arg1, %c0_i32 : i32, i32, i32
  }
}

</mosaic_0001>

<llo_original>
// kernel: cross_attention_forward.3
$region0: #{cross_attention_forward.3}
  #allocation0 [shape = 'u32[]', space=smem, size = 0x4, offset = 0x4, fixed_abs, tag = 'smem constant byte address 0x4 - core index']
  #allocation1 [shape = 'u32[144,128]{1,0:T(1,128)}', space=vmem, size = 0x12000, scoped, tag = 'internal scratch']
  %s0 = inlined_call_operand.vmem [shape: f32[2,64,64], index: 0, kind: input, shape index: {}]
  %s1 = inlined_call_operand.vmem [shape: f32[2,64,128], index: 1, kind: input, shape index: {}]
  %s2 = inlined_call_operand.vmem [shape: f32[1,128], index: 2, kind: input, shape index: {}]
  %s3 = inlined_call_operand.vmem [shape: f32[1,128], index: 3, kind: input, shape index: {}]
  %s4 = inlined_call_operand.vmem [shape: f32[1,128], index: 4, kind: input, shape index: {}]
  %s5 = inlined_call_operand.hbm [shape: f32[2,64,128], index: 5, kind: output, shape index: {}]
  %s6 = sld [smem:[#allocation0]]
  $region53: #{cross_attention_forward.3} parent=0
    _
  %s8 = ssub.s32 1, %s6
  %s9 = scalar_select 0, %s8, %s6
  $region1: #{cross_attention_forward.3} parent=0
    #allocation2 [shape = 'u8[16384]{0}', space=vmem, size = 0x4000, scoped, tag = 'output window, operand 0']
    #allocation3 [shape = 's32[2]{0}', space=sflag, size = 0x8, scoped, tag = 'scoped memory for cross_attention_forward.3']
    %10 = vsyncpa [#allocation3], 0
    %s11 = scalar_lea.sflag [#allocation3], 1
    %12 = vsyncpa %s11, 0
    loop: start=0, step=1, limit=10
    $region2: #{cross_attention_forward.3} parent=1 // loop_pre_header
      _
    $region3: #{cross_attention_forward.3} parent=1 // loop_header
      %s14 = sphi 0, %s18
      %p15 = scmp.ge.s32.totalorder %s14, 10
      %s21 = sphi 0, %s33
      %s22 = sphi 0, %s29
      %s23 = sphi 0, %s21
      %s24 = sphi 0, %s22
      %s25 = sphi 0, %s23
      %s26 = sphi 0, %s24
      %s38 = sphi 0, %s40
      %s41 = sphi 0, %s38
      %s42 = sphi 0, %s41
      %s58 = sphi 0, %s42
      %s64 = sphi 0, %s66
      %s67 = sphi 0, %s64
      %s68 = sphi 0, %s67
      %s84 = sphi 0, %s68
      %s88 = sphi 0, %s88
      %s90 = sphi 0, %s88
      %s91 = sphi 0, %s90
      %s105 = sphi 0, %s91
      %s109 = sphi 0, %s109
      %s111 = sphi 0, %s109
      %s112 = sphi 0, %s111
      %s126 = sphi 0, %s112
      %s130 = sphi 0, %s130
      %s132 = sphi 0, %s130
      %s133 = sphi 0, %s132
      %s147 = sphi 0, %s133
      %s155 = sphi 0, %s157
      %s158 = sphi 0, %s155
      %s159 = sphi 0, %s158
      %s175 = sphi 0, %s159
    $region4: #{cross_attention_forward.3} parent=1 // loop_header_branch
      %17 = sbr.rel (%p15) target = $region8
    $region5: #{cross_attention_forward.3} parent=1 // loop_body
      %s19 = ssub.s32 %s14, 1
      %s20 = ssub.s32 %s14, 2
      %s27 = sadd.s32 1, %s22
      %p28 = scmp.ge.s32.totalorder %s27, 4
      %s29 = scalar_select %p28, 0, %s27
      %s30 = sadd.s32 1, %s21
      %s31 = scalar_select %p28, %s30, %s21
      %p32 = scmp.ge.s32.totalorder %s31, 2
      %s33 = scalar_select %p32, 0, %s31
      %s34 = ssub.s32 %s21, %s33
      %s35 = ssub.s32 %s22, %s29
      %s36 = sor.u32 %s34, %s35
      %p37 = scmp.eq.s32.totalorder %s36, 0
      %s39 = sadd.s32 %s38, 1
      %s40 = scalar_select %p37, %s38, %s39
      %p43 = pneg %p37
      %p44 = scmp.eq.s32.totalorder %s14, 7
      %p45 = por %p43, %p44
      %p46 = scmp.ne.s32.totalorder %s38, %s41
      %p47 = scmp.eq.s32.totalorder %s14, 0
      %p48 = por %p46, %p47
      %p49 = scmp.ne.s32.totalorder %s38, %s41
      %p50 = scmp.eq.s32.totalorder %s19, 7
      %p51 = por %p49, %p50
      %p52 = scmp.ne.s32.totalorder %s41, %s42
      %p53 = scmp.eq.s32.totalorder %s19, 0
      %p54 = por %p52, %p53
      %p55 = scmp.ne.s32.totalorder %s41, %s42
      %p56 = scmp.eq.s32.totalorder %s20, 7
      %p57 = por %p55, %p56
      %p59 = scmp.ne.s32.totalorder %s42, %s58
      %p60 = scmp.eq.s32.totalorder %s20, 0
      %p61 = por %p59, %p60
      %s62 = ssub.s32 %s21, %s33
      %p63 = scmp.eq.s32.totalorder %s62, 0
      %s65 = sadd.s32 %s64, 1
      %s66 = scalar_select %p63, %s64, %s65
      %p69 = pneg %p63
      %p70 = scmp.eq.s32.totalorder %s14, 7
      %p71 = por %p69, %p70
      %p72 = scmp.ne.s32.totalorder %s64, %s67
      %p73 = scmp.eq.s32.totalorder %s14, 0
      %p74 = por %p72, %p73
      %p75 = scmp.ne.s32.totalorder %s64, %s67
      %p76 = scmp.eq.s32.totalorder %s19, 7
      %p77 = por %p75, %p76
      %p78 = scmp.ne.s32.totalorder %s67, %s68
      %p79 = scmp.eq.s32.totalorder %s19, 0
      %p80 = por %p78, %p79
      %p81 = scmp.ne.s32.totalorder %s67, %s68
      %p82 = scmp.eq.s32.totalorder %s20, 7
      %p83 = por %p81, %p82
      %p85 = scmp.ne.s32.totalorder %s68, %s84
      %p86 = scmp.eq.s32.totalorder %s20, 0
      %p87 = por %p85, %p86
      %s89 = sadd.s32 %s88, 1
      %p92 = scmp.eq.s32.totalorder %s14, 7
      %p93 = scmp.ne.s32.totalorder %s88, %s90
      %p94 = scmp.eq.s32.totalorder %s14, 0
      %p95 = por %p93, %p94
      %p96 = scmp.ne.s32.totalorder %s88, %s90
      %p97 = scmp.eq.s32.totalorder %s19, 7
      %p98 = por %p96, %p97
      %p99 = scmp.ne.s32.totalorder %s90, %s91
      %p100 = scmp.eq.s32.totalorder %s19, 0
      %p101 = por %p99, %p100
      %p102 = scmp.ne.s32.totalorder %s90, %s91
      %p103 = scmp.eq.s32.totalorder %s20, 7
      %p104 = por %p102, %p103
      %p106 = scmp.ne.s32.totalorder %s91, %s105
      %p107 = scmp.eq.s32.totalorder %s20, 0
      %p108 = por %p106, %p107
      %s110 = sadd.s32 %s109, 1
      %p113 = scmp.eq.s32.totalorder %s14, 7
      %p114 = scmp.ne.s32.totalorder %s109, %s111
      %p115 = scmp.eq.s32.totalorder %s14, 0
      %p116 = por %p114, %p115
      %p117 = scmp.ne.s32.totalorder %s109, %s111
      %p118 = scmp.eq.s32.totalorder %s19, 7
      %p119 = por %p117, %p118
      %p120 = scmp.ne.s32.totalorder %s111, %s112
      %p121 = scmp.eq.s32.totalorder %s19, 0
      %p122 = por %p120, %p121
      %p123 = scmp.ne.s32.totalorder %s111, %s112
      %p124 = scmp.eq.s32.totalorder %s20, 7
      %p125 = por %p123, %p124
      %p127 = scmp.ne.s32.totalorder %s112, %s126
      %p128 = scmp.eq.s32.totalorder %s20, 0
      %p129 = por %p127, %p128
      %s131 = sadd.s32 %s130, 1
      %p134 = scmp.eq.s32.totalorder %s14, 7
      %p135 = scmp.ne.s32.totalorder %s130, %s132
      %p136 = scmp.eq.s32.totalorder %s14, 0
      %p137 = por %p135, %p136
      %p138 = scmp.ne.s32.totalorder %s130, %s132
      %p139 = scmp.eq.s32.totalorder %s19, 7
      %p140 = por %p138, %p139
      %p141 = scmp.ne.s32.totalorder %s132, %s133
      %p142 = scmp.eq.s32.totalorder %s19, 0
      %p143 = por %p141, %p142
      %p144 = scmp.ne.s32.totalorder %s132, %s133
      %p145 = scmp.eq.s32.totalorder %s20, 7
      %p146 = por %p144, %p145
      %p148 = scmp.ne.s32.totalorder %s133, %s147
      %p149 = scmp.eq.s32.totalorder %s20, 0
      %p150 = por %p148, %p149
      %s151 = ssub.s32 %s21, %s33
      %s152 = ssub.s32 %s22, %s29
      %s153 = sor.u32 %s151, %s152
      %p154 = scmp.eq.s32.totalorder %s153, 0
      %s156 = sadd.s32 %s155, 1
      %s157 = scalar_select %p154, %s155, %s156
      %p160 = pneg %p154
      %p161 = scmp.eq.s32.totalorder %s14, 7
      %p162 = por %p160, %p161
      %p163 = scmp.ne.s32.totalorder %s155, %s158
      %p164 = scmp.eq.s32.totalorder %s14, 0
      %p165 = por %p163, %p164
      %p166 = scmp.ne.s32.totalorder %s155, %s158
      %p167 = scmp.eq.s32.totalorder %s19, 7
      %p168 = por %p166, %p167
      %p169 = scmp.ne.s32.totalorder %s158, %s159
      %p170 = scmp.eq.s32.totalorder %s19, 0
      %p171 = por %p169, %p170
      %p172 = scmp.ne.s32.totalorder %s158, %s159
      %p173 = scmp.eq.s32.totalorder %s20, 7
      %p174 = por %p172, %p173
      %p176 = scmp.ne.s32.totalorder %s159, %s175
      %p177 = scmp.eq.s32.totalorder %s20, 0
      %p178 = por %p176, %p177
      %p179 = scmp.le.s32.totalorder 1, %s14
      %p180 = scmp.lt.s32.totalorder %s14, 9
      %p181 = pnand %p179, %p180
      %p182 = pneg %p181
      // Predicated region
      $region9: #{cross_attention_forward.3} parent=5 // pred_check
        _
      $region10: #{cross_attention_forward.3} parent=5 // pred_check_branch
        %184 = sbr.rel (%p181) target = $region12
      $region11: #{cross_attention_forward.3} parent=5 // pred_region
        %s185 = ssub.s32 %s14, 1
        // Predicated region
        $region13: #{cross_attention_forward.3} parent=11 // pred_check
          %p186 = pneg %p101
        $region14: #{cross_attention_forward.3} parent=11 // pred_check_branch
          %188 = sbr.rel (%p186) target = $region16
        $region15: #{cross_attention_forward.3} parent=11 // pred_region
          _
        $region16: #{cross_attention_forward.3} parent=11 // pred_fallthru
          _
        // Predicated region
        $region17: #{cross_attention_forward.3} parent=11 // pred_check
          %p189 = pneg %p122
        $region18: #{cross_attention_forward.3} parent=11 // pred_check_branch
          %191 = sbr.rel (%p189) target = $region20
        $region19: #{cross_attention_forward.3} parent=11 // pred_region
          _
        $region20: #{cross_attention_forward.3} parent=11 // pred_fallthru
          _
        // Predicated region
        $region21: #{cross_attention_forward.3} parent=11 // pred_check
          %p192 = pneg %p143
        $region22: #{cross_attention_forward.3} parent=11 // pred_check_branch
          %194 = sbr.rel (%p192) target = $region24
        $region23: #{cross_attention_forward.3} parent=11 // pred_region
          _
        $region24: #{cross_attention_forward.3} parent=11 // pred_fallthru
          _
      $region12: #{cross_attention_forward.3} parent=5 // pred_fallthru
        _
      %p195 = scmp.lt.s32.totalorder %s14, 8
      // Predicated region
      $region25: #{cross_attention_forward.3} parent=5 // pred_check
        %p196 = pneg %p195
      $region26: #{cross_attention_forward.3} parent=5 // pred_check_branch
        %198 = sbr.rel (%p196) target = $region28
      $region27: #{cross_attention_forward.3} parent=5 // pred_region
        // Predicated region
        $region29: #{cross_attention_forward.3} parent=27 // pred_check
          %p199 = pneg %p48
        $region30: #{cross_attention_forward.3} parent=27 // pred_check_branch
          %201 = sbr.rel (%p199) target = $region32
        $region31: #{cross_attention_forward.3} parent=27 // pred_region
          %s202 = smul.u32 2, %s22
          %p203 = scmp.lt.s32.totalorder %s21, 1
          %s204 = scalar_select %p203, %s21, 1
          %p205 = scmp.lt.s32.totalorder %s202, 7
          %s206 = scalar_select %p205, %s202, 7
          %s207 = smul.addr %s204, 8
          %s208 = sadd.s32 %s206, %s207
          %s209 = smul.addr %s208, 8
          %s210 = scalar_lea.vmem %s0, %s209
          %s211 = smul.u32 2, %s22
        $region32: #{cross_attention_forward.3} parent=27 // pred_fallthru
          _
        // Predicated region
        $region33: #{cross_attention_forward.3} parent=27 // pred_check
          %p212 = pneg %p74
        $region34: #{cross_attention_forward.3} parent=27 // pred_check_branch
          %214 = sbr.rel (%p212) target = $region36
        $region35: #{cross_attention_forward.3} parent=27 // pred_region
          %p215 = scmp.lt.s32.totalorder %s21, 1
          %s216 = scalar_select %p215, %s21, 1
          %s217 = smul.addr %s216, 8
          %s218 = smul.addr %s217, 8
          %s219 = scalar_lea.vmem %s1, %s218
        $region36: #{cross_attention_forward.3} parent=27 // pred_fallthru
          _
      $region28: #{cross_attention_forward.3} parent=5 // pred_fallthru
        _
      %p220 = scmp.le.s32.totalorder 1, %s14
      %p221 = scmp.lt.s32.totalorder %s14, 9
      %p222 = pnand %p220, %p221
      %p223 = pneg %p222
      // Predicated region
      $region37: #{cross_attention_forward.3} parent=5 // pred_check
        _
      $region38: #{cross_attention_forward.3} parent=5 // pred_check_branch
        %225 = sbr.rel (%p222) target = $region40
      $region39: #{cross_attention_forward.3} parent=5 // pred_region
        %s226 = ssub.s32 %s14, 1
        %s227 = smul.u32 2, %s24
        %p228 = scmp.lt.s32.totalorder %s23, 1
        %s229 = scalar_select %p228, %s23, 1
        %p230 = scmp.lt.s32.totalorder %s227, 7
        %s231 = scalar_select %p230, %s227, 7
        %s232 = smul.addr %s229, 8
        %s233 = sadd.s32 %s231, %s232
        %s234 = smul.addr %s233, 8
        %s235 = scalar_lea.vmem %s0, %s234
        %p236 = pneg %p54
        %p237 = pneg %p51
        %p238 = scmp.lt.s32.totalorder %s23, 1
        %s239 = scalar_select %p238, %s23, 1
        %s240 = smul.addr %s239, 8
        %s241 = smul.addr %s240, 8
        %s242 = scalar_lea.vmem %s1, %s241
        %p243 = pneg %p80
        %p244 = pneg %p77
        %p245 = pneg %p101
        %p246 = pneg %p98
        %p247 = pneg %p122
        %p248 = pneg %p119
        %p249 = pneg %p143
        %p250 = pneg %p140
        %p251 = pneg %p171
        %p252 = pneg %p168
        %s253 = sand.u32 %s158, 1
        %s254 = scalar_lea.sflag [#allocation3], %s253
        %s255 = sand.u32 %s158, 1
        %s256 = smul.addr %s255, 16
        %s257 = scalar_lea.vmem [#allocation2], %s256
        %s258 = smul.u32 2, %s24
        %p259 = scmp.lt.s32.totalorder %s23, 1
        %s260 = scalar_select %p259, %s23, 1
        %p261 = scmp.lt.s32.totalorder %s258, 7
        %s262 = scalar_select %p261, %s258, 7
        %s263 = smul.addr %s260, 8
        %s264 = sadd.s32 %s262, %s263
        %s265 = smul.addr %s264, 8
        %s266 = scalar_lea.vmem %s0, %s265
        %s267 = smul.u32 2, %s24
        %p268 = scmp.lt.s32.totalorder %s23, 1
        %s269 = scalar_select %p268, %s23, 1
        %s270 = smul.addr %s269, 8
        %s271 = smul.addr %s270, 8
        %s272 = scalar_lea.vmem %s1, %s271
        %s273 = smul.u32 2, %s24
        %v274 = vld [vmem:[%s266] sm:$0xff]
        %v275 = vld [vmem:[%s266 + $0x8] sm:$0xff]
        %vm276 = vcmask 523264
        %v277 = vsel %vm276, %v274, -inf
        %278 = vmax.xlane.f32.xlu0 %v277
        %v279 = vpop.xlane.xlu0 %278
        %v280 = vsel %vm276, %v275, -inf
        %281 = vmax.xlane.f32.xlu0 %v280
        %v282 = vpop.xlane.xlu0 %281
        %v283 = vsub.f32 %v274, %v279
        %v284 = vsub.f32 %v275, %v282
        %v285 = vmul.f32 %v283, 1.442695
        %v286 = vpow.pop %v285
        %v287 = vmul.f32 %v284, 1.442695
        %v288 = vpow.pop %v287
        %v289 = vsel %vm276, %v286, 0.0
        %290 = vadd.xlane.f32.xlu0 %v289
        %v291 = vpop.xlane.xlu0 %290
        %v292 = vsel %vm276, %v288, 0.0
        %293 = vadd.xlane.f32.xlu0 %v292
        %v294 = vpop.xlane.xlu0 %293
        %v295 = vrcp.pop %v291
        %v296 = vmul.f32 %v286, %v295
        %v297 = vrcp.pop %v294
        %v298 = vmul.f32 %v288, %v297
        %v299 = vld [vmem:[%s272] sm:$0xff]
        %v300 = vld [vmem:[%s272 + $0x8] sm:$0xff]
        %v301 = vld [vmem:[%s272 + $0x10] sm:$0xff]
        %v302 = vld [vmem:[%s272 + $0x18] sm:$0xff]
        %v303 = vld [vmem:[%s272 + $0x20] sm:$0xff]
        %v304 = vld [vmem:[%s272 + $0x28] sm:$0xff]
        %v305 = vld [vmem:[%s272 + $0x30] sm:$0xff]
        %v306 = vld [vmem:[%s272 + $0x38] sm:$0xff]
        %v307 = vld [vmem:[%s2] sm:$0x1]
        %v309 = vlaneseq
        %v310 = vshrl.u32 %v309, 7
        %v311 = vsub.s32 0, %v310
        %v312 = vrot.slane %v307, %v311
        %v315 = vsel %vm276, %v296, 0
        %v318 = vsel %vm276, %v298, 0
        %320 = vmatprep.subr.mxu0 0.0
        %321 = vmatpush1.msra.mxu0 0.0
        %322 = vmatprep.subr.mxu0 0.0
        %323 = vmatpush1.msra.mxu0 0.0
        %324 = vmatprep.subr.mxu0 0.0
        %325 = vmatpush1.msra.mxu0 0.0
        %326 = vmatprep.subr.mxu0 0.0
        %327 = vmatpush1.msra.mxu0 0.0
        %328 = vmatprep.subr.mxu0 0.0
        %329 = vmatpush1.msra.mxu0 0.0
        %330 = vmatprep.subr.mxu0 0.0
        %331 = vmatpush1.msra.mxu0 0.0
        %332 = vmatprep.subr.mxu0 0.0
        %333 = vmatpush1.msra.mxu0 0.0
        %334 = vmatprep.subr.mxu0 0.0
        %335 = vmatpush1.msra.mxu0 0.0
        %336 = vmatprep.subr.mxu0 0.0
        %v337 = vand.u32 %v306, 4294901760
        %338 = vmatpush1.msra.mxu0 %v337
        %339 = vmatprep.subr.mxu0 0.0
        %v340 = vand.u32 %v305, 4294901760
        %341 = vmatpush1.msra.mxu0 %v340
        %342 = vmatprep.subr.mxu0 0.0
        %v343 = vand.u32 %v304, 4294901760
        %344 = vmatpush1.msra.mxu0 %v343
        %345 = vmatprep.subr.mxu0 0.0
        %v346 = vand.u32 %v303, 4294901760
        %347 = vmatpush1.msra.mxu0 %v346
        %348 = vmatprep.subr.mxu0 0.0
        %v349 = vand.u32 %v302, 4294901760
        %350 = vmatpush1.msra.mxu0 %v349
        %351 = vmatprep.subr.mxu0 0.0
        %v352 = vand.u32 %v301, 4294901760
        %353 = vmatpush1.msra.mxu0 %v352
        %354 = vmatprep.subr.mxu0 0.0
        %v355 = vand.u32 %v300, 4294901760
        %356 = vmatpush1.msra.mxu0 %v355
        %357 = vmatprep.subr.mxu0 0.0
        %v358 = vand.u32 %v299, 4294901760
        %359 = vmatpush1.msra.mxu0 %v358
        %360 = vmatprep.subr.mxu0 0.0
        %361 = vmatpush2.msra.mxu0 0.0
        %362 = vmatprep.subr.mxu0 0.0
        %363 = vmatpush2.msra.mxu0 0.0
        %364 = vmatprep.subr.mxu0 0.0
        %365 = vmatpush2.msra.mxu0 0.0
        %366 = vmatprep.subr.mxu0 0.0
        %367 = vmatpush2.msra.mxu0 0.0
        %368 = vmatprep.subr.mxu0 0.0
        %369 = vmatpush2.msra.mxu0 0.0
        %370 = vmatprep.subr.mxu0 0.0
        %371 = vmatpush2.msra.mxu0 0.0
        %372 = vmatprep.subr.mxu0 0.0
        %373 = vmatpush2.msra.mxu0 0.0
        %374 = vmatprep.subr.mxu0 0.0
        %375 = vmatpush2.msra.mxu0 0.0
        %376 = vmatprep.subr.mxu0 0.0
        %377 = vmatpush2.msra.mxu0 0.0
        %378 = vmatprep.subr.mxu0 0.0
        %379 = vmatpush2.msra.mxu0 0.0
        %380 = vmatprep.subr.mxu0 0.0
        %381 = vmatpush2.msra.mxu0 0.0
        %382 = vmatprep.subr.mxu0 0.0
        %383 = vmatpush2.msra.mxu0 0.0
        %384 = vmatprep.subr.mxu0 0.0
        %385 = vmatpush2.msra.mxu0 0.0
        %386 = vmatprep.subr.mxu0 0.0
        %387 = vmatpush2.msra.mxu0 0.0
        %388 = vmatprep.subr.mxu0 0.0
        %389 = vmatpush2.msra.mxu0 0.0
        %390 = vmatprep.subr.mxu0 0.0
        %391 = vmatpush2.msra.mxu0 0.0
        %392 = vmatprep.mubr.f32.mxu0 0.0
        %v393 = vand.u32 %v315, 4294901760
        %v394 = vsub.f32 %v315, %v393
        %v395 = vand.u32 %v394, 4294901760
        %v396 = vsub.f32 %v394, %v395
        %v397 = vand.u32 %v396, 4294901760
        %398 = vmatmul.mubr.f32.gmra.mxu0 %v397
        %v399 = vpop.f32.mrf.mxu0
        %v400 = vadd.f32 %v312, %v399
        %v401 = vpop.f32.mrf.mxu0
        %402 = vmatprep.mubr.f32.mxu0 0.0
        %v403 = vand.u32 %v318, 4294901760
        %v404 = vsub.f32 %v318, %v403
        %v405 = vand.u32 %v404, 4294901760
        %v406 = vsub.f32 %v404, %v405
        %v407 = vand.u32 %v406, 4294901760
        %408 = vmatmul.mubr.f32.gmra.mxu0 %v407
        %v409 = vpop.f32.mrf.mxu0
        %v410 = vadd.f32 %v312, %v409
        %v411 = vpop.f32.mrf.mxu0
        %412 = vdwg.mxu0
        %413 = vmatprep.subr.mxu0 0.0
        %414 = vmatpush1.msra.mxu0 0.0
        %415 = vmatprep.subr.mxu0 0.0
        %416 = vmatpush1.msra.mxu0 0.0
        %417 = vmatprep.subr.mxu0 0.0
        %418 = vmatpush1.msra.mxu0 0.0
        %419 = vmatprep.subr.mxu0 0.0
        %420 = vmatpush1.msra.mxu0 0.0
        %421 = vmatprep.subr.mxu0 0.0
        %422 = vmatpush1.msra.mxu0 0.0
        %423 = vmatprep.subr.mxu0 0.0
        %424 = vmatpush1.msra.mxu0 0.0
        %425 = vmatprep.subr.mxu0 0.0
        %426 = vmatpush1.msra.mxu0 0.0
        %427 = vmatprep.subr.mxu0 0.0
        %428 = vmatpush1.msra.mxu0 0.0
        %429 = vmatprep.subr.mxu0 0.0
        %v430 = vand.u32 %v306, 4294901760
        %v431 = vsub.f32 %v306, %v430
        %v432 = vand.u32 %v431, 4294901760
        %v433 = vsub.f32 %v431, %v432
        %v434 = vand.u32 %v433, 4294901760
        %435 = vmatpush1.msra.mxu0 %v434
        %436 = vmatprep.subr.mxu0 0.0
        %v437 = vand.u32 %v305, 4294901760
        %v438 = vsub.f32 %v305, %v437
        %v439 = vand.u32 %v438, 4294901760
        %v440 = vsub.f32 %v438, %v439
        %v441 = vand.u32 %v440, 4294901760
        %442 = vmatpush1.msra.mxu0 %v441
        %443 = vmatprep.subr.mxu0 0.0
        %v444 = vand.u32 %v304, 4294901760
        %v445 = vsub.f32 %v304, %v444
        %v446 = vand.u32 %v445, 4294901760
        %v447 = vsub.f32 %v445, %v446
        %v448 = vand.u32 %v447, 4294901760
        %449 = vmatpush1.msra.mxu0 %v448
        %450 = vmatprep.subr.mxu0 0.0
        %v451 = vand.u32 %v303, 4294901760
        %v452 = vsub.f32 %v303, %v451
        %v453 = vand.u32 %v452, 4294901760
        %v454 = vsub.f32 %v452, %v453
        %v455 = vand.u32 %v454, 4294901760
        %456 = vmatpush1.msra.mxu0 %v455
        %457 = vmatprep.subr.mxu0 0.0
        %v458 = vand.u32 %v302, 4294901760
        %v459 = vsub.f32 %v302, %v458
        %v460 = vand.u32 %v459, 4294901760
        %v461 = vsub.f32 %v459, %v460
        %v462 = vand.u32 %v461, 4294901760
        %463 = vmatpush1.msra.mxu0 %v462
        %464 = vmatprep.subr.mxu0 0.0
        %v465 = vand.u32 %v301, 4294901760
        %v466 = vsub.f32 %v301, %v465
        %v467 = vand.u32 %v466, 4294901760
        %v468 = vsub.f32 %v466, %v467
        %v469 = vand.u32 %v468, 4294901760
        %470 = vmatpush1.msra.mxu0 %v469
        %471 = vmatprep.subr.mxu0 0.0
        %v472 = vand.u32 %v300, 4294901760
        %v473 = vsub.f32 %v300, %v472
        %v474 = vand.u32 %v473, 4294901760
        %v475 = vsub.f32 %v473, %v474
        %v476 = vand.u32 %v475, 4294901760
        %477 = vmatpush1.msra.mxu0 %v476
        %478 = vmatprep.subr.mxu0 0.0
        %v479 = vand.u32 %v299, 4294901760
        %v480 = vsub.f32 %v299, %v479
        %v481 = vand.u32 %v480, 4294901760
        %v482 = vsub.f32 %v480, %v481
        %v483 = vand.u32 %v482, 4294901760
        %484 = vmatpush1.msra.mxu0 %v483
        %485 = vmatprep.subr.mxu0 0.0
        %486 = vmatpush2.msra.mxu0 0.0
        %487 = vmatprep.subr.mxu0 0.0
        %488 = vmatpush2.msra.mxu0 0.0
        %489 = vmatprep.subr.mxu0 0.0
        %490 = vmatpush2.msra.mxu0 0.0
        %491 = vmatprep.subr.mxu0 0.0
        %492 = vmatpush2.msra.mxu0 0.0
        %493 = vmatprep.subr.mxu0 0.0
        %494 = vmatpush2.msra.mxu0 0.0
        %495 = vmatprep.subr.mxu0 0.0
        %496 = vmatpush2.msra.mxu0 0.0
        %497 = vmatprep.subr.mxu0 0.0
        %498 = vmatpush2.msra.mxu0 0.0
        %499 = vmatprep.subr.mxu0 0.0
        %500 = vmatpush2.msra.mxu0 0.0
        %501 = vmatprep.subr.mxu0 0.0
        %502 = vmatpush2.msra.mxu0 0.0
        %503 = vmatprep.subr.mxu0 0.0
        %504 = vmatpush2.msra.mxu0 0.0
        %505 = vmatprep.subr.mxu0 0.0
        %506 = vmatpush2.msra.mxu0 0.0
        %507 = vmatprep.subr.mxu0 0.0
        %508 = vmatpush2.msra.mxu0 0.0
        %509 = vmatprep.subr.mxu0 0.0
        %510 = vmatpush2.msra.mxu0 0.0
        %511 = vmatprep.subr.mxu0 0.0
        %512 = vmatpush2.msra.mxu0 0.0
        %513 = vmatprep.subr.mxu0 0.0
        %514 = vmatpush2.msra.mxu0 0.0
        %515 = vmatprep.subr.mxu0 0.0
        %516 = vmatpush2.msra.mxu0 0.0
        %517 = vmatprep.mubr.f32.mxu0 0.0
        %v518 = vand.u32 %v315, 4294901760
        %519 = vmatmul.mubr.f32.gmra.mxu0 %v518
        %v520 = vpop.f32.mrf.mxu0
        %v521 = vadd.f32 %v400, %v520
        %v522 = vpop.f32.mrf.mxu0
        %523 = vmatprep.mubr.f32.mxu0 0.0
        %v524 = vand.u32 %v318, 4294901760
        %525 = vmatmul.mubr.f32.gmra.mxu0 %v524
        %v526 = vpop.f32.mrf.mxu0
        %v527 = vadd.f32 %v410, %v526
        %v528 = vpop.f32.mrf.mxu0
        %529 = vdwg.mxu0
        %530 = vmatprep.subr.mxu0 0.0
        %531 = vmatpush1.msra.mxu0 0.0
        %532 = vmatprep.subr.mxu0 0.0
        %533 = vmatpush1.msra.mxu0 0.0
        %534 = vmatprep.subr.mxu0 0.0
        %535 = vmatpush1.msra.mxu0 0.0
        %536 = vmatprep.subr.mxu0 0.0
        %537 = vmatpush1.msra.mxu0 0.0
        %538 = vmatprep.subr.mxu0 0.0
        %539 = vmatpush1.msra.mxu0 0.0
        %540 = vmatprep.subr.mxu0 0.0
        %541 = vmatpush1.msra.mxu0 0.0
        %542 = vmatprep.subr.mxu0 0.0
        %543 = vmatpush1.msra.mxu0 0.0
        %544 = vmatprep.subr.mxu0 0.0
        %545 = vmatpush1.msra.mxu0 0.0
        %546 = vmatprep.subr.mxu0 0.0
        %v547 = vand.u32 %v306, 4294901760
        %v548 = vsub.f32 %v306, %v547
        %549 = vmatpush1.msra.mxu0 %v548
        %550 = vmatprep.subr.mxu0 0.0
        %v551 = vand.u32 %v305, 4294901760
        %v552 = vsub.f32 %v305, %v551
        %553 = vmatpush1.msra.mxu0 %v552
        %554 = vmatprep.subr.mxu0 0.0
        %v555 = vand.u32 %v304, 4294901760
        %v556 = vsub.f32 %v304, %v555
        %557 = vmatpush1.msra.mxu0 %v556
        %558 = vmatprep.subr.mxu0 0.0
        %v559 = vand.u32 %v303, 4294901760
        %v560 = vsub.f32 %v303, %v559
        %561 = vmatpush1.msra.mxu0 %v560
        %562 = vmatprep.subr.mxu0 0.0
        %v563 = vand.u32 %v302, 4294901760
        %v564 = vsub.f32 %v302, %v563
        %565 = vmatpush1.msra.mxu0 %v564
        %566 = vmatprep.subr.mxu0 0.0
        %v567 = vand.u32 %v301, 4294901760
        %v568 = vsub.f32 %v301, %v567
        %569 = vmatpush1.msra.mxu0 %v568
        %570 = vmatprep.subr.mxu0 0.0
        %v571 = vand.u32 %v300, 4294901760
        %v572 = vsub.f32 %v300, %v571
        %573 = vmatpush1.msra.mxu0 %v572
        %574 = vmatprep.subr.mxu0 0.0
        %v575 = vand.u32 %v299, 4294901760
        %v576 = vsub.f32 %v299, %v575
        %577 = vmatpush1.msra.mxu0 %v576
        %578 = vmatprep.subr.mxu0 0.0
        %579 = vmatpush2.msra.mxu0 0.0
        %580 = vmatprep.subr.mxu0 0.0
        %581 = vmatpush2.msra.mxu0 0.0
        %582 = vmatprep.subr.mxu0 0.0
        %583 = vmatpush2.msra.mxu0 0.0
        %584 = vmatprep.subr.mxu0 0.0
        %585 = vmatpush2.msra.mxu0 0.0
        %586 = vmatprep.subr.mxu0 0.0
        %587 = vmatpush2.msra.mxu0 0.0
        %588 = vmatprep.subr.mxu0 0.0
        %589 = vmatpush2.msra.mxu0 0.0
        %590 = vmatprep.subr.mxu0 0.0
        %591 = vmatpush2.msra.mxu0 0.0
        %592 = vmatprep.subr.mxu0 0.0
        %593 = vmatpush2.msra.mxu0 0.0
        %594 = vmatprep.subr.mxu0 0.0
        %595 = vmatpush2.msra.mxu0 0.0
        %596 = vmatprep.subr.mxu0 0.0
        %597 = vmatpush2.msra.mxu0 0.0
        %598 = vmatprep.subr.mxu0 0.0
        %599 = vmatpush2.msra.mxu0 0.0
        %600 = vmatprep.subr.mxu0 0.0
        %601 = vmatpush2.msra.mxu0 0.0
        %602 = vmatprep.subr.mxu0 0.0
        %603 = vmatpush2.msra.mxu0 0.0
        %604 = vmatprep.subr.mxu0 0.0
        %605 = vmatpush2.msra.mxu0 0.0
        %606 = vmatprep.subr.mxu0 0.0
        %607 = vmatpush2.msra.mxu0 0.0
        %608 = vmatprep.subr.mxu0 0.0
        %609 = vmatpush2.msra.mxu0 0.0
        %610 = vmatprep.mubr.f32.mxu0 0.0
        %v611 = vand.u32 %v315, 4294901760
        %v612 = vsub.f32 %v315, %v611
        %613 = vmatmul.mubr.f32.gmra.mxu0 %v612
        %v614 = vpop.f32.mrf.mxu0
        %v615 = vadd.f32 %v521, %v614
        %v616 = vpop.f32.mrf.mxu0
        %617 = vmatprep.mubr.f32.mxu0 0.0
        %v618 = vand.u32 %v318, 4294901760
        %v619 = vsub.f32 %v318, %v618
        %620 = vmatmul.mubr.f32.gmra.mxu0 %v619
        %v621 = vpop.f32.mrf.mxu0
        %v622 = vadd.f32 %v527, %v621
        %v623 = vpop.f32.mrf.mxu0
        %624 = vdwg.mxu0
        %625 = vmatprep.subr.mxu0 0.0
        %626 = vmatpush1.msra.mxu0 0.0
        %627 = vmatprep.subr.mxu0 0.0
        %628 = vmatpush1.msra.mxu0 0.0
        %629 = vmatprep.subr.mxu0 0.0
        %630 = vmatpush1.msra.mxu0 0.0
        %631 = vmatprep.subr.mxu0 0.0
        %632 = vmatpush1.msra.mxu0 0.0
        %633 = vmatprep.subr.mxu0 0.0
        %634 = vmatpush1.msra.mxu0 0.0
        %635 = vmatprep.subr.mxu0 0.0
        %636 = vmatpush1.msra.mxu0 0.0
        %637 = vmatprep.subr.mxu0 0.0
        %638 = vmatpush1.msra.mxu0 0.0
        %639 = vmatprep.subr.mxu0 0.0
        %640 = vmatpush1.msra.mxu0 0.0
        %641 = vmatprep.subr.mxu0 0.0
        %v642 = vand.u32 %v306, 4294901760
        %643 = vmatpush1.msra.mxu0 %v642
        %644 = vmatprep.subr.mxu0 0.0
        %v645 = vand.u32 %v305, 4294901760
        %646 = vmatpush1.msra.mxu0 %v645
        %647 = vmatprep.subr.mxu0 0.0
        %v648 = vand.u32 %v304, 4294901760
        %649 = vmatpush1.msra.mxu0 %v648
        %650 = vmatprep.subr.mxu0 0.0
        %v651 = vand.u32 %v303, 4294901760
        %652 = vmatpush1.msra.mxu0 %v651
        %653 = vmatprep.subr.mxu0 0.0
        %v654 = vand.u32 %v302, 4294901760
        %655 = vmatpush1.msra.mxu0 %v654
        %656 = vmatprep.subr.mxu0 0.0
        %v657 = vand.u32 %v301, 4294901760
        %658 = vmatpush1.msra.mxu0 %v657
        %659 = vmatprep.subr.mxu0 0.0
        %v660 = vand.u32 %v300, 4294901760
        %661 = vmatpush1.msra.mxu0 %v660
        %662 = vmatprep.subr.mxu0 0.0
        %v663 = vand.u32 %v299, 4294901760
        %664 = vmatpush1.msra.mxu0 %v663
        %665 = vmatprep.subr.mxu0 0.0
        %666 = vmatpush2.msra.mxu0 0.0
        %667 = vmatprep.subr.mxu0 0.0
        %668 = vmatpush2.msra.mxu0 0.0
        %669 = vmatprep.subr.mxu0 0.0
        %670 = vmatpush2.msra.mxu0 0.0
        %671 = vmatprep.subr.mxu0 0.0
        %672 = vmatpush2.msra.mxu0 0.0
        %673 = vmatprep.subr.mxu0 0.0
        %674 = vmatpush2.msra.mxu0 0.0
        %675 = vmatprep.subr.mxu0 0.0
        %676 = vmatpush2.msra.mxu0 0.0
        %677 = vmatprep.subr.mxu0 0.0
        %678 = vmatpush2.msra.mxu0 0.0
        %679 = vmatprep.subr.mxu0 0.0
        %680 = vmatpush2.msra.mxu0 0.0
        %681 = vmatprep.subr.mxu0 0.0
        %682 = vmatpush2.msra.mxu0 0.0
        %683 = vmatprep.subr.mxu0 0.0
        %684 = vmatpush2.msra.mxu0 0.0
        %685 = vmatprep.subr.mxu0 0.0
        %686 = vmatpush2.msra.mxu0 0.0
        %687 = vmatprep.subr.mxu0 0.0
        %688 = vmatpush2.msra.mxu0 0.0
        %689 = vmatprep.subr.mxu0 0.0
        %690 = vmatpush2.msra.mxu0 0.0
        %691 = vmatprep.subr.mxu0 0.0
        %692 = vmatpush2.msra.mxu0 0.0
        %693 = vmatprep.subr.mxu0 0.0
        %694 = vmatpush2.msra.mxu0 0.0
        %695 = vmatprep.subr.mxu0 0.0
        %696 = vmatpush2.msra.mxu0 0.0
        %697 = vmatprep.mubr.f32.mxu0 0.0
        %v698 = vand.u32 %v315, 4294901760
        %v699 = vsub.f32 %v315, %v698
        %v700 = vand.u32 %v699, 4294901760
        %701 = vmatmul.mubr.f32.gmra.mxu0 %v700
        %v702 = vpop.f32.mrf.mxu0
        %v703 = vadd.f32 %v615, %v702
        %v704 = vpop.f32.mrf.mxu0
        %705 = vmatprep.mubr.f32.mxu0 0.0
        %v706 = vand.u32 %v318, 4294901760
        %v707 = vsub.f32 %v318, %v706
        %v708 = vand.u32 %v707, 4294901760
        %709 = vmatmul.mubr.f32.gmra.mxu0 %v708
        %v710 = vpop.f32.mrf.mxu0
        %v711 = vadd.f32 %v622, %v710
        %v712 = vpop.f32.mrf.mxu0
        %713 = vdwg.mxu0
        %714 = vmatprep.subr.mxu0 0.0
        %715 = vmatpush1.msra.mxu0 0.0
        %716 = vmatprep.subr.mxu0 0.0
        %717 = vmatpush1.msra.mxu0 0.0
        %718 = vmatprep.subr.mxu0 0.0
        %719 = vmatpush1.msra.mxu0 0.0
        %720 = vmatprep.subr.mxu0 0.0
        %721 = vmatpush1.msra.mxu0 0.0
        %722 = vmatprep.subr.mxu0 0.0
        %723 = vmatpush1.msra.mxu0 0.0
        %724 = vmatprep.subr.mxu0 0.0
        %725 = vmatpush1.msra.mxu0 0.0
        %726 = vmatprep.subr.mxu0 0.0
        %727 = vmatpush1.msra.mxu0 0.0
        %728 = vmatprep.subr.mxu0 0.0
        %729 = vmatpush1.msra.mxu0 0.0
        %730 = vmatprep.subr.mxu0 0.0
        %v731 = vand.u32 %v306, 4294901760
        %v732 = vsub.f32 %v306, %v731
        %v733 = vand.u32 %v732, 4294901760
        %734 = vmatpush1.msra.mxu0 %v733
        %735 = vmatprep.subr.mxu0 0.0
        %v736 = vand.u32 %v305, 4294901760
        %v737 = vsub.f32 %v305, %v736
        %v738 = vand.u32 %v737, 4294901760
        %739 = vmatpush1.msra.mxu0 %v738
        %740 = vmatprep.subr.mxu0 0.0
        %v741 = vand.u32 %v304, 4294901760
        %v742 = vsub.f32 %v304, %v741
        %v743 = vand.u32 %v742, 4294901760
        %744 = vmatpush1.msra.mxu0 %v743
        %745 = vmatprep.subr.mxu0 0.0
        %v746 = vand.u32 %v303, 4294901760
        %v747 = vsub.f32 %v303, %v746
        %v748 = vand.u32 %v747, 4294901760
        %749 = vmatpush1.msra.mxu0 %v748
        %750 = vmatprep.subr.mxu0 0.0
        %v751 = vand.u32 %v302, 4294901760
        %v752 = vsub.f32 %v302, %v751
        %v753 = vand.u32 %v752, 4294901760
        %754 = vmatpush1.msra.mxu0 %v753
        %755 = vmatprep.subr.mxu0 0.0
        %v756 = vand.u32 %v301, 4294901760
        %v757 = vsub.f32 %v301, %v756
        %v758 = vand.u32 %v757, 4294901760
        %759 = vmatpush1.msra.mxu0 %v758
        %760 = vmatprep.subr.mxu0 0.0
        %v761 = vand.u32 %v300, 4294901760
        %v762 = vsub.f32 %v300, %v761
        %v763 = vand.u32 %v762, 4294901760
        %764 = vmatpush1.msra.mxu0 %v763
        %765 = vmatprep.subr.mxu0 0.0
        %v766 = vand.u32 %v299, 4294901760
        %v767 = vsub.f32 %v299, %v766
        %v768 = vand.u32 %v767, 4294901760
        %769 = vmatpush1.msra.mxu0 %v768
        %770 = vmatprep.subr.mxu0 0.0
        %771 = vmatpush2.msra.mxu0 0.0
        %772 = vmatprep.subr.mxu0 0.0
        %773 = vmatpush2.msra.mxu0 0.0
        %774 = vmatprep.subr.mxu0 0.0
        %775 = vmatpush2.msra.mxu0 0.0
        %776 = vmatprep.subr.mxu0 0.0
        %777 = vmatpush2.msra.mxu0 0.0
        %778 = vmatprep.subr.mxu0 0.0
        %779 = vmatpush2.msra.mxu0 0.0
        %780 = vmatprep.subr.mxu0 0.0
        %781 = vmatpush2.msra.mxu0 0.0
        %782 = vmatprep.subr.mxu0 0.0
        %783 = vmatpush2.msra.mxu0 0.0
        %784 = vmatprep.subr.mxu0 0.0
        %785 = vmatpush2.msra.mxu0 0.0
        %786 = vmatprep.subr.mxu0 0.0
        %787 = vmatpush2.msra.mxu0 0.0
        %788 = vmatprep.subr.mxu0 0.0
        %789 = vmatpush2.msra.mxu0 0.0
        %790 = vmatprep.subr.mxu0 0.0
        %791 = vmatpush2.msra.mxu0 0.0
        %792 = vmatprep.subr.mxu0 0.0
        %793 = vmatpush2.msra.mxu0 0.0
        %794 = vmatprep.subr.mxu0 0.0
        %795 = vmatpush2.msra.mxu0 0.0
        %796 = vmatprep.subr.mxu0 0.0
        %797 = vmatpush2.msra.mxu0 0.0
        %798 = vmatprep.subr.mxu0 0.0
        %799 = vmatpush2.msra.mxu0 0.0
        %800 = vmatprep.subr.mxu0 0.0
        %801 = vmatpush2.msra.mxu0 0.0
        %802 = vmatprep.mubr.f32.mxu0 0.0
        %v803 = vand.u32 %v315, 4294901760
        %804 = vmatmul.mubr.f32.gmra.mxu0 %v803
        %v805 = vpop.f32.mrf.mxu0
        %v806 = vadd.f32 %v703, %v805
        %v807 = vpop.f32.mrf.mxu0
        %808 = vmatprep.mubr.f32.mxu0 0.0
        %v809 = vand.u32 %v318, 4294901760
        %810 = vmatmul.mubr.f32.gmra.mxu0 %v809
        %v811 = vpop.f32.mrf.mxu0
        %v812 = vadd.f32 %v711, %v811
        %v813 = vpop.f32.mrf.mxu0
        %814 = vdwg.mxu0
        %815 = vmatprep.subr.mxu0 0.0
        %816 = vmatpush1.msra.mxu0 0.0
        %817 = vmatprep.subr.mxu0 0.0
        %818 = vmatpush1.msra.mxu0 0.0
        %819 = vmatprep.subr.mxu0 0.0
        %820 = vmatpush1.msra.mxu0 0.0
        %821 = vmatprep.subr.mxu0 0.0
        %822 = vmatpush1.msra.mxu0 0.0
        %823 = vmatprep.subr.mxu0 0.0
        %824 = vmatpush1.msra.mxu0 0.0
        %825 = vmatprep.subr.mxu0 0.0
        %826 = vmatpush1.msra.mxu0 0.0
        %827 = vmatprep.subr.mxu0 0.0
        %828 = vmatpush1.msra.mxu0 0.0
        %829 = vmatprep.subr.mxu0 0.0
        %830 = vmatpush1.msra.mxu0 0.0
        %831 = vmatprep.subr.mxu0 0.0
        %v832 = vand.u32 %v306, 4294901760
        %833 = vmatpush1.msra.mxu0 %v832
        %834 = vmatprep.subr.mxu0 0.0
        %v835 = vand.u32 %v305, 4294901760
        %836 = vmatpush1.msra.mxu0 %v835
        %837 = vmatprep.subr.mxu0 0.0
        %v838 = vand.u32 %v304, 4294901760
        %839 = vmatpush1.msra.mxu0 %v838
        %840 = vmatprep.subr.mxu0 0.0
        %v841 = vand.u32 %v303, 4294901760
        %842 = vmatpush1.msra.mxu0 %v841
        %843 = vmatprep.subr.mxu0 0.0
        %v844 = vand.u32 %v302, 4294901760
        %845 = vmatpush1.msra.mxu0 %v844
        %846 = vmatprep.subr.mxu0 0.0
        %v847 = vand.u32 %v301, 4294901760
        %848 = vmatpush1.msra.mxu0 %v847
        %849 = vmatprep.subr.mxu0 0.0
        %v850 = vand.u32 %v300, 4294901760
        %851 = vmatpush1.msra.mxu0 %v850
        %852 = vmatprep.subr.mxu0 0.0
        %v853 = vand.u32 %v299, 4294901760
        %854 = vmatpush1.msra.mxu0 %v853
        %855 = vmatprep.subr.mxu0 0.0
        %856 = vmatpush2.msra.mxu0 0.0
        %857 = vmatprep.subr.mxu0 0.0
        %858 = vmatpush2.msra.mxu0 0.0
        %859 = vmatprep.subr.mxu0 0.0
        %860 = vmatpush2.msra.mxu0 0.0
        %861 = vmatprep.subr.mxu0 0.0
        %862 = vmatpush2.msra.mxu0 0.0
        %863 = vmatprep.subr.mxu0 0.0
        %864 = vmatpush2.msra.mxu0 0.0
        %865 = vmatprep.subr.mxu0 0.0
        %866 = vmatpush2.msra.mxu0 0.0
        %867 = vmatprep.subr.mxu0 0.0
        %868 = vmatpush2.msra.mxu0 0.0
        %869 = vmatprep.subr.mxu0 0.0
        %870 = vmatpush2.msra.mxu0 0.0
        %871 = vmatprep.subr.mxu0 0.0
        %872 = vmatpush2.msra.mxu0 0.0
        %873 = vmatprep.subr.mxu0 0.0
        %874 = vmatpush2.msra.mxu0 0.0
        %875 = vmatprep.subr.mxu0 0.0
        %876 = vmatpush2.msra.mxu0 0.0
        %877 = vmatprep.subr.mxu0 0.0
        %878 = vmatpush2.msra.mxu0 0.0
        %879 = vmatprep.subr.mxu0 0.0
        %880 = vmatpush2.msra.mxu0 0.0
        %881 = vmatprep.subr.mxu0 0.0
        %882 = vmatpush2.msra.mxu0 0.0
        %883 = vmatprep.subr.mxu0 0.0
        %884 = vmatpush2.msra.mxu0 0.0
        %885 = vmatprep.subr.mxu0 0.0
        %886 = vmatpush2.msra.mxu0 0.0
        %887 = vmatprep.mubr.f32.mxu0 0.0
        %v888 = vand.u32 %v315, 4294901760
        %889 = vmatmul.mubr.f32.gmra.mxu0 %v888
        %v890 = vpop.f32.mrf.mxu0
        %v891 = vadd.f32 %v806, %v890
        %v892 = vpop.f32.mrf.mxu0
        %893 = vmatprep.mubr.f32.mxu0 0.0
        %v894 = vand.u32 %v318, 4294901760
        %895 = vmatmul.mubr.f32.gmra.mxu0 %v894
        %v896 = vpop.f32.mrf.mxu0
        %v897 = vadd.f32 %v812, %v896
        %v898 = vpop.f32.mrf.mxu0
        %899 = vdwg.mxu0
        %900 = vadd.xlane.f32.xlu0 %v891
        %v901 = vpop.xlane.xlu0 %900
        %902 = vadd.xlane.f32.xlu0 %v897
        %v903 = vpop.xlane.xlu0 %902
        %v904 = vrcp.pop 128.0
        %v905 = vmul.f32 %v901, %v904
        %v906 = vmul.f32 %v903, %v904
        %v907 = vsub.f32 %v891, %v905
        %v908 = vsub.f32 %v897, %v906
        %v909 = vmul.f32 %v907, %v907
        %v910 = vmul.f32 %v908, %v908
        %911 = vadd.xlane.f32.xlu0 %v909
        %v912 = vpop.xlane.xlu0 %911
        %913 = vadd.xlane.f32.xlu0 %v910
        %v914 = vpop.xlane.xlu0 %913
        %v915 = vmul.f32 %v912, %v904
        %v916 = vmul.f32 %v914, %v904
        %v917 = vadd.f32 %v915, 1e-05
        %v918 = vadd.f32 %v916, 1e-05
        %v919 = vrsqrt.pop %v917
        %v920 = vrsqrt.pop %v918
        %v921 = vmul.f32 %v907, %v919
        %v922 = vmul.f32 %v908, %v920
        %v923 = vld [vmem:[%s3] sm:$0x1]
        %v925 = vlaneseq
        %v926 = vshrl.u32 %v925, 7
        %v927 = vsub.s32 0, %v926
        %v928 = vrot.slane %v923, %v927
        %v930 = vmul.f32 %v921, %v928
        %v931 = vmul.f32 %v922, %v928
        %v932 = vld [vmem:[%s4] sm:$0x1]
        %v934 = vlaneseq
        %v935 = vshrl.u32 %v934, 7
        %v936 = vsub.s32 0, %v935
        %v937 = vrot.slane %v932, %v936
        %v939 = vadd.f32 %v930, %v937
        %v940 = vadd.f32 %v931, %v937
        %941 = vst [vmem:[%s257] sm:$0xff] %v939
        %942 = vst [vmem:[%s257 + $0x8] sm:$0xff] %v940
        %s943 = sand.u32 %s158, 1
        %s944 = scalar_lea.sflag [#allocation3], %s943
        %s945 = sand.u32 %s158, 1
        %s946 = smul.addr %s945, 16
        %s947 = scalar_lea.vmem [#allocation2], %s946
        // Predicated region
        $region41: #{cross_attention_forward.3} parent=39 // pred_check
          %p948 = pneg %p168
        $region42: #{cross_attention_forward.3} parent=39 // pred_check_branch
          %950 = sbr.rel (%p948) target = $region44
        $region43: #{cross_attention_forward.3} parent=39 // pred_region
          %s951 = smul.u32 2, %s24
          %s953 = ssub.s32 256, 256
          %954 = vsyncadd %s944, %s953
          %s955 = smul.addr %s23, 8
          %s956 = sadd.s32 %s951, %s955
          %s957 = smul.addr %s956, 128
          %s958 = scalar_lea.hbm %s5, %s957
          %s959 = sshll.u32 %s947, 4
          %s960 = int_to_ptr.vmem [resolvable:$true] %s959
          %965 = dma.vmem_to_hbm [thread:$0]  %s960, 256, %s958, %s944, 128, 128, 8
        $region44: #{cross_attention_forward.3} parent=39 // pred_fallthru
          _
      $region40: #{cross_attention_forward.3} parent=5 // pred_fallthru
        _
      %p966 = scmp.le.s32.totalorder 2, %s14
      // Predicated region
      $region45: #{cross_attention_forward.3} parent=5 // pred_check
        %p967 = pneg %p966
      $region46: #{cross_attention_forward.3} parent=5 // pred_check_branch
        %969 = sbr.rel (%p967) target = $region48
      $region47: #{cross_attention_forward.3} parent=5 // pred_region
        %s970 = ssub.s32 %s14, 2
        // Predicated region
        $region49: #{cross_attention_forward.3} parent=47 // pred_check
          %p971 = pneg %p174
        $region50: #{cross_attention_forward.3} parent=47 // pred_check_branch
          %973 = sbr.rel (%p971) target = $region52
        $region51: #{cross_attention_forward.3} parent=47 // pred_region
          %s974 = sand.u32 %s159, 1
          %s975 = scalar_lea.sflag [#allocation3], %s974
          %s976 = sand.u32 %s159, 1
          %s977 = smul.addr %s976, 16
          %s978 = scalar_lea.vmem [#allocation2], %s977
          %979 = dma.done %s975, 256
        $region52: #{cross_attention_forward.3} parent=47 // pred_fallthru
          _
      $region48: #{cross_attention_forward.3} parent=5 // pred_fallthru
        _
    $region6: #{cross_attention_forward.3} parent=1 // loop_footer
      %s18 = sadd.s32 1, %s14
    $region7: #{cross_attention_forward.3} parent=1 // loop_footer_branch
      %13 = sbr.rel target = $region3
    $region8: #{cross_attention_forward.3} parent=1 // loop_exit
      _
    %980 = vsyncpa [#allocation3], 1
    %s981 = scalar_lea.sflag [#allocation3], 1
    %982 = vsyncpa %s981, 1

// kernel: cross_attention_forward.2
$region0: #{cross_attention_forward.2}
  #allocation0 [shape = 'u32[]', space=smem, size = 0x4, offset = 0x4, fixed_abs, tag = 'smem constant byte address 0x4 - core index']
  #allocation1 [shape = 'u32[144,128]{1,0:T(1,128)}', space=vmem, size = 0x12000, scoped, tag = 'internal scratch']
  #allocation2 [shape = 'f32[1,64]{1,0:T(1,128)}', space=vmem, size = 0x200, scoped, tag = 'scratch operand']
  #allocation3 [shape = 'f32[1,64]{1,0:T(1,128)}', space=vmem, size = 0x200, scoped, tag = 'scratch operand']
  #allocation4 [shape = 'f32[64,64]{1,0:T(8,128)}', space=vmem, size = 0x8000, scoped, tag = 'scratch operand']
  %s0 = inlined_call_operand.hbm [shape: f32[2,64,64], index: 0, kind: input, shape index: {}]
  %s1 = inlined_call_operand.hbm [shape: f32[2,64,64], index: 1, kind: input, shape index: {}]
  %s2 = inlined_call_operand.hbm [shape: f32[64,128], index: 2, kind: input, shape index: {}]
  %s3 = inlined_call_operand.vmem [shape: f32[2,64,128], index: 3, kind: output, shape index: {}]
  %s4 = sld [smem:[#allocation0]]
  $region65: #{cross_attention_forward.2} parent=0
    _
  %s6 = ssub.s32 1, %s4
  %s7 = scalar_select 0, %s6, %s4
  $region1: #{cross_attention_forward.2} parent=0
    #allocation5 [shape = 'u8[16384]{0}', space=vmem, size = 0x4000, scoped, tag = 'input window, operand 0']
    #allocation6 [shape = 's32[2]{0}', space=sflag, size = 0x8, scoped, tag = 'scoped memory for cross_attention_forward.2']
    #allocation7 [shape = 'u8[16384]{0}', space=vmem, size = 0x4000, scoped, tag = 'input window, operand 1']
    #allocation8 [shape = 's32[2]{0}', space=sflag, size = 0x8, scoped, tag = 'scoped memory for cross_attention_forward.2']
    #allocation9 [shape = 'u8[32768]{0}', space=vmem, size = 0x8000, scoped, tag = 'input window, operand 2, single buffered']
    %8 = vsyncpa [#allocation6], 0
    %s9 = scalar_lea.sflag [#allocation6], 1
    %10 = vsyncpa %s9, 0
    %11 = vsyncpa [#allocation8], 0
    %s12 = scalar_lea.sflag [#allocation8], 1
    %13 = vsyncpa %s12, 0
    loop: start=0, step=1, limit=10
    $region2: #{cross_attention_forward.2} parent=1 // loop_pre_header
      _
    $region3: #{cross_attention_forward.2} parent=1 // loop_header
      %s15 = sphi 0, %s19
      %p16 = scmp.ge.s32.totalorder %s15, 10
      %s22 = sphi 0, %s34
      %s23 = sphi 0, %s30
      %s24 = sphi 0, %s22
      %s25 = sphi 0, %s23
      %s26 = sphi 0, %s24
      %s27 = sphi 0, %s25
      %s39 = sphi 0, %s41
      %s42 = sphi 0, %s39
      %s43 = sphi 0, %s42
      %s59 = sphi 0, %s43
      %s67 = sphi 0, %s69
      %s70 = sphi 0, %s67
      %s71 = sphi 0, %s70
      %s87 = sphi 0, %s71
      %s91 = sphi 0, %s91
      %s93 = sphi 0, %s91
      %s94 = sphi 0, %s93
      %s108 = sphi 0, %s94
      %s114 = sphi 0, %s116
      %s117 = sphi 0, %s114
      %s118 = sphi 0, %s117
      %s134 = sphi 0, %s118
    $region4: #{cross_attention_forward.2} parent=1 // loop_header_branch
      %18 = sbr.rel (%p16) target = $region8
    $region5: #{cross_attention_forward.2} parent=1 // loop_body
      %s20 = ssub.s32 %s15, 1
      %s21 = ssub.s32 %s15, 2
      %s28 = sadd.s32 1, %s23
      %p29 = scmp.ge.s32.totalorder %s28, 4
      %s30 = scalar_select %p29, 0, %s28
      %s31 = sadd.s32 1, %s22
      %s32 = scalar_select %p29, %s31, %s22
      %p33 = scmp.ge.s32.totalorder %s32, 2
      %s34 = scalar_select %p33, 0, %s32
      %s35 = ssub.s32 %s22, %s34
      %s36 = ssub.s32 %s23, %s30
      %s37 = sor.u32 %s35, %s36
      %p38 = scmp.eq.s32.totalorder %s37, 0
      %s40 = sadd.s32 %s39, 1
      %s41 = scalar_select %p38, %s39, %s40
      %p44 = pneg %p38
      %p45 = scmp.eq.s32.totalorder %s15, 7
      %p46 = por %p44, %p45
      %p47 = scmp.ne.s32.totalorder %s39, %s42
      %p48 = scmp.eq.s32.totalorder %s15, 0
      %p49 = por %p47, %p48
      %p50 = scmp.ne.s32.totalorder %s39, %s42
      %p51 = scmp.eq.s32.totalorder %s20, 7
      %p52 = por %p50, %p51
      %p53 = scmp.ne.s32.totalorder %s42, %s43
      %p54 = scmp.eq.s32.totalorder %s20, 0
      %p55 = por %p53, %p54
      %p56 = scmp.ne.s32.totalorder %s42, %s43
      %p57 = scmp.eq.s32.totalorder %s21, 7
      %p58 = por %p56, %p57
      %p60 = scmp.ne.s32.totalorder %s43, %s59
      %p61 = scmp.eq.s32.totalorder %s21, 0
      %p62 = por %p60, %p61
      %s63 = ssub.s32 %s22, %s34
      %s64 = ssub.s32 %s23, %s30
      %s65 = sor.u32 %s63, %s64
      %p66 = scmp.eq.s32.totalorder %s65, 0
      %s68 = sadd.s32 %s67, 1
      %s69 = scalar_select %p66, %s67, %s68
      %p72 = pneg %p66
      %p73 = scmp.eq.s32.totalorder %s15, 7
      %p74 = por %p72, %p73
      %p75 = scmp.ne.s32.totalorder %s67, %s70
      %p76 = scmp.eq.s32.totalorder %s15, 0
      %p77 = por %p75, %p76
      %p78 = scmp.ne.s32.totalorder %s67, %s70
      %p79 = scmp.eq.s32.totalorder %s20, 7
      %p80 = por %p78, %p79
      %p81 = scmp.ne.s32.totalorder %s70, %s71
      %p82 = scmp.eq.s32.totalorder %s20, 0
      %p83 = por %p81, %p82
      %p84 = scmp.ne.s32.totalorder %s70, %s71
      %p85 = scmp.eq.s32.totalorder %s21, 7
      %p86 = por %p84, %p85
      %p88 = scmp.ne.s32.totalorder %s71, %s87
      %p89 = scmp.eq.s32.totalorder %s21, 0
      %p90 = por %p88, %p89
      %s92 = sadd.s32 %s91, 1
      %p95 = scmp.eq.s32.totalorder %s15, 7
      %p96 = scmp.ne.s32.totalorder %s91, %s93
      %p97 = scmp.eq.s32.totalorder %s15, 0
      %p98 = por %p96, %p97
      %p99 = scmp.ne.s32.totalorder %s91, %s93
      %p100 = scmp.eq.s32.totalorder %s20, 7
      %p101 = por %p99, %p100
      %p102 = scmp.ne.s32.totalorder %s93, %s94
      %p103 = scmp.eq.s32.totalorder %s20, 0
      %p104 = por %p102, %p103
      %p105 = scmp.ne.s32.totalorder %s93, %s94
      %p106 = scmp.eq.s32.totalorder %s21, 7
      %p107 = por %p105, %p106
      %p109 = scmp.ne.s32.totalorder %s94, %s108
      %p110 = scmp.eq.s32.totalorder %s21, 0
      %p111 = por %p109, %p110
      %s112 = ssub.s32 %s22, %s34
      %p113 = scmp.eq.s32.totalorder %s112, 0
      %s115 = sadd.s32 %s114, 1
      %s116 = scalar_select %p113, %s114, %s115
      %p119 = pneg %p113
      %p120 = scmp.eq.s32.totalorder %s15, 7
      %p121 = por %p119, %p120
      %p122 = scmp.ne.s32.totalorder %s114, %s117
      %p123 = scmp.eq.s32.totalorder %s15, 0
      %p124 = por %p122, %p123
      %p125 = scmp.ne.s32.totalorder %s114, %s117
      %p126 = scmp.eq.s32.totalorder %s20, 7
      %p127 = por %p125, %p126
      %p128 = scmp.ne.s32.totalorder %s117, %s118
      %p129 = scmp.eq.s32.totalorder %s20, 0
      %p130 = por %p128, %p129
      %p131 = scmp.ne.s32.totalorder %s117, %s118
      %p132 = scmp.eq.s32.totalorder %s21, 7
      %p133 = por %p131, %p132
      %p135 = scmp.ne.s32.totalorder %s118, %s134
      %p136 = scmp.eq.s32.totalorder %s21, 0
      %p137 = por %p135, %p136
      %p138 = scmp.le.s32.totalorder 1, %s15
      %p139 = scmp.lt.s32.totalorder %s15, 9
      %p140 = pnand %p138, %p139
      %p141 = pneg %p140
      // Predicated region
      $region9: #{cross_attention_forward.2} parent=5 // pred_check
        _
      $region10: #{cross_attention_forward.2} parent=5 // pred_check_branch
        %143 = sbr.rel (%p140) target = $region12
      $region11: #{cross_attention_forward.2} parent=5 // pred_region
        %s144 = ssub.s32 %s15, 1
        // Predicated region
        $region13: #{cross_attention_forward.2} parent=11 // pred_check
          %p145 = pneg %p104
        $region14: #{cross_attention_forward.2} parent=11 // pred_check_branch
          %147 = sbr.rel (%p145) target = $region16
        $region15: #{cross_attention_forward.2} parent=11 // pred_region
          %s149 = ssub.s32 1024, 1024
          %150 = vsyncadd [#allocation8], %s149
          %s151 = sshll.u32 [#allocation9], 4
          %s152 = int_to_ptr.vmem [resolvable:$true] %s151
          %157 = dma.hbm_to_vmem [thread:$0]  %s2, 1024, %s152, [#allocation8], 128, 128, 8
        $region16: #{cross_attention_forward.2} parent=11 // pred_fallthru
          _
      $region12: #{cross_attention_forward.2} parent=5 // pred_fallthru
        _
      %p158 = scmp.lt.s32.totalorder %s15, 8
      // Predicated region
      $region17: #{cross_attention_forward.2} parent=5 // pred_check
        %p159 = pneg %p158
      $region18: #{cross_attention_forward.2} parent=5 // pred_check_branch
        %161 = sbr.rel (%p159) target = $region20
      $region19: #{cross_attention_forward.2} parent=5 // pred_region
        // Predicated region
        $region21: #{cross_attention_forward.2} parent=19 // pred_check
          %p162 = pneg %p49
        $region22: #{cross_attention_forward.2} parent=19 // pred_check_branch
          %164 = sbr.rel (%p162) target = $region24
        $region23: #{cross_attention_forward.2} parent=19 // pred_region
          %s165 = sand.u32 %s39, 1
          %s166 = scalar_lea.sflag [#allocation6], %s165
          %s167 = sand.u32 %s39, 1
          %s168 = smul.addr %s167, 16
          %s169 = scalar_lea.vmem [#allocation5], %s168
          %s170 = smul.u32 2, %s23
          %s172 = ssub.s32 256, 256
          %173 = vsyncadd %s166, %s172
          %s174 = smul.addr %s22, 8
          %s175 = sadd.s32 %s170, %s174
          %s176 = smul.addr %s175, 128
          %s177 = scalar_lea.hbm %s0, %s176
          %s178 = sshll.u32 %s169, 4
          %s179 = int_to_ptr.vmem [resolvable:$true] %s178
          %184 = dma.hbm_to_vmem [thread:$0]  %s177, 256, %s179, %s166, 128, 128, 8
        $region24: #{cross_attention_forward.2} parent=19 // pred_fallthru
          _
        // Predicated region
        $region25: #{cross_attention_forward.2} parent=19 // pred_check
          %p185 = pneg %p77
        $region26: #{cross_attention_forward.2} parent=19 // pred_check_branch
          %187 = sbr.rel (%p185) target = $region28
        $region27: #{cross_attention_forward.2} parent=19 // pred_region
          %s188 = sand.u32 %s15, 1
          %s189 = scalar_lea.sflag [#allocation8], %s188
          %s190 = sand.u32 %s67, 1
          %s191 = smul.addr %s190, 16
          %s192 = scalar_lea.vmem [#allocation7], %s191
          %s193 = smul.u32 2, %s23
          %s195 = ssub.s32 256, 256
          %196 = vsyncadd %s189, %s195
          %s197 = smul.addr %s22, 8
          %s198 = sadd.s32 %s193, %s197
          %s199 = smul.addr %s198, 128
          %s200 = scalar_lea.hbm %s1, %s199
          %s201 = sshll.u32 %s192, 4
          %s202 = int_to_ptr.vmem [resolvable:$true] %s201
          %207 = dma.hbm_to_vmem [thread:$0]  %s200, 256, %s202, %s189, 128, 128, 8
        $region28: #{cross_attention_forward.2} parent=19 // pred_fallthru
          _
      $region20: #{cross_attention_forward.2} parent=5 // pred_fallthru
        _
      %p208 = scmp.le.s32.totalorder 1, %s15
      %p209 = scmp.lt.s32.totalorder %s15, 9
      %p210 = pnand %p208, %p209
      %p211 = pneg %p210
      // Predicated region
      $region29: #{cross_attention_forward.2} parent=5 // pred_check
        _
      $region30: #{cross_attention_forward.2} parent=5 // pred_check_branch
        %213 = sbr.rel (%p210) target = $region32
      $region31: #{cross_attention_forward.2} parent=5 // pred_region
        %s214 = ssub.s32 %s15, 1
        %s215 = sand.u32 %s42, 1
        %s216 = scalar_lea.sflag [#allocation6], %s215
        %s217 = sand.u32 %s42, 1
        %s218 = smul.addr %s217, 16
        %s219 = scalar_lea.vmem [#allocation5], %s218
        // Predicated region
        $region33: #{cross_attention_forward.2} parent=31 // pred_check
          %p220 = pneg %p55
        $region34: #{cross_attention_forward.2} parent=31 // pred_check_branch
          %222 = sbr.rel (%p220) target = $region36
        $region35: #{cross_attention_forward.2} parent=31 // pred_region
          %223 = dma.done %s216, 256
        $region36: #{cross_attention_forward.2} parent=31 // pred_fallthru
          _
        %s224 = sand.u32 %s20, 1
        %s225 = scalar_lea.sflag [#allocation8], %s224
        %s226 = sand.u32 %s70, 1
        %s227 = smul.addr %s226, 16
        %s228 = scalar_lea.vmem [#allocation7], %s227
        // Predicated region
        $region37: #{cross_attention_forward.2} parent=31 // pred_check
          %p229 = pneg %p83
        $region38: #{cross_attention_forward.2} parent=31 // pred_check_branch
          %231 = sbr.rel (%p229) target = $region40
        $region39: #{cross_attention_forward.2} parent=31 // pred_region
          %232 = dma.done %s225, 256
        $region40: #{cross_attention_forward.2} parent=31 // pred_fallthru
          _
        // Predicated region
        $region41: #{cross_attention_forward.2} parent=31 // pred_check
          %p233 = pneg %p104
        $region42: #{cross_attention_forward.2} parent=31 // pred_check_branch
          %235 = sbr.rel (%p233) target = $region44
        $region43: #{cross_attention_forward.2} parent=31 // pred_region
          %236 = dma.done [#allocation8], 1024
        $region44: #{cross_attention_forward.2} parent=31 // pred_fallthru
          _
        %s237 = sand.u32 %s42, 1
        %s238 = scalar_lea.sflag [#allocation6], %s237
        %s239 = sand.u32 %s42, 1
        %s240 = smul.addr %s239, 16
        %s241 = scalar_lea.vmem [#allocation5], %s240
        %p242 = pneg %p55
        %p243 = pneg %p52
        %s244 = sand.u32 %s20, 1
        %s245 = scalar_lea.sflag [#allocation8], %s244
        %s246 = sand.u32 %s70, 1
        %s247 = smul.addr %s246, 16
        %s248 = scalar_lea.vmem [#allocation7], %s247
        %p249 = pneg %p83
        %p250 = pneg %p80
        %p251 = pneg %p104
        %p252 = pneg %p101
        %p253 = pneg %p130
        %p254 = pneg %p127
        %p255 = scmp.lt.s32.totalorder %s24, 1
        %s256 = scalar_select %p255, %s24, 1
        %s257 = smul.addr %s256, 8
        %s258 = smul.addr %s257, 8
        %s259 = scalar_lea.vmem %s3, %s258
        %s260 = smul.u32 2, %s25
        %s261 = smul.u32 2, %s25
        %p262 = scmp.lt.s32.totalorder %s24, 1
        %s263 = scalar_select %p262, %s24, 1
        %s264 = smul.addr %s263, 8
        %s265 = smul.addr %s264, 8
        %s266 = scalar_lea.vmem %s3, %s265
        %p267 = scmp.eq.s32.totalorder %s25, 0
        // Predicated region
        $region45: #{cross_attention_forward.2} parent=31 // pred_check
          %p268 = pneg %p267
        $region46: #{cross_attention_forward.2} parent=31 // pred_check_branch
          %270 = sbr.rel (%p268) target = $region48
        $region47: #{cross_attention_forward.2} parent=31 // pred_region
          %vm271 = vcmask 516096
          %272 = vst.msk [vmem:[#allocation2] sm:$0x1] %vm271, -inf
          %273 = vst.msk [vmem:[#allocation3] sm:$0x1] %vm271, 0.0
          %vm274 = vcmask 523264
          %275 = vst.msk [vmem:[#allocation4] sm:$0xff] %vm274, 0.0
          %276 = vst.msk [vmem:[#allocation4 + $0x8] sm:$0xff] %vm274, 0.0
          %277 = vst.msk [vmem:[#allocation4 + $0x10] sm:$0xff] %vm274, 0.0
          %278 = vst.msk [vmem:[#allocation4 + $0x18] sm:$0xff] %vm274, 0.0
          %279 = vst.msk [vmem:[#allocation4 + $0x20] sm:$0xff] %vm274, 0.0
          %280 = vst.msk [vmem:[#allocation4 + $0x28] sm:$0xff] %vm274, 0.0
          %281 = vst.msk [vmem:[#allocation4 + $0x30] sm:$0xff] %vm274, 0.0
          %282 = vst.msk [vmem:[#allocation4 + $0x38] sm:$0xff] %vm274, 0.0
        $region48: #{cross_attention_forward.2} parent=31 // pred_fallthru
          _
        %v283 = vld [vmem:[%s228] sm:$0xff]
        %v284 = vld [vmem:[%s228 + $0x8] sm:$0xff]
        %v285 = vld [vmem:[%s219] sm:$0xff]
        %v286 = vld [vmem:[%s219 + $0x8] sm:$0xff]
        %vm287 = vcmask 523264
        %v288 = vsel %vm287, %v283, -inf
        %v289 = vsel %vm287, %v284, -inf
        %v290 = vmax.f32 %v288, %v289
        %v291 = vrot.slane %v290, 4
        %v292 = vmax.f32 %v290, %v291
        %v293 = vrot.slane %v292, 2
        %v294 = vmax.f32 %v292, %v293
        %v295 = vrot.slane %v294, 1
        %v296 = vmax.f32 %v294, %v295
        %v297 = vld [vmem:[#allocation2] sm:$0x1]
        %v298 = vmax.f32 %v297, %v296
        %v299 = vsub.f32 %v297, %v298
        %v300 = vmul.f32 %v299, 1.442695
        %v301 = vpow.pop %v300
        %v303 = vlaneseq
        %v304 = vshrl.u32 %v303, 7
        %v305 = vsub.s32 0, %v304
        %v306 = vrot.slane %v298, %v305
        %v308 = vsub.f32 %v283, %v306
        %v309 = vsub.f32 %v284, %v306
        %v310 = vmul.f32 %v308, 1.442695
        %v311 = vpow.pop %v310
        %v312 = vmul.f32 %v309, 1.442695
        %v313 = vpow.pop %v312
        %v314 = vld [vmem:[#allocation3] sm:$0x1]
        %v315 = vmul.f32 %v314, %v301
        %v316 = vsel %vm287, %v311, 0.0
        %v317 = vsel %vm287, %v313, 0.0
        %v318 = vadd.f32 %v316, %v317
        %v319 = vrot.slane %v318, 4
        %v320 = vadd.f32 %v318, %v319
        %v321 = vrot.slane %v320, 2
        %v322 = vadd.f32 %v320, %v321
        %v323 = vrot.slane %v322, 1
        %v324 = vadd.f32 %v322, %v323
        %v325 = vadd.f32 %v315, %v324
        %vm326 = vcmask 516096
        %327 = vst.msk [vmem:[#allocation3] sm:$0x1] %vm326, %v325
        %v328 = vld [vmem:[#allocation4] sm:$0xff]
        %v329 = vld [vmem:[#allocation4 + $0x8] sm:$0xff]
        %v330 = vld [vmem:[#allocation4 + $0x10] sm:$0xff]
        %v331 = vld [vmem:[#allocation4 + $0x18] sm:$0xff]
        %v332 = vld [vmem:[#allocation4 + $0x20] sm:$0xff]
        %v333 = vld [vmem:[#allocation4 + $0x28] sm:$0xff]
        %v334 = vld [vmem:[#allocation4 + $0x30] sm:$0xff]
        %v335 = vld [vmem:[#allocation4 + $0x38] sm:$0xff]
        %v337 = vlaneseq
        %v338 = vshrl.u32 %v337, 7
        %v339 = vsub.s32 0, %v338
        %v340 = vrot.slane %v301, %v339
        %v342 = vmul.f32 %v328, %v340
        %v343 = vmul.f32 %v329, %v340
        %v344 = vmul.f32 %v330, %v340
        %v345 = vmul.f32 %v331, %v340
        %v346 = vmul.f32 %v332, %v340
        %v347 = vmul.f32 %v333, %v340
        %v348 = vmul.f32 %v334, %v340
        %v349 = vmul.f32 %v335, %v340
        %350 = vxpose.xlu0.b32.start [1/16] %v285, 128
        %351 = vxpose.xlu0.b32.cont [2/16] %v286, 128
        %352 = vxpose.xlu0.b32.cont [3/16] 0.0, 128
        %353 = vxpose.xlu0.b32.cont [4/16] 0.0, 128
        %354 = vxpose.xlu0.b32.cont [5/16] 0.0, 128
        %355 = vxpose.xlu0.b32.cont [6/16] 0.0, 128
        %356 = vxpose.xlu0.b32.cont [7/16] 0.0, 128
        %357 = vxpose.xlu0.b32.cont [8/16] 0.0, 128
        %358 = vxpose.xlu0.b32.cont [9/16] 0.0, 128
        %359 = vxpose.xlu0.b32.cont [10/16] 0.0, 128
        %360 = vxpose.xlu0.b32.cont [11/16] 0.0, 128
        %361 = vxpose.xlu0.b32.cont [12/16] 0.0, 128
        %362 = vxpose.xlu0.b32.cont [13/16] 0.0, 128
        %363 = vxpose.xlu0.b32.cont [14/16] 0.0, 128
        %364 = vxpose.xlu0.b32.cont [15/16] 0.0, 128
        %365 = vxpose.xlu0.b32.end [16/16] 0.0, 128
        %v366 = vpop.trf.xlu0
        %v367 = vpop.trf.xlu0
        %v368 = vpop.trf.xlu0
        %v369 = vpop.trf.xlu0
        %v370 = vpop.trf.xlu0
        %v371 = vpop.trf.xlu0
        %v372 = vpop.trf.xlu0
        %v373 = vpop.trf.xlu0
        %v374 = vpop.trf.xlu0
        %v375 = vpop.trf.xlu0
        %v376 = vpop.trf.xlu0
        %v377 = vpop.trf.xlu0
        %v378 = vpop.trf.xlu0
        %v379 = vpop.trf.xlu0
        %v380 = vpop.trf.xlu0
        %v381 = vpop.trf.xlu0
        %vm382 = vcmask 130048
        %v384 = vsel %vm382, %v366, 0
        %v387 = vsel %vm382, %v367, 0
        %v390 = vsel %vm382, %v368, 0
        %v393 = vsel %vm382, %v369, 0
        %v396 = vsel %vm382, %v370, 0
        %v399 = vsel %vm382, %v371, 0
        %v402 = vsel %vm382, %v372, 0
        %v405 = vsel %vm382, %v373, 0
        %407 = vmatprep.subr.mxu0 0.0
        %408 = vmatpush1.msra.mxu0 0.0
        %409 = vmatprep.subr.mxu0 0.0
        %410 = vmatpush1.msra.mxu0 0.0
        %411 = vmatprep.subr.mxu0 0.0
        %412 = vmatpush1.msra.mxu0 0.0
        %413 = vmatprep.subr.mxu0 0.0
        %414 = vmatpush1.msra.mxu0 0.0
        %415 = vmatprep.subr.mxu0 0.0
        %416 = vmatpush1.msra.mxu0 0.0
        %417 = vmatprep.subr.mxu0 0.0
        %418 = vmatpush1.msra.mxu0 0.0
        %419 = vmatprep.subr.mxu0 0.0
        %420 = vmatpush1.msra.mxu0 0.0
        %421 = vmatprep.subr.mxu0 0.0
        %422 = vmatpush1.msra.mxu0 0.0
        %423 = vmatprep.subr.mxu0 0.0
        %424 = vmatpush1.msra.mxu0 0.0
        %425 = vmatprep.subr.mxu0 0.0
        %426 = vmatpush1.msra.mxu0 0.0
        %427 = vmatprep.subr.mxu0 0.0
        %428 = vmatpush1.msra.mxu0 0.0
        %429 = vmatprep.subr.mxu0 0.0
        %430 = vmatpush1.msra.mxu0 0.0
        %431 = vmatprep.subr.mxu0 0.0
        %432 = vmatpush1.msra.mxu0 0.0
        %433 = vmatprep.subr.mxu0 0.0
        %434 = vmatpush1.msra.mxu0 0.0
        %435 = vmatprep.subr.mxu0 0.0
        %v436 = vand.u32 %v313, 4294901760
        %437 = vmatpush1.msra.mxu0 %v436
        %438 = vmatprep.subr.mxu0 0.0
        %v439 = vand.u32 %v311, 4294901760
        %440 = vmatpush1.msra.mxu0 %v439
        %441 = vmatprep.subr.mxu0 0.0
        %442 = vmatpush2.msra.mxu0 0.0
        %443 = vmatprep.subr.mxu0 0.0
        %444 = vmatpush2.msra.mxu0 0.0
        %445 = vmatprep.subr.mxu0 0.0
        %446 = vmatpush2.msra.mxu0 0.0
        %447 = vmatprep.subr.mxu0 0.0
        %448 = vmatpush2.msra.mxu0 0.0
        %449 = vmatprep.subr.mxu0 0.0
        %450 = vmatpush2.msra.mxu0 0.0
        %451 = vmatprep.subr.mxu0 0.0
        %452 = vmatpush2.msra.mxu0 0.0
        %453 = vmatprep.subr.mxu0 0.0
        %454 = vmatpush2.msra.mxu0 0.0
        %455 = vmatprep.subr.mxu0 0.0
        %456 = vmatpush2.msra.mxu0 0.0
        %457 = vmatprep.subr.mxu0 0.0
        %458 = vmatpush2.msra.mxu0 0.0
        %459 = vmatprep.subr.mxu0 0.0
        %460 = vmatpush2.msra.mxu0 0.0
        %461 = vmatprep.subr.mxu0 0.0
        %462 = vmatpush2.msra.mxu0 0.0
        %463 = vmatprep.subr.mxu0 0.0
        %464 = vmatpush2.msra.mxu0 0.0
        %465 = vmatprep.subr.mxu0 0.0
        %466 = vmatpush2.msra.mxu0 0.0
        %467 = vmatprep.subr.mxu0 0.0
        %468 = vmatpush2.msra.mxu0 0.0
        %469 = vmatprep.subr.mxu0 0.0
        %470 = vmatpush2.msra.mxu0 0.0
        %471 = vmatprep.subr.mxu0 0.0
        %472 = vmatpush2.msra.mxu0 0.0
        %473 = vmatprep.mubr.f32.mxu0 0.0
        %v474 = vand.u32 %v384, 4294901760
        %v475 = vsub.f32 %v384, %v474
        %v476 = vand.u32 %v475, 4294901760
        %v477 = vsub.f32 %v475, %v476
        %v478 = vand.u32 %v477, 4294901760
        %479 = vmatmul.mubr.f32.gmra.mxu0 %v478
        %v480 = vpop.f32.mrf.mxu0
        %v481 = vadd.f32 0.0, %v480
        %v482 = vpop.f32.mrf.mxu0
        %483 = vmatprep.mubr.f32.mxu0 0.0
        %v484 = vand.u32 %v387, 4294901760
        %v485 = vsub.f32 %v387, %v484
        %v486 = vand.u32 %v485, 4294901760
        %v487 = vsub.f32 %v485, %v486
        %v488 = vand.u32 %v487, 4294901760
        %489 = vmatmul.mubr.f32.gmra.mxu0 %v488
        %v490 = vpop.f32.mrf.mxu0
        %v491 = vadd.f32 0.0, %v490
        %v492 = vpop.f32.mrf.mxu0
        %493 = vmatprep.mubr.f32.mxu0 0.0
        %v494 = vand.u32 %v390, 4294901760
        %v495 = vsub.f32 %v390, %v494
        %v496 = vand.u32 %v495, 4294901760
        %v497 = vsub.f32 %v495, %v496
        %v498 = vand.u32 %v497, 4294901760
        %499 = vmatmul.mubr.f32.gmra.mxu0 %v498
        %v500 = vpop.f32.mrf.mxu0
        %v501 = vadd.f32 0.0, %v500
        %v502 = vpop.f32.mrf.mxu0
        %503 = vmatprep.mubr.f32.mxu0 0.0
        %v504 = vand.u32 %v393, 4294901760
        %v505 = vsub.f32 %v393, %v504
        %v506 = vand.u32 %v505, 4294901760
        %v507 = vsub.f32 %v505, %v506
        %v508 = vand.u32 %v507, 4294901760
        %509 = vmatmul.mubr.f32.gmra.mxu0 %v508
        %v510 = vpop.f32.mrf.mxu0
        %v511 = vadd.f32 0.0, %v510
        %v512 = vpop.f32.mrf.mxu0
        %513 = vmatprep.mubr.f32.mxu0 0.0
        %v514 = vand.u32 %v396, 4294901760
        %v515 = vsub.f32 %v396, %v514
        %v516 = vand.u32 %v515, 4294901760
        %v517 = vsub.f32 %v515, %v516
        %v518 = vand.u32 %v517, 4294901760
        %519 = vmatmul.mubr.f32.gmra.mxu0 %v518
        %v520 = vpop.f32.mrf.mxu0
        %v521 = vadd.f32 0.0, %v520
        %v522 = vpop.f32.mrf.mxu0
        %523 = vmatprep.mubr.f32.mxu0 0.0
        %v524 = vand.u32 %v399, 4294901760
        %v525 = vsub.f32 %v399, %v524
        %v526 = vand.u32 %v525, 4294901760
        %v527 = vsub.f32 %v525, %v526
        %v528 = vand.u32 %v527, 4294901760
        %529 = vmatmul.mubr.f32.gmra.mxu0 %v528
        %v530 = vpop.f32.mrf.mxu0
        %v531 = vadd.f32 0.0, %v530
        %v532 = vpop.f32.mrf.mxu0
        %533 = vmatprep.mubr.f32.mxu0 0.0
        %v534 = vand.u32 %v402, 4294901760
        %v535 = vsub.f32 %v402, %v534
        %v536 = vand.u32 %v535, 4294901760
        %v537 = vsub.f32 %v535, %v536
        %v538 = vand.u32 %v537, 4294901760
        %539 = vmatmul.mubr.f32.gmra.mxu0 %v538
        %v540 = vpop.f32.mrf.mxu0
        %v541 = vadd.f32 0.0, %v540
        %v542 = vpop.f32.mrf.mxu0
        %543 = vmatprep.mubr.f32.mxu0 0.0
        %v544 = vand.u32 %v405, 4294901760
        %v545 = vsub.f32 %v405, %v544
        %v546 = vand.u32 %v545, 4294901760
        %v547 = vsub.f32 %v545, %v546
        %v548 = vand.u32 %v547, 4294901760
        %549 = vmatmul.mubr.f32.gmra.mxu0 %v548
        %v550 = vpop.f32.mrf.mxu0
        %v551 = vadd.f32 0.0, %v550
        %v552 = vpop.f32.mrf.mxu0
        %553 = vdwg.mxu0
        %554 = vmatprep.subr.mxu0 0.0
        %555 = vmatpush1.msra.mxu0 0.0
        %556 = vmatprep.subr.mxu0 0.0
        %557 = vmatpush1.msra.mxu0 0.0
        %558 = vmatprep.subr.mxu0 0.0
        %559 = vmatpush1.msra.mxu0 0.0
        %560 = vmatprep.subr.mxu0 0.0
        %561 = vmatpush1.msra.mxu0 0.0
        %562 = vmatprep.subr.mxu0 0.0
        %563 = vmatpush1.msra.mxu0 0.0
        %564 = vmatprep.subr.mxu0 0.0
        %565 = vmatpush1.msra.mxu0 0.0
        %566 = vmatprep.subr.mxu0 0.0
        %567 = vmatpush1.msra.mxu0 0.0
        %568 = vmatprep.subr.mxu0 0.0
        %569 = vmatpush1.msra.mxu0 0.0
        %570 = vmatprep.subr.mxu0 0.0
        %571 = vmatpush1.msra.mxu0 0.0
        %572 = vmatprep.subr.mxu0 0.0
        %573 = vmatpush1.msra.mxu0 0.0
        %574 = vmatprep.subr.mxu0 0.0
        %575 = vmatpush1.msra.mxu0 0.0
        %576 = vmatprep.subr.mxu0 0.0
        %577 = vmatpush1.msra.mxu0 0.0
        %578 = vmatprep.subr.mxu0 0.0
        %579 = vmatpush1.msra.mxu0 0.0
        %580 = vmatprep.subr.mxu0 0.0
        %581 = vmatpush1.msra.mxu0 0.0
        %582 = vmatprep.subr.mxu0 0.0
        %v583 = vand.u32 %v313, 4294901760
        %v584 = vsub.f32 %v313, %v583
        %v585 = vand.u32 %v584, 4294901760
        %v586 = vsub.f32 %v584, %v585
        %v587 = vand.u32 %v586, 4294901760
        %588 = vmatpush1.msra.mxu0 %v587
        %589 = vmatprep.subr.mxu0 0.0
        %v590 = vand.u32 %v311, 4294901760
        %v591 = vsub.f32 %v311, %v590
        %v592 = vand.u32 %v591, 4294901760
        %v593 = vsub.f32 %v591, %v592
        %v594 = vand.u32 %v593, 4294901760
        %595 = vmatpush1.msra.mxu0 %v594
        %596 = vmatprep.subr.mxu0 0.0
        %597 = vmatpush2.msra.mxu0 0.0
        %598 = vmatprep.subr.mxu0 0.0
        %599 = vmatpush2.msra.mxu0 0.0
        %600 = vmatprep.subr.mxu0 0.0
        %601 = vmatpush2.msra.mxu0 0.0
        %602 = vmatprep.subr.mxu0 0.0
        %603 = vmatpush2.msra.mxu0 0.0
        %604 = vmatprep.subr.mxu0 0.0
        %605 = vmatpush2.msra.mxu0 0.0
        %606 = vmatprep.subr.mxu0 0.0
        %607 = vmatpush2.msra.mxu0 0.0
        %608 = vmatprep.subr.mxu0 0.0
        %609 = vmatpush2.msra.mxu0 0.0
        %610 = vmatprep.subr.mxu0 0.0
        %611 = vmatpush2.msra.mxu0 0.0
        %612 = vmatprep.subr.mxu0 0.0
        %613 = vmatpush2.msra.mxu0 0.0
        %614 = vmatprep.subr.mxu0 0.0
        %615 = vmatpush2.msra.mxu0 0.0
        %616 = vmatprep.subr.mxu0 0.0
        %617 = vmatpush2.msra.mxu0 0.0
        %618 = vmatprep.subr.mxu0 0.0
        %619 = vmatpush2.msra.mxu0 0.0
        %620 = vmatprep.subr.mxu0 0.0
        %621 = vmatpush2.msra.mxu0 0.0
        %622 = vmatprep.subr.mxu0 0.0
        %623 = vmatpush2.msra.mxu0 0.0
        %624 = vmatprep.subr.mxu0 0.0
        %625 = vmatpush2.msra.mxu0 0.0
        %626 = vmatprep.subr.mxu0 0.0
        %627 = vmatpush2.msra.mxu0 0.0
        %628 = vmatprep.mubr.f32.mxu0 0.0
        %v629 = vand.u32 %v384, 4294901760
        %630 = vmatmul.mubr.f32.gmra.mxu0 %v629
        %v631 = vpop.f32.mrf.mxu0
        %v632 = vadd.f32 %v481, %v631
        %v633 = vpop.f32.mrf.mxu0
        %634 = vmatprep.mubr.f32.mxu0 0.0
        %v635 = vand.u32 %v387, 4294901760
        %636 = vmatmul.mubr.f32.gmra.mxu0 %v635
        %v637 = vpop.f32.mrf.mxu0
        %v638 = vadd.f32 %v491, %v637
        %v639 = vpop.f32.mrf.mxu0
        %640 = vmatprep.mubr.f32.mxu0 0.0
        %v641 = vand.u32 %v390, 4294901760
        %642 = vmatmul.mubr.f32.gmra.mxu0 %v641
        %v643 = vpop.f32.mrf.mxu0
        %v644 = vadd.f32 %v501, %v643
        %v645 = vpop.f32.mrf.mxu0
        %646 = vmatprep.mubr.f32.mxu0 0.0
        %v647 = vand.u32 %v393, 4294901760
        %648 = vmatmul.mubr.f32.gmra.mxu0 %v647
        %v649 = vpop.f32.mrf.mxu0
        %v650 = vadd.f32 %v511, %v649
        %v651 = vpop.f32.mrf.mxu0
        %652 = vmatprep.mubr.f32.mxu0 0.0
        %v653 = vand.u32 %v396, 4294901760
        %654 = vmatmul.mubr.f32.gmra.mxu0 %v653
        %v655 = vpop.f32.mrf.mxu0
        %v656 = vadd.f32 %v521, %v655
        %v657 = vpop.f32.mrf.mxu0
        %658 = vmatprep.mubr.f32.mxu0 0.0
        %v659 = vand.u32 %v399, 4294901760
        %660 = vmatmul.mubr.f32.gmra.mxu0 %v659
        %v661 = vpop.f32.mrf.mxu0
        %v662 = vadd.f32 %v531, %v661
        %v663 = vpop.f32.mrf.mxu0
        %664 = vmatprep.mubr.f32.mxu0 0.0
        %v665 = vand.u32 %v402, 4294901760
        %666 = vmatmul.mubr.f32.gmra.mxu0 %v665
        %v667 = vpop.f32.mrf.mxu0
        %v668 = vadd.f32 %v541, %v667
        %v669 = vpop.f32.mrf.mxu0
        %670 = vmatprep.mubr.f32.mxu0 0.0
        %v671 = vand.u32 %v405, 4294901760
        %672 = vmatmul.mubr.f32.gmra.mxu0 %v671
        %v673 = vpop.f32.mrf.mxu0
        %v674 = vadd.f32 %v551, %v673
        %v675 = vpop.f32.mrf.mxu0
        %676 = vdwg.mxu0
        %677 = vmatprep.subr.mxu0 0.0
        %678 = vmatpush1.msra.mxu0 0.0
        %679 = vmatprep.subr.mxu0 0.0
        %680 = vmatpush1.msra.mxu0 0.0
        %681 = vmatprep.subr.mxu0 0.0
        %682 = vmatpush1.msra.mxu0 0.0
        %683 = vmatprep.subr.mxu0 0.0
        %684 = vmatpush1.msra.mxu0 0.0
        %685 = vmatprep.subr.mxu0 0.0
        %686 = vmatpush1.msra.mxu0 0.0
        %687 = vmatprep.subr.mxu0 0.0
        %688 = vmatpush1.msra.mxu0 0.0
        %689 = vmatprep.subr.mxu0 0.0
        %690 = vmatpush1.msra.mxu0 0.0
        %691 = vmatprep.subr.mxu0 0.0
        %692 = vmatpush1.msra.mxu0 0.0
        %693 = vmatprep.subr.mxu0 0.0
        %694 = vmatpush1.msra.mxu0 0.0
        %695 = vmatprep.subr.mxu0 0.0
        %696 = vmatpush1.msra.mxu0 0.0
        %697 = vmatprep.subr.mxu0 0.0
        %698 = vmatpush1.msra.mxu0 0.0
        %699 = vmatprep.subr.mxu0 0.0
        %700 = vmatpush1.msra.mxu0 0.0
        %701 = vmatprep.subr.mxu0 0.0
        %702 = vmatpush1.msra.mxu0 0.0
        %703 = vmatprep.subr.mxu0 0.0
        %704 = vmatpush1.msra.mxu0 0.0
        %705 = vmatprep.subr.mxu0 0.0
        %v706 = vand.u32 %v313, 4294901760
        %v707 = vsub.f32 %v313, %v706
        %708 = vmatpush1.msra.mxu0 %v707
        %709 = vmatprep.subr.mxu0 0.0
        %v710 = vand.u32 %v311, 4294901760
        %v711 = vsub.f32 %v311, %v710
        %712 = vmatpush1.msra.mxu0 %v711
        %713 = vmatprep.subr.mxu0 0.0
        %714 = vmatpush2.msra.mxu0 0.0
        %715 = vmatprep.subr.mxu0 0.0
        %716 = vmatpush2.msra.mxu0 0.0
        %717 = vmatprep.subr.mxu0 0.0
        %718 = vmatpush2.msra.mxu0 0.0
        %719 = vmatprep.subr.mxu0 0.0
        %720 = vmatpush2.msra.mxu0 0.0
        %721 = vmatprep.subr.mxu0 0.0
        %722 = vmatpush2.msra.mxu0 0.0
        %723 = vmatprep.subr.mxu0 0.0
        %724 = vmatpush2.msra.mxu0 0.0
        %725 = vmatprep.subr.mxu0 0.0
        %726 = vmatpush2.msra.mxu0 0.0
        %727 = vmatprep.subr.mxu0 0.0
        %728 = vmatpush2.msra.mxu0 0.0
        %729 = vmatprep.subr.mxu0 0.0
        %730 = vmatpush2.msra.mxu0 0.0
        %731 = vmatprep.subr.mxu0 0.0
        %732 = vmatpush2.msra.mxu0 0.0
        %733 = vmatprep.subr.mxu0 0.0
        %734 = vmatpush2.msra.mxu0 0.0
        %735 = vmatprep.subr.mxu0 0.0
        %736 = vmatpush2.msra.mxu0 0.0
        %737 = vmatprep.subr.mxu0 0.0
        %738 = vmatpush2.msra.mxu0 0.0
        %739 = vmatprep.subr.mxu0 0.0
        %740 = vmatpush2.msra.mxu0 0.0
        %741 = vmatprep.subr.mxu0 0.0
        %742 = vmatpush2.msra.mxu0 0.0
        %743 = vmatprep.subr.mxu0 0.0
        %744 = vmatpush2.msra.mxu0 0.0
        %745 = vmatprep.mubr.f32.mxu0 0.0
        %v746 = vand.u32 %v384, 4294901760
        %v747 = vsub.f32 %v384, %v746
        %748 = vmatmul.mubr.f32.gmra.mxu0 %v747
        %v749 = vpop.f32.mrf.mxu0
        %v750 = vadd.f32 %v632, %v749
        %v751 = vpop.f32.mrf.mxu0
        %752 = vmatprep.mubr.f32.mxu0 0.0
        %v753 = vand.u32 %v387, 4294901760
        %v754 = vsub.f32 %v387, %v753
        %755 = vmatmul.mubr.f32.gmra.mxu0 %v754
        %v756 = vpop.f32.mrf.mxu0
        %v757 = vadd.f32 %v638, %v756
        %v758 = vpop.f32.mrf.mxu0
        %759 = vmatprep.mubr.f32.mxu0 0.0
        %v760 = vand.u32 %v390, 4294901760
        %v761 = vsub.f32 %v390, %v760
        %762 = vmatmul.mubr.f32.gmra.mxu0 %v761
        %v763 = vpop.f32.mrf.mxu0
        %v764 = vadd.f32 %v644, %v763
        %v765 = vpop.f32.mrf.mxu0
        %766 = vmatprep.mubr.f32.mxu0 0.0
        %v767 = vand.u32 %v393, 4294901760
        %v768 = vsub.f32 %v393, %v767
        %769 = vmatmul.mubr.f32.gmra.mxu0 %v768
        %v770 = vpop.f32.mrf.mxu0
        %v771 = vadd.f32 %v650, %v770
        %v772 = vpop.f32.mrf.mxu0
        %773 = vmatprep.mubr.f32.mxu0 0.0
        %v774 = vand.u32 %v396, 4294901760
        %v775 = vsub.f32 %v396, %v774
        %776 = vmatmul.mubr.f32.gmra.mxu0 %v775
        %v777 = vpop.f32.mrf.mxu0
        %v778 = vadd.f32 %v656, %v777
        %v779 = vpop.f32.mrf.mxu0
        %780 = vmatprep.mubr.f32.mxu0 0.0
        %v781 = vand.u32 %v399, 4294901760
        %v782 = vsub.f32 %v399, %v781
        %783 = vmatmul.mubr.f32.gmra.mxu0 %v782
        %v784 = vpop.f32.mrf.mxu0
        %v785 = vadd.f32 %v662, %v784
        %v786 = vpop.f32.mrf.mxu0
        %787 = vmatprep.mubr.f32.mxu0 0.0
        %v788 = vand.u32 %v402, 4294901760
        %v789 = vsub.f32 %v402, %v788
        %790 = vmatmul.mubr.f32.gmra.mxu0 %v789
        %v791 = vpop.f32.mrf.mxu0
        %v792 = vadd.f32 %v668, %v791
        %v793 = vpop.f32.mrf.mxu0
        %794 = vmatprep.mubr.f32.mxu0 0.0
        %v795 = vand.u32 %v405, 4294901760
        %v796 = vsub.f32 %v405, %v795
        %797 = vmatmul.mubr.f32.gmra.mxu0 %v796
        %v798 = vpop.f32.mrf.mxu0
        %v799 = vadd.f32 %v674, %v798
        %v800 = vpop.f32.mrf.mxu0
        %801 = vdwg.mxu0
        %802 = vmatprep.subr.mxu0 0.0
        %803 = vmatpush1.msra.mxu0 0.0
        %804 = vmatprep.subr.mxu0 0.0
        %805 = vmatpush1.msra.mxu0 0.0
        %806 = vmatprep.subr.mxu0 0.0
        %807 = vmatpush1.msra.mxu0 0.0
        %808 = vmatprep.subr.mxu0 0.0
        %809 = vmatpush1.msra.mxu0 0.0
        %810 = vmatprep.subr.mxu0 0.0
        %811 = vmatpush1.msra.mxu0 0.0
        %812 = vmatprep.subr.mxu0 0.0
        %813 = vmatpush1.msra.mxu0 0.0
        %814 = vmatprep.subr.mxu0 0.0
        %815 = vmatpush1.msra.mxu0 0.0
        %816 = vmatprep.subr.mxu0 0.0
        %817 = vmatpush1.msra.mxu0 0.0
        %818 = vmatprep.subr.mxu0 0.0
        %819 = vmatpush1.msra.mxu0 0.0
        %820 = vmatprep.subr.mxu0 0.0
        %821 = vmatpush1.msra.mxu0 0.0
        %822 = vmatprep.subr.mxu0 0.0
        %823 = vmatpush1.msra.mxu0 0.0
        %824 = vmatprep.subr.mxu0 0.0
        %825 = vmatpush1.msra.mxu0 0.0
        %826 = vmatprep.subr.mxu0 0.0
        %827 = vmatpush1.msra.mxu0 0.0
        %828 = vmatprep.subr.mxu0 0.0
        %829 = vmatpush1.msra.mxu0 0.0
        %830 = vmatprep.subr.mxu0 0.0
        %v831 = vand.u32 %v313, 4294901760
        %832 = vmatpush1.msra.mxu0 %v831
        %833 = vmatprep.subr.mxu0 0.0
        %v834 = vand.u32 %v311, 4294901760
        %835 = vmatpush1.msra.mxu0 %v834
        %836 = vmatprep.subr.mxu0 0.0
        %837 = vmatpush2.msra.mxu0 0.0
        %838 = vmatprep.subr.mxu0 0.0
        %839 = vmatpush2.msra.mxu0 0.0
        %840 = vmatprep.subr.mxu0 0.0
        %841 = vmatpush2.msra.mxu0 0.0
        %842 = vmatprep.subr.mxu0 0.0
        %843 = vmatpush2.msra.mxu0 0.0
        %844 = vmatprep.subr.mxu0 0.0
        %845 = vmatpush2.msra.mxu0 0.0
        %846 = vmatprep.subr.mxu0 0.0
        %847 = vmatpush2.msra.mxu0 0.0
        %848 = vmatprep.subr.mxu0 0.0
        %849 = vmatpush2.msra.mxu0 0.0
        %850 = vmatprep.subr.mxu0 0.0
        %851 = vmatpush2.msra.mxu0 0.0
        %852 = vmatprep.subr.mxu0 0.0
        %853 = vmatpush2.msra.mxu0 0.0
        %854 = vmatprep.subr.mxu0 0.0
        %855 = vmatpush2.msra.mxu0 0.0
        %856 = vmatprep.subr.mxu0 0.0
        %857 = vmatpush2.msra.mxu0 0.0
        %858 = vmatprep.subr.mxu0 0.0
        %859 = vmatpush2.msra.mxu0 0.0
        %860 = vmatprep.subr.mxu0 0.0
        %861 = vmatpush2.msra.mxu0 0.0
        %862 = vmatprep.subr.mxu0 0.0
        %863 = vmatpush2.msra.mxu0 0.0
        %864 = vmatprep.subr.mxu0 0.0
        %865 = vmatpush2.msra.mxu0 0.0
        %866 = vmatprep.subr.mxu0 0.0
        %867 = vmatpush2.msra.mxu0 0.0
        %868 = vmatprep.mubr.f32.mxu0 0.0
        %v869 = vand.u32 %v384, 4294901760
        %v870 = vsub.f32 %v384, %v869
        %v871 = vand.u32 %v870, 4294901760
        %872 = vmatmul.mubr.f32.gmra.mxu0 %v871
        %v873 = vpop.f32.mrf.mxu0
        %v874 = vadd.f32 %v750, %v873
        %v875 = vpop.f32.mrf.mxu0
        %876 = vmatprep.mubr.f32.mxu0 0.0
        %v877 = vand.u32 %v387, 4294901760
        %v878 = vsub.f32 %v387, %v877
        %v879 = vand.u32 %v878, 4294901760
        %880 = vmatmul.mubr.f32.gmra.mxu0 %v879
        %v881 = vpop.f32.mrf.mxu0
        %v882 = vadd.f32 %v757, %v881
        %v883 = vpop.f32.mrf.mxu0
        %884 = vmatprep.mubr.f32.mxu0 0.0
        %v885 = vand.u32 %v390, 4294901760
        %v886 = vsub.f32 %v390, %v885
        %v887 = vand.u32 %v886, 4294901760
        %888 = vmatmul.mubr.f32.gmra.mxu0 %v887
        %v889 = vpop.f32.mrf.mxu0
        %v890 = vadd.f32 %v764, %v889
        %v891 = vpop.f32.mrf.mxu0
        %892 = vmatprep.mubr.f32.mxu0 0.0
        %v893 = vand.u32 %v393, 4294901760
        %v894 = vsub.f32 %v393, %v893
        %v895 = vand.u32 %v894, 4294901760
        %896 = vmatmul.mubr.f32.gmra.mxu0 %v895
        %v897 = vpop.f32.mrf.mxu0
        %v898 = vadd.f32 %v771, %v897
        %v899 = vpop.f32.mrf.mxu0
        %900 = vmatprep.mubr.f32.mxu0 0.0
        %v901 = vand.u32 %v396, 4294901760
        %v902 = vsub.f32 %v396, %v901
        %v903 = vand.u32 %v902, 4294901760
        %904 = vmatmul.mubr.f32.gmra.mxu0 %v903
        %v905 = vpop.f32.mrf.mxu0
        %v906 = vadd.f32 %v778, %v905
        %v907 = vpop.f32.mrf.mxu0
        %908 = vmatprep.mubr.f32.mxu0 0.0
        %v909 = vand.u32 %v399, 4294901760
        %v910 = vsub.f32 %v399, %v909
        %v911 = vand.u32 %v910, 4294901760
        %912 = vmatmul.mubr.f32.gmra.mxu0 %v911
        %v913 = vpop.f32.mrf.mxu0
        %v914 = vadd.f32 %v785, %v913
        %v915 = vpop.f32.mrf.mxu0
        %916 = vmatprep.mubr.f32.mxu0 0.0
        %v917 = vand.u32 %v402, 4294901760
        %v918 = vsub.f32 %v402, %v917
        %v919 = vand.u32 %v918, 4294901760
        %920 = vmatmul.mubr.f32.gmra.mxu0 %v919
        %v921 = vpop.f32.mrf.mxu0
        %v922 = vadd.f32 %v792, %v921
        %v923 = vpop.f32.mrf.mxu0
        %924 = vmatprep.mubr.f32.mxu0 0.0
        %v925 = vand.u32 %v405, 4294901760
        %v926 = vsub.f32 %v405, %v925
        %v927 = vand.u32 %v926, 4294901760
        %928 = vmatmul.mubr.f32.gmra.mxu0 %v927
        %v929 = vpop.f32.mrf.mxu0
        %v930 = vadd.f32 %v799, %v929
        %v931 = vpop.f32.mrf.mxu0
        %932 = vdwg.mxu0
        %933 = vmatprep.subr.mxu0 0.0
        %934 = vmatpush1.msra.mxu0 0.0
        %935 = vmatprep.subr.mxu0 0.0
        %936 = vmatpush1.msra.mxu0 0.0
        %937 = vmatprep.subr.mxu0 0.0
        %938 = vmatpush1.msra.mxu0 0.0
        %939 = vmatprep.subr.mxu0 0.0
        %940 = vmatpush1.msra.mxu0 0.0
        %941 = vmatprep.subr.mxu0 0.0
        %942 = vmatpush1.msra.mxu0 0.0
        %943 = vmatprep.subr.mxu0 0.0
        %944 = vmatpush1.msra.mxu0 0.0
        %945 = vmatprep.subr.mxu0 0.0
        %946 = vmatpush1.msra.mxu0 0.0
        %947 = vmatprep.subr.mxu0 0.0
        %948 = vmatpush1.msra.mxu0 0.0
        %949 = vmatprep.subr.mxu0 0.0
        %950 = vmatpush1.msra.mxu0 0.0
        %951 = vmatprep.subr.mxu0 0.0
        %952 = vmatpush1.msra.mxu0 0.0
        %953 = vmatprep.subr.mxu0 0.0
        %954 = vmatpush1.msra.mxu0 0.0
        %955 = vmatprep.subr.mxu0 0.0
        %956 = vmatpush1.msra.mxu0 0.0
        %957 = vmatprep.subr.mxu0 0.0
        %958 = vmatpush1.msra.mxu0 0.0
        %959 = vmatprep.subr.mxu0 0.0
        %960 = vmatpush1.msra.mxu0 0.0
        %961 = vmatprep.subr.mxu0 0.0
        %v962 = vand.u32 %v313, 4294901760
        %v963 = vsub.f32 %v313, %v962
        %v964 = vand.u32 %v963, 4294901760
        %965 = vmatpush1.msra.mxu0 %v964
        %966 = vmatprep.subr.mxu0 0.0
        %v967 = vand.u32 %v311, 4294901760
        %v968 = vsub.f32 %v311, %v967
        %v969 = vand.u32 %v968, 4294901760
        %970 = vmatpush1.msra.mxu0 %v969
        %971 = vmatprep.subr.mxu0 0.0
        %972 = vmatpush2.msra.mxu0 0.0
        %973 = vmatprep.subr.mxu0 0.0
        %974 = vmatpush2.msra.mxu0 0.0
        %975 = vmatprep.subr.mxu0 0.0
        %976 = vmatpush2.msra.mxu0 0.0
        %977 = vmatprep.subr.mxu0 0.0
        %978 = vmatpush2.msra.mxu0 0.0
        %979 = vmatprep.subr.mxu0 0.0
        %980 = vmatpush2.msra.mxu0 0.0
        %981 = vmatprep.subr.mxu0 0.0
        %982 = vmatpush2.msra.mxu0 0.0
        %983 = vmatprep.subr.mxu0 0.0
        %984 = vmatpush2.msra.mxu0 0.0
        %985 = vmatprep.subr.mxu0 0.0
        %986 = vmatpush2.msra.mxu0 0.0
        %987 = vmatprep.subr.mxu0 0.0
        %988 = vmatpush2.msra.mxu0 0.0
        %989 = vmatprep.subr.mxu0 0.0
        %990 = vmatpush2.msra.mxu0 0.0
        %991 = vmatprep.subr.mxu0 0.0
        %992 = vmatpush2.msra.mxu0 0.0
        %993 = vmatprep.subr.mxu0 0.0
        %994 = vmatpush2.msra.mxu0 0.0
        %995 = vmatprep.subr.mxu0 0.0
        %996 = vmatpush2.msra.mxu0 0.0
        %997 = vmatprep.subr.mxu0 0.0
        %998 = vmatpush2.msra.mxu0 0.0
        %999 = vmatprep.subr.mxu0 0.0
        %1000 = vmatpush2.msra.mxu0 0.0
        %1001 = vmatprep.subr.mxu0 0.0
        %1002 = vmatpush2.msra.mxu0 0.0
        %1003 = vmatprep.mubr.f32.mxu0 0.0
        %v1004 = vand.u32 %v384, 4294901760
        %1005 = vmatmul.mubr.f32.gmra.mxu0 %v1004
        %v1006 = vpop.f32.mrf.mxu0
        %v1007 = vadd.f32 %v874, %v1006
        %v1008 = vpop.f32.mrf.mxu0
        %1009 = vmatprep.mubr.f32.mxu0 0.0
        %v1010 = vand.u32 %v387, 4294901760
        %1011 = vmatmul.mubr.f32.gmra.mxu0 %v1010
        %v1012 = vpop.f32.mrf.mxu0
        %v1013 = vadd.f32 %v882, %v1012
        %v1014 = vpop.f32.mrf.mxu0
        %1015 = vmatprep.mubr.f32.mxu0 0.0
        %v1016 = vand.u32 %v390, 4294901760
        %1017 = vmatmul.mubr.f32.gmra.mxu0 %v1016
        %v1018 = vpop.f32.mrf.mxu0
        %v1019 = vadd.f32 %v890, %v1018
        %v1020 = vpop.f32.mrf.mxu0
        %1021 = vmatprep.mubr.f32.mxu0 0.0
        %v1022 = vand.u32 %v393, 4294901760
        %1023 = vmatmul.mubr.f32.gmra.mxu0 %v1022
        %v1024 = vpop.f32.mrf.mxu0
        %v1025 = vadd.f32 %v898, %v1024
        %v1026 = vpop.f32.mrf.mxu0
        %1027 = vmatprep.mubr.f32.mxu0 0.0
        %v1028 = vand.u32 %v396, 4294901760
        %1029 = vmatmul.mubr.f32.gmra.mxu0 %v1028
        %v1030 = vpop.f32.mrf.mxu0
        %v1031 = vadd.f32 %v906, %v1030
        %v1032 = vpop.f32.mrf.mxu0
        %1033 = vmatprep.mubr.f32.mxu0 0.0
        %v1034 = vand.u32 %v399, 4294901760
        %1035 = vmatmul.mubr.f32.gmra.mxu0 %v1034
        %v1036 = vpop.f32.mrf.mxu0
        %v1037 = vadd.f32 %v914, %v1036
        %v1038 = vpop.f32.mrf.mxu0
        %1039 = vmatprep.mubr.f32.mxu0 0.0
        %v1040 = vand.u32 %v402, 4294901760
        %1041 = vmatmul.mubr.f32.gmra.mxu0 %v1040
        %v1042 = vpop.f32.mrf.mxu0
        %v1043 = vadd.f32 %v922, %v1042
        %v1044 = vpop.f32.mrf.mxu0
        %1045 = vmatprep.mubr.f32.mxu0 0.0
        %v1046 = vand.u32 %v405, 4294901760
        %1047 = vmatmul.mubr.f32.gmra.mxu0 %v1046
        %v1048 = vpop.f32.mrf.mxu0
        %v1049 = vadd.f32 %v930, %v1048
        %v1050 = vpop.f32.mrf.mxu0
        %1051 = vdwg.mxu0
        %1052 = vmatprep.subr.mxu0 0.0
        %1053 = vmatpush1.msra.mxu0 0.0
        %1054 = vmatprep.subr.mxu0 0.0
        %1055 = vmatpush1.msra.mxu0 0.0
        %1056 = vmatprep.subr.mxu0 0.0
        %1057 = vmatpush1.msra.mxu0 0.0
        %1058 = vmatprep.subr.mxu0 0.0
        %1059 = vmatpush1.msra.mxu0 0.0
        %1060 = vmatprep.subr.mxu0 0.0
        %1061 = vmatpush1.msra.mxu0 0.0
        %1062 = vmatprep.subr.mxu0 0.0
        %1063 = vmatpush1.msra.mxu0 0.0
        %1064 = vmatprep.subr.mxu0 0.0
        %1065 = vmatpush1.msra.mxu0 0.0
        %1066 = vmatprep.subr.mxu0 0.0
        %1067 = vmatpush1.msra.mxu0 0.0
        %1068 = vmatprep.subr.mxu0 0.0
        %1069 = vmatpush1.msra.mxu0 0.0
        %1070 = vmatprep.subr.mxu0 0.0
        %1071 = vmatpush1.msra.mxu0 0.0
        %1072 = vmatprep.subr.mxu0 0.0
        %1073 = vmatpush1.msra.mxu0 0.0
        %1074 = vmatprep.subr.mxu0 0.0
        %1075 = vmatpush1.msra.mxu0 0.0
        %1076 = vmatprep.subr.mxu0 0.0
        %1077 = vmatpush1.msra.mxu0 0.0
        %1078 = vmatprep.subr.mxu0 0.0
        %1079 = vmatpush1.msra.mxu0 0.0
        %1080 = vmatprep.subr.mxu0 0.0
        %v1081 = vand.u32 %v313, 4294901760
        %1082 = vmatpush1.msra.mxu0 %v1081
        %1083 = vmatprep.subr.mxu0 0.0
        %v1084 = vand.u32 %v311, 4294901760
        %1085 = vmatpush1.msra.mxu0 %v1084
        %1086 = vmatprep.subr.mxu0 0.0
        %1087 = vmatpush2.msra.mxu0 0.0
        %1088 = vmatprep.subr.mxu0 0.0
        %1089 = vmatpush2.msra.mxu0 0.0
        %1090 = vmatprep.subr.mxu0 0.0
        %1091 = vmatpush2.msra.mxu0 0.0
        %1092 = vmatprep.subr.mxu0 0.0
        %1093 = vmatpush2.msra.mxu0 0.0
        %1094 = vmatprep.subr.mxu0 0.0
        %1095 = vmatpush2.msra.mxu0 0.0
        %1096 = vmatprep.subr.mxu0 0.0
        %1097 = vmatpush2.msra.mxu0 0.0
        %1098 = vmatprep.subr.mxu0 0.0
        %1099 = vmatpush2.msra.mxu0 0.0
        %1100 = vmatprep.subr.mxu0 0.0
        %1101 = vmatpush2.msra.mxu0 0.0
        %1102 = vmatprep.subr.mxu0 0.0
        %1103 = vmatpush2.msra.mxu0 0.0
        %1104 = vmatprep.subr.mxu0 0.0
        %1105 = vmatpush2.msra.mxu0 0.0
        %1106 = vmatprep.subr.mxu0 0.0
        %1107 = vmatpush2.msra.mxu0 0.0
        %1108 = vmatprep.subr.mxu0 0.0
        %1109 = vmatpush2.msra.mxu0 0.0
        %1110 = vmatprep.subr.mxu0 0.0
        %1111 = vmatpush2.msra.mxu0 0.0
        %1112 = vmatprep.subr.mxu0 0.0
        %1113 = vmatpush2.msra.mxu0 0.0
        %1114 = vmatprep.subr.mxu0 0.0
        %1115 = vmatpush2.msra.mxu0 0.0
        %1116 = vmatprep.subr.mxu0 0.0
        %1117 = vmatpush2.msra.mxu0 0.0
        %1118 = vmatprep.mubr.f32.mxu0 0.0
        %v1119 = vand.u32 %v384, 4294901760
        %1120 = vmatmul.mubr.f32.gmra.mxu0 %v1119
        %v1121 = vpop.f32.mrf.mxu0
        %v1122 = vadd.f32 %v1007, %v1121
        %v1123 = vpop.f32.mrf.mxu0
        %1124 = vmatprep.mubr.f32.mxu0 0.0
        %v1125 = vand.u32 %v387, 4294901760
        %1126 = vmatmul.mubr.f32.gmra.mxu0 %v1125
        %v1127 = vpop.f32.mrf.mxu0
        %v1128 = vadd.f32 %v1013, %v1127
        %v1129 = vpop.f32.mrf.mxu0
        %1130 = vmatprep.mubr.f32.mxu0 0.0
        %v1131 = vand.u32 %v390, 4294901760
        %1132 = vmatmul.mubr.f32.gmra.mxu0 %v1131
        %v1133 = vpop.f32.mrf.mxu0
        %v1134 = vadd.f32 %v1019, %v1133
        %v1135 = vpop.f32.mrf.mxu0
        %1136 = vmatprep.mubr.f32.mxu0 0.0
        %v1137 = vand.u32 %v393, 4294901760
        %1138 = vmatmul.mubr.f32.gmra.mxu0 %v1137
        %v1139 = vpop.f32.mrf.mxu0
        %v1140 = vadd.f32 %v1025, %v1139
        %v1141 = vpop.f32.mrf.mxu0
        %1142 = vmatprep.mubr.f32.mxu0 0.0
        %v1143 = vand.u32 %v396, 4294901760
        %1144 = vmatmul.mubr.f32.gmra.mxu0 %v1143
        %v1145 = vpop.f32.mrf.mxu0
        %v1146 = vadd.f32 %v1031, %v1145
        %v1147 = vpop.f32.mrf.mxu0
        %1148 = vmatprep.mubr.f32.mxu0 0.0
        %v1149 = vand.u32 %v399, 4294901760
        %1150 = vmatmul.mubr.f32.gmra.mxu0 %v1149
        %v1151 = vpop.f32.mrf.mxu0
        %v1152 = vadd.f32 %v1037, %v1151
        %v1153 = vpop.f32.mrf.mxu0
        %1154 = vmatprep.mubr.f32.mxu0 0.0
        %v1155 = vand.u32 %v402, 4294901760
        %1156 = vmatmul.mubr.f32.gmra.mxu0 %v1155
        %v1157 = vpop.f32.mrf.mxu0
        %v1158 = vadd.f32 %v1043, %v1157
        %v1159 = vpop.f32.mrf.mxu0
        %1160 = vmatprep.mubr.f32.mxu0 0.0
        %v1161 = vand.u32 %v405, 4294901760
        %1162 = vmatmul.mubr.f32.gmra.mxu0 %v1161
        %v1163 = vpop.f32.mrf.mxu0
        %v1164 = vadd.f32 %v1049, %v1163
        %v1165 = vpop.f32.mrf.mxu0
        %1166 = vdwg.mxu0
        %v1167 = vadd.f32 %v342, %v1122
        %v1168 = vadd.f32 %v343, %v1128
        %v1169 = vadd.f32 %v344, %v1134
        %v1170 = vadd.f32 %v345, %v1140
        %v1171 = vadd.f32 %v346, %v1146
        %v1172 = vadd.f32 %v347, %v1152
        %v1173 = vadd.f32 %v348, %v1158
        %v1174 = vadd.f32 %v349, %v1164
        %1175 = vst.msk [vmem:[#allocation4] sm:$0xff] %vm287, %v1167
        %1176 = vst.msk [vmem:[#allocation4 + $0x8] sm:$0xff] %vm287, %v1168
        %1177 = vst.msk [vmem:[#allocation4 + $0x10] sm:$0xff] %vm287, %v1169
        %1178 = vst.msk [vmem:[#allocation4 + $0x18] sm:$0xff] %vm287, %v1170
        %1179 = vst.msk [vmem:[#allocation4 + $0x20] sm:$0xff] %vm287, %v1171
        %1180 = vst.msk [vmem:[#allocation4 + $0x28] sm:$0xff] %vm287, %v1172
        %1181 = vst.msk [vmem:[#allocation4 + $0x30] sm:$0xff] %vm287, %v1173
        %1182 = vst.msk [vmem:[#allocation4 + $0x38] sm:$0xff] %vm287, %v1174
        %1183 = vst.msk [vmem:[#allocation2] sm:$0x1] %vm326, %v298
        %p1184 = scmp.eq.s32.totalorder %s25, 3
        // Predicated region
        $region49: #{cross_attention_forward.2} parent=31 // pred_check
          %p1185 = pneg %p1184
        $region50: #{cross_attention_forward.2} parent=31 // pred_check_branch
          %1187 = sbr.rel (%p1185) target = $region52
        $region51: #{cross_attention_forward.2} parent=31 // pred_region
          %v1188 = vld [vmem:[#allocation4] sm:$0xff]
          %v1189 = vld [vmem:[#allocation4 + $0x8] sm:$0xff]
          %v1190 = vld [vmem:[#allocation4 + $0x10] sm:$0xff]
          %v1191 = vld [vmem:[#allocation4 + $0x18] sm:$0xff]
          %v1192 = vld [vmem:[#allocation4 + $0x20] sm:$0xff]
          %v1193 = vld [vmem:[#allocation4 + $0x28] sm:$0xff]
          %v1194 = vld [vmem:[#allocation4 + $0x30] sm:$0xff]
          %v1195 = vld [vmem:[#allocation4 + $0x38] sm:$0xff]
          %v1196 = vld [vmem:[#allocation3] sm:$0x1]
          %v1198 = vlaneseq
          %v1199 = vshrl.u32 %v1198, 7
          %v1200 = vsub.s32 0, %v1199
          %v1201 = vrot.slane %v1196, %v1200
          %v1203 = vrcp.pop %v1201
          %v1204 = vmul.f32 %v1188, %v1203
          %v1205 = vmul.f32 %v1189, %v1203
          %v1206 = vmul.f32 %v1190, %v1203
          %v1207 = vmul.f32 %v1191, %v1203
          %v1208 = vmul.f32 %v1192, %v1203
          %v1209 = vmul.f32 %v1193, %v1203
          %v1210 = vmul.f32 %v1194, %v1203
          %v1211 = vmul.f32 %v1195, %v1203
          %v1212 = vld [vmem:[#allocation9] sm:$0xff]
          %v1213 = vld [vmem:[#allocation9 + $0x8] sm:$0xff]
          %v1214 = vld [vmem:[#allocation9 + $0x10] sm:$0xff]
          %v1215 = vld [vmem:[#allocation9 + $0x18] sm:$0xff]
          %v1216 = vld [vmem:[#allocation9 + $0x20] sm:$0xff]
          %v1217 = vld [vmem:[#allocation9 + $0x28] sm:$0xff]
          %v1218 = vld [vmem:[#allocation9 + $0x30] sm:$0xff]
          %v1219 = vld [vmem:[#allocation9 + $0x38] sm:$0xff]
          %1220 = vxpose.xlu0.b32.start [1/16] %v1204, 128
          %1221 = vxpose.xlu0.b32.cont [2/16] %v1205, 128
          %1222 = vxpose.xlu0.b32.cont [3/16] %v1206, 128
          %1223 = vxpose.xlu0.b32.cont [4/16] %v1207, 128
          %1224 = vxpose.xlu0.b32.cont [5/16] %v1208, 128
          %1225 = vxpose.xlu0.b32.cont [6/16] %v1209, 128
          %1226 = vxpose.xlu0.b32.cont [7/16] %v1210, 128
          %1227 = vxpose.xlu0.b32.cont [8/16] %v1211, 128
          %1228 = vxpose.xlu0.b32.cont [9/16] 0.0, 128
          %1229 = vxpose.xlu0.b32.cont [10/16] 0.0, 128
          %1230 = vxpose.xlu0.b32.cont [11/16] 0.0, 128
          %1231 = vxpose.xlu0.b32.cont [12/16] 0.0, 128
          %1232 = vxpose.xlu0.b32.cont [13/16] 0.0, 128
          %1233 = vxpose.xlu0.b32.cont [14/16] 0.0, 128
          %1234 = vxpose.xlu0.b32.cont [15/16] 0.0, 128
          %1235 = vxpose.xlu0.b32.end [16/16] 0.0, 128
          %v1236 = vpop.trf.xlu0
          %v1237 = vpop.trf.xlu0
          %v1238 = vpop.trf.xlu0
          %v1239 = vpop.trf.xlu0
          %v1240 = vpop.trf.xlu0
          %v1241 = vpop.trf.xlu0
          %v1242 = vpop.trf.xlu0
          %v1243 = vpop.trf.xlu0
          %v1244 = vpop.trf.xlu0
          %v1245 = vpop.trf.xlu0
          %v1246 = vpop.trf.xlu0
          %v1247 = vpop.trf.xlu0
          %v1248 = vpop.trf.xlu0
          %v1249 = vpop.trf.xlu0
          %v1250 = vpop.trf.xlu0
          %v1251 = vpop.trf.xlu0
          %v1253 = vsel %vm287, %v1236, 0
          %v1256 = vsel %vm287, %v1237, 0
          %v1259 = vsel %vm287, %v1238, 0
          %v1262 = vsel %vm287, %v1239, 0
          %v1265 = vsel %vm287, %v1240, 0
          %v1268 = vsel %vm287, %v1241, 0
          %v1271 = vsel %vm287, %v1242, 0
          %v1274 = vsel %vm287, %v1243, 0
          %1276 = vmatprep.subr.mxu0 0.0
          %1277 = vmatpush1.msra.mxu0 0.0
          %1278 = vmatprep.subr.mxu0 0.0
          %1279 = vmatpush1.msra.mxu0 0.0
          %1280 = vmatprep.subr.mxu0 0.0
          %1281 = vmatpush1.msra.mxu0 0.0
          %1282 = vmatprep.subr.mxu0 0.0
          %1283 = vmatpush1.msra.mxu0 0.0
          %1284 = vmatprep.subr.mxu0 0.0
          %1285 = vmatpush1.msra.mxu0 0.0
          %1286 = vmatprep.subr.mxu0 0.0
          %1287 = vmatpush1.msra.mxu0 0.0
          %1288 = vmatprep.subr.mxu0 0.0
          %1289 = vmatpush1.msra.mxu0 0.0
          %1290 = vmatprep.subr.mxu0 0.0
          %1291 = vmatpush1.msra.mxu0 0.0
          %1292 = vmatprep.subr.mxu0 0.0
          %v1293 = vand.u32 %v1219, 4294901760
          %1294 = vmatpush1.msra.mxu0 %v1293
          %1295 = vmatprep.subr.mxu0 0.0
          %v1296 = vand.u32 %v1218, 4294901760
          %1297 = vmatpush1.msra.mxu0 %v1296
          %1298 = vmatprep.subr.mxu0 0.0
          %v1299 = vand.u32 %v1217, 4294901760
          %1300 = vmatpush1.msra.mxu0 %v1299
          %1301 = vmatprep.subr.mxu0 0.0
          %v1302 = vand.u32 %v1216, 4294901760
          %1303 = vmatpush1.msra.mxu0 %v1302
          %1304 = vmatprep.subr.mxu0 0.0
          %v1305 = vand.u32 %v1215, 4294901760
          %1306 = vmatpush1.msra.mxu0 %v1305
          %1307 = vmatprep.subr.mxu0 0.0
          %v1308 = vand.u32 %v1214, 4294901760
          %1309 = vmatpush1.msra.mxu0 %v1308
          %1310 = vmatprep.subr.mxu0 0.0
          %v1311 = vand.u32 %v1213, 4294901760
          %1312 = vmatpush1.msra.mxu0 %v1311
          %1313 = vmatprep.subr.mxu0 0.0
          %v1314 = vand.u32 %v1212, 4294901760
          %1315 = vmatpush1.msra.mxu0 %v1314
          %1316 = vmatprep.subr.mxu0 0.0
          %1317 = vmatpush2.msra.mxu0 0.0
          %1318 = vmatprep.subr.mxu0 0.0
          %1319 = vmatpush2.msra.mxu0 0.0
          %1320 = vmatprep.subr.mxu0 0.0
          %1321 = vmatpush2.msra.mxu0 0.0
          %1322 = vmatprep.subr.mxu0 0.0
          %1323 = vmatpush2.msra.mxu0 0.0
          %1324 = vmatprep.subr.mxu0 0.0
          %1325 = vmatpush2.msra.mxu0 0.0
          %1326 = vmatprep.subr.mxu0 0.0
          %1327 = vmatpush2.msra.mxu0 0.0
          %1328 = vmatprep.subr.mxu0 0.0
          %1329 = vmatpush2.msra.mxu0 0.0
          %1330 = vmatprep.subr.mxu0 0.0
          %1331 = vmatpush2.msra.mxu0 0.0
          %1332 = vmatprep.subr.mxu0 0.0
          %1333 = vmatpush2.msra.mxu0 0.0
          %1334 = vmatprep.subr.mxu0 0.0
          %1335 = vmatpush2.msra.mxu0 0.0
          %1336 = vmatprep.subr.mxu0 0.0
          %1337 = vmatpush2.msra.mxu0 0.0
          %1338 = vmatprep.subr.mxu0 0.0
          %1339 = vmatpush2.msra.mxu0 0.0
          %1340 = vmatprep.subr.mxu0 0.0
          %1341 = vmatpush2.msra.mxu0 0.0
          %1342 = vmatprep.subr.mxu0 0.0
          %1343 = vmatpush2.msra.mxu0 0.0
          %1344 = vmatprep.subr.mxu0 0.0
          %1345 = vmatpush2.msra.mxu0 0.0
          %1346 = vmatprep.subr.mxu0 0.0
          %1347 = vmatpush2.msra.mxu0 0.0
          %1348 = vmatprep.mubr.f32.mxu0 0.0
          %v1349 = vand.u32 %v1253, 4294901760
          %v1350 = vsub.f32 %v1253, %v1349
          %v1351 = vand.u32 %v1350, 4294901760
          %v1352 = vsub.f32 %v1350, %v1351
          %v1353 = vand.u32 %v1352, 4294901760
          %1354 = vmatmul.mubr.f32.gmra.mxu0 %v1353
          %v1355 = vpop.f32.mrf.mxu0
          %v1356 = vadd.f32 0.0, %v1355
          %v1357 = vpop.f32.mrf.mxu0
          %1358 = vmatprep.mubr.f32.mxu0 0.0
          %v1359 = vand.u32 %v1256, 4294901760
          %v1360 = vsub.f32 %v1256, %v1359
          %v1361 = vand.u32 %v1360, 4294901760
          %v1362 = vsub.f32 %v1360, %v1361
          %v1363 = vand.u32 %v1362, 4294901760
          %1364 = vmatmul.mubr.f32.gmra.mxu0 %v1363
          %v1365 = vpop.f32.mrf.mxu0
          %v1366 = vadd.f32 0.0, %v1365
          %v1367 = vpop.f32.mrf.mxu0
          %1368 = vmatprep.mubr.f32.mxu0 0.0
          %v1369 = vand.u32 %v1259, 4294901760
          %v1370 = vsub.f32 %v1259, %v1369
          %v1371 = vand.u32 %v1370, 4294901760
          %v1372 = vsub.f32 %v1370, %v1371
          %v1373 = vand.u32 %v1372, 4294901760
          %1374 = vmatmul.mubr.f32.gmra.mxu0 %v1373
          %v1375 = vpop.f32.mrf.mxu0
          %v1376 = vadd.f32 0.0, %v1375
          %v1377 = vpop.f32.mrf.mxu0
          %1378 = vmatprep.mubr.f32.mxu0 0.0
          %v1379 = vand.u32 %v1262, 4294901760
          %v1380 = vsub.f32 %v1262, %v1379
          %v1381 = vand.u32 %v1380, 4294901760
          %v1382 = vsub.f32 %v1380, %v1381
          %v1383 = vand.u32 %v1382, 4294901760
          %1384 = vmatmul.mubr.f32.gmra.mxu0 %v1383
          %v1385 = vpop.f32.mrf.mxu0
          %v1386 = vadd.f32 0.0, %v1385
          %v1387 = vpop.f32.mrf.mxu0
          %1388 = vmatprep.mubr.f32.mxu0 0.0
          %v1389 = vand.u32 %v1265, 4294901760
          %v1390 = vsub.f32 %v1265, %v1389
          %v1391 = vand.u32 %v1390, 4294901760
          %v1392 = vsub.f32 %v1390, %v1391
          %v1393 = vand.u32 %v1392, 4294901760
          %1394 = vmatmul.mubr.f32.gmra.mxu0 %v1393
          %v1395 = vpop.f32.mrf.mxu0
          %v1396 = vadd.f32 0.0, %v1395
          %v1397 = vpop.f32.mrf.mxu0
          %1398 = vmatprep.mubr.f32.mxu0 0.0
          %v1399 = vand.u32 %v1268, 4294901760
          %v1400 = vsub.f32 %v1268, %v1399
          %v1401 = vand.u32 %v1400, 4294901760
          %v1402 = vsub.f32 %v1400, %v1401
          %v1403 = vand.u32 %v1402, 4294901760
          %1404 = vmatmul.mubr.f32.gmra.mxu0 %v1403
          %v1405 = vpop.f32.mrf.mxu0
          %v1406 = vadd.f32 0.0, %v1405
          %v1407 = vpop.f32.mrf.mxu0
          %1408 = vmatprep.mubr.f32.mxu0 0.0
          %v1409 = vand.u32 %v1271, 4294901760
          %v1410 = vsub.f32 %v1271, %v1409
          %v1411 = vand.u32 %v1410, 4294901760
          %v1412 = vsub.f32 %v1410, %v1411
          %v1413 = vand.u32 %v1412, 4294901760
          %1414 = vmatmul.mubr.f32.gmra.mxu0 %v1413
          %v1415 = vpop.f32.mrf.mxu0
          %v1416 = vadd.f32 0.0, %v1415
          %v1417 = vpop.f32.mrf.mxu0
          %1418 = vmatprep.mubr.f32.mxu0 0.0
          %v1419 = vand.u32 %v1274, 4294901760
          %v1420 = vsub.f32 %v1274, %v1419
          %v1421 = vand.u32 %v1420, 4294901760
          %v1422 = vsub.f32 %v1420, %v1421
          %v1423 = vand.u32 %v1422, 4294901760
          %1424 = vmatmul.mubr.f32.gmra.mxu0 %v1423
          %v1425 = vpop.f32.mrf.mxu0
          %v1426 = vadd.f32 0.0, %v1425
          %v1427 = vpop.f32.mrf.mxu0
          %1428 = vdwg.mxu0
          %1429 = vmatprep.subr.mxu0 0.0
          %1430 = vmatpush1.msra.mxu0 0.0
          %1431 = vmatprep.subr.mxu0 0.0
          %1432 = vmatpush1.msra.mxu0 0.0
          %1433 = vmatprep.subr.mxu0 0.0
          %1434 = vmatpush1.msra.mxu0 0.0
          %1435 = vmatprep.subr.mxu0 0.0
          %1436 = vmatpush1.msra.mxu0 0.0
          %1437 = vmatprep.subr.mxu0 0.0
          %1438 = vmatpush1.msra.mxu0 0.0
          %1439 = vmatprep.subr.mxu0 0.0
          %1440 = vmatpush1.msra.mxu0 0.0
          %1441 = vmatprep.subr.mxu0 0.0
          %1442 = vmatpush1.msra.mxu0 0.0
          %1443 = vmatprep.subr.mxu0 0.0
          %1444 = vmatpush1.msra.mxu0 0.0
          %1445 = vmatprep.subr.mxu0 0.0
          %v1446 = vand.u32 %v1219, 4294901760
          %v1447 = vsub.f32 %v1219, %v1446
          %v1448 = vand.u32 %v1447, 4294901760
          %v1449 = vsub.f32 %v1447, %v1448
          %v1450 = vand.u32 %v1449, 4294901760
          %1451 = vmatpush1.msra.mxu0 %v1450
          %1452 = vmatprep.subr.mxu0 0.0
          %v1453 = vand.u32 %v1218, 4294901760
          %v1454 = vsub.f32 %v1218, %v1453
          %v1455 = vand.u32 %v1454, 4294901760
          %v1456 = vsub.f32 %v1454, %v1455
          %v1457 = vand.u32 %v1456, 4294901760
          %1458 = vmatpush1.msra.mxu0 %v1457
          %1459 = vmatprep.subr.mxu0 0.0
          %v1460 = vand.u32 %v1217, 4294901760
          %v1461 = vsub.f32 %v1217, %v1460
          %v1462 = vand.u32 %v1461, 4294901760
          %v1463 = vsub.f32 %v1461, %v1462
          %v1464 = vand.u32 %v1463, 4294901760
          %1465 = vmatpush1.msra.mxu0 %v1464
          %1466 = vmatprep.subr.mxu0 0.0
          %v1467 = vand.u32 %v1216, 4294901760
          %v1468 = vsub.f32 %v1216, %v1467
          %v1469 = vand.u32 %v1468, 4294901760
          %v1470 = vsub.f32 %v1468, %v1469
          %v1471 = vand.u32 %v1470, 4294901760
          %1472 = vmatpush1.msra.mxu0 %v1471
          %1473 = vmatprep.subr.mxu0 0.0
          %v1474 = vand.u32 %v1215, 4294901760
          %v1475 = vsub.f32 %v1215, %v1474
          %v1476 = vand.u32 %v1475, 4294901760
          %v1477 = vsub.f32 %v1475, %v1476
          %v1478 = vand.u32 %v1477, 4294901760
          %1479 = vmatpush1.msra.mxu0 %v1478
          %1480 = vmatprep.subr.mxu0 0.0
          %v1481 = vand.u32 %v1214, 4294901760
          %v1482 = vsub.f32 %v1214, %v1481
          %v1483 = vand.u32 %v1482, 4294901760
          %v1484 = vsub.f32 %v1482, %v1483
          %v1485 = vand.u32 %v1484, 4294901760
          %1486 = vmatpush1.msra.mxu0 %v1485
          %1487 = vmatprep.subr.mxu0 0.0
          %v1488 = vand.u32 %v1213, 4294901760
          %v1489 = vsub.f32 %v1213, %v1488
          %v1490 = vand.u32 %v1489, 4294901760
          %v1491 = vsub.f32 %v1489, %v1490
          %v1492 = vand.u32 %v1491, 4294901760
          %1493 = vmatpush1.msra.mxu0 %v1492
          %1494 = vmatprep.subr.mxu0 0.0
          %v1495 = vand.u32 %v1212, 4294901760
          %v1496 = vsub.f32 %v1212, %v1495
          %v1497 = vand.u32 %v1496, 4294901760
          %v1498 = vsub.f32 %v1496, %v1497
          %v1499 = vand.u32 %v1498, 4294901760
          %1500 = vmatpush1.msra.mxu0 %v1499
          %1501 = vmatprep.subr.mxu0 0.0
          %1502 = vmatpush2.msra.mxu0 0.0
          %1503 = vmatprep.subr.mxu0 0.0
          %1504 = vmatpush2.msra.mxu0 0.0
          %1505 = vmatprep.subr.mxu0 0.0
          %1506 = vmatpush2.msra.mxu0 0.0
          %1507 = vmatprep.subr.mxu0 0.0
          %1508 = vmatpush2.msra.mxu0 0.0
          %1509 = vmatprep.subr.mxu0 0.0
          %1510 = vmatpush2.msra.mxu0 0.0
          %1511 = vmatprep.subr.mxu0 0.0
          %1512 = vmatpush2.msra.mxu0 0.0
          %1513 = vmatprep.subr.mxu0 0.0
          %1514 = vmatpush2.msra.mxu0 0.0
          %1515 = vmatprep.subr.mxu0 0.0
          %1516 = vmatpush2.msra.mxu0 0.0
          %1517 = vmatprep.subr.mxu0 0.0
          %1518 = vmatpush2.msra.mxu0 0.0
          %1519 = vmatprep.subr.mxu0 0.0
          %1520 = vmatpush2.msra.mxu0 0.0
          %1521 = vmatprep.subr.mxu0 0.0
          %1522 = vmatpush2.msra.mxu0 0.0
          %1523 = vmatprep.subr.mxu0 0.0
          %1524 = vmatpush2.msra.mxu0 0.0
          %1525 = vmatprep.subr.mxu0 0.0
          %1526 = vmatpush2.msra.mxu0 0.0
          %1527 = vmatprep.subr.mxu0 0.0
          %1528 = vmatpush2.msra.mxu0 0.0
          %1529 = vmatprep.subr.mxu0 0.0
          %1530 = vmatpush2.msra.mxu0 0.0
          %1531 = vmatprep.subr.mxu0 0.0
          %1532 = vmatpush2.msra.mxu0 0.0
          %1533 = vmatprep.mubr.f32.mxu0 0.0
          %v1534 = vand.u32 %v1253, 4294901760
          %1535 = vmatmul.mubr.f32.gmra.mxu0 %v1534
          %v1536 = vpop.f32.mrf.mxu0
          %v1537 = vadd.f32 %v1356, %v1536
          %v1538 = vpop.f32.mrf.mxu0
          %1539 = vmatprep.mubr.f32.mxu0 0.0
          %v1540 = vand.u32 %v1256, 4294901760
          %1541 = vmatmul.mubr.f32.gmra.mxu0 %v1540
          %v1542 = vpop.f32.mrf.mxu0
          %v1543 = vadd.f32 %v1366, %v1542
          %v1544 = vpop.f32.mrf.mxu0
          %1545 = vmatprep.mubr.f32.mxu0 0.0
          %v1546 = vand.u32 %v1259, 4294901760
          %1547 = vmatmul.mubr.f32.gmra.mxu0 %v1546
          %v1548 = vpop.f32.mrf.mxu0
          %v1549 = vadd.f32 %v1376, %v1548
          %v1550 = vpop.f32.mrf.mxu0
          %1551 = vmatprep.mubr.f32.mxu0 0.0
          %v1552 = vand.u32 %v1262, 4294901760
          %1553 = vmatmul.mubr.f32.gmra.mxu0 %v1552
          %v1554 = vpop.f32.mrf.mxu0
          %v1555 = vadd.f32 %v1386, %v1554
          %v1556 = vpop.f32.mrf.mxu0
          %1557 = vmatprep.mubr.f32.mxu0 0.0
          %v1558 = vand.u32 %v1265, 4294901760
          %1559 = vmatmul.mubr.f32.gmra.mxu0 %v1558
          %v1560 = vpop.f32.mrf.mxu0
          %v1561 = vadd.f32 %v1396, %v1560
          %v1562 = vpop.f32.mrf.mxu0
          %1563 = vmatprep.mubr.f32.mxu0 0.0
          %v1564 = vand.u32 %v1268, 4294901760
          %1565 = vmatmul.mubr.f32.gmra.mxu0 %v1564
          %v1566 = vpop.f32.mrf.mxu0
          %v1567 = vadd.f32 %v1406, %v1566
          %v1568 = vpop.f32.mrf.mxu0
          %1569 = vmatprep.mubr.f32.mxu0 0.0
          %v1570 = vand.u32 %v1271, 4294901760
          %1571 = vmatmul.mubr.f32.gmra.mxu0 %v1570
          %v1572 = vpop.f32.mrf.mxu0
          %v1573 = vadd.f32 %v1416, %v1572
          %v1574 = vpop.f32.mrf.mxu0
          %1575 = vmatprep.mubr.f32.mxu0 0.0
          %v1576 = vand.u32 %v1274, 4294901760
          %1577 = vmatmul.mubr.f32.gmra.mxu0 %v1576
          %v1578 = vpop.f32.mrf.mxu0
          %v1579 = vadd.f32 %v1426, %v1578
          %v1580 = vpop.f32.mrf.mxu0
          %1581 = vdwg.mxu0
          %1582 = vmatprep.subr.mxu0 0.0
          %1583 = vmatpush1.msra.mxu0 0.0
          %1584 = vmatprep.subr.mxu0 0.0
          %1585 = vmatpush1.msra.mxu0 0.0
          %1586 = vmatprep.subr.mxu0 0.0
          %1587 = vmatpush1.msra.mxu0 0.0
          %1588 = vmatprep.subr.mxu0 0.0
          %1589 = vmatpush1.msra.mxu0 0.0
          %1590 = vmatprep.subr.mxu0 0.0
          %1591 = vmatpush1.msra.mxu0 0.0
          %1592 = vmatprep.subr.mxu0 0.0
          %1593 = vmatpush1.msra.mxu0 0.0
          %1594 = vmatprep.subr.mxu0 0.0
          %1595 = vmatpush1.msra.mxu0 0.0
          %1596 = vmatprep.subr.mxu0 0.0
          %1597 = vmatpush1.msra.mxu0 0.0
          %1598 = vmatprep.subr.mxu0 0.0
          %v1599 = vand.u32 %v1219, 4294901760
          %v1600 = vsub.f32 %v1219, %v1599
          %1601 = vmatpush1.msra.mxu0 %v1600
          %1602 = vmatprep.subr.mxu0 0.0
          %v1603 = vand.u32 %v1218, 4294901760
          %v1604 = vsub.f32 %v1218, %v1603
          %1605 = vmatpush1.msra.mxu0 %v1604
          %1606 = vmatprep.subr.mxu0 0.0
          %v1607 = vand.u32 %v1217, 4294901760
          %v1608 = vsub.f32 %v1217, %v1607
          %1609 = vmatpush1.msra.mxu0 %v1608
          %1610 = vmatprep.subr.mxu0 0.0
          %v1611 = vand.u32 %v1216, 4294901760
          %v1612 = vsub.f32 %v1216, %v1611
          %1613 = vmatpush1.msra.mxu0 %v1612
          %1614 = vmatprep.subr.mxu0 0.0
          %v1615 = vand.u32 %v1215, 4294901760
          %v1616 = vsub.f32 %v1215, %v1615
          %1617 = vmatpush1.msra.mxu0 %v1616
          %1618 = vmatprep.subr.mxu0 0.0
          %v1619 = vand.u32 %v1214, 4294901760
          %v1620 = vsub.f32 %v1214, %v1619
          %1621 = vmatpush1.msra.mxu0 %v1620
          %1622 = vmatprep.subr.mxu0 0.0
          %v1623 = vand.u32 %v1213, 4294901760
          %v1624 = vsub.f32 %v1213, %v1623
          %1625 = vmatpush1.msra.mxu0 %v1624
          %1626 = vmatprep.subr.mxu0 0.0
          %v1627 = vand.u32 %v1212, 4294901760
          %v1628 = vsub.f32 %v1212, %v1627
          %1629 = vmatpush1.msra.mxu0 %v1628
          %1630 = vmatprep.subr.mxu0 0.0
          %1631 = vmatpush2.msra.mxu0 0.0
          %1632 = vmatprep.subr.mxu0 0.0
          %1633 = vmatpush2.msra.mxu0 0.0
          %1634 = vmatprep.subr.mxu0 0.0
          %1635 = vmatpush2.msra.mxu0 0.0
          %1636 = vmatprep.subr.mxu0 0.0
          %1637 = vmatpush2.msra.mxu0 0.0
          %1638 = vmatprep.subr.mxu0 0.0
          %1639 = vmatpush2.msra.mxu0 0.0
          %1640 = vmatprep.subr.mxu0 0.0
          %1641 = vmatpush2.msra.mxu0 0.0
          %1642 = vmatprep.subr.mxu0 0.0
          %1643 = vmatpush2.msra.mxu0 0.0
          %1644 = vmatprep.subr.mxu0 0.0
          %1645 = vmatpush2.msra.mxu0 0.0
          %1646 = vmatprep.subr.mxu0 0.0
          %1647 = vmatpush2.msra.mxu0 0.0
          %1648 = vmatprep.subr.mxu0 0.0
          %1649 = vmatpush2.msra.mxu0 0.0
          %1650 = vmatprep.subr.mxu0 0.0
          %1651 = vmatpush2.msra.mxu0 0.0
          %1652 = vmatprep.subr.mxu0 0.0
          %1653 = vmatpush2.msra.mxu0 0.0
          %1654 = vmatprep.subr.mxu0 0.0
          %1655 = vmatpush2.msra.mxu0 0.0
          %1656 = vmatprep.subr.mxu0 0.0
          %1657 = vmatpush2.msra.mxu0 0.0
          %1658 = vmatprep.subr.mxu0 0.0
          %1659 = vmatpush2.msra.mxu0 0.0
          %1660 = vmatprep.subr.mxu0 0.0
          %1661 = vmatpush2.msra.mxu0 0.0
          %1662 = vmatprep.mubr.f32.mxu0 0.0
          %v1663 = vand.u32 %v1253, 4294901760
          %v1664 = vsub.f32 %v1253, %v1663
          %1665 = vmatmul.mubr.f32.gmra.mxu0 %v1664
          %v1666 = vpop.f32.mrf.mxu0
          %v1667 = vadd.f32 %v1537, %v1666
          %v1668 = vpop.f32.mrf.mxu0
          %1669 = vmatprep.mubr.f32.mxu0 0.0
          %v1670 = vand.u32 %v1256, 4294901760
          %v1671 = vsub.f32 %v1256, %v1670
          %1672 = vmatmul.mubr.f32.gmra.mxu0 %v1671
          %v1673 = vpop.f32.mrf.mxu0
          %v1674 = vadd.f32 %v1543, %v1673
          %v1675 = vpop.f32.mrf.mxu0
          %1676 = vmatprep.mubr.f32.mxu0 0.0
          %v1677 = vand.u32 %v1259, 4294901760
          %v1678 = vsub.f32 %v1259, %v1677
          %1679 = vmatmul.mubr.f32.gmra.mxu0 %v1678
          %v1680 = vpop.f32.mrf.mxu0
          %v1681 = vadd.f32 %v1549, %v1680
          %v1682 = vpop.f32.mrf.mxu0
          %1683 = vmatprep.mubr.f32.mxu0 0.0
          %v1684 = vand.u32 %v1262, 4294901760
          %v1685 = vsub.f32 %v1262, %v1684
          %1686 = vmatmul.mubr.f32.gmra.mxu0 %v1685
          %v1687 = vpop.f32.mrf.mxu0
          %v1688 = vadd.f32 %v1555, %v1687
          %v1689 = vpop.f32.mrf.mxu0
          %1690 = vmatprep.mubr.f32.mxu0 0.0
          %v1691 = vand.u32 %v1265, 4294901760
          %v1692 = vsub.f32 %v1265, %v1691
          %1693 = vmatmul.mubr.f32.gmra.mxu0 %v1692
          %v1694 = vpop.f32.mrf.mxu0
          %v1695 = vadd.f32 %v1561, %v1694
          %v1696 = vpop.f32.mrf.mxu0
          %1697 = vmatprep.mubr.f32.mxu0 0.0
          %v1698 = vand.u32 %v1268, 4294901760
          %v1699 = vsub.f32 %v1268, %v1698
          %1700 = vmatmul.mubr.f32.gmra.mxu0 %v1699
          %v1701 = vpop.f32.mrf.mxu0
          %v1702 = vadd.f32 %v1567, %v1701
          %v1703 = vpop.f32.mrf.mxu0
          %1704 = vmatprep.mubr.f32.mxu0 0.0
          %v1705 = vand.u32 %v1271, 4294901760
          %v1706 = vsub.f32 %v1271, %v1705
          %1707 = vmatmul.mubr.f32.gmra.mxu0 %v1706
          %v1708 = vpop.f32.mrf.mxu0
          %v1709 = vadd.f32 %v1573, %v1708
          %v1710 = vpop.f32.mrf.mxu0
          %1711 = vmatprep.mubr.f32.mxu0 0.0
          %v1712 = vand.u32 %v1274, 4294901760
          %v1713 = vsub.f32 %v1274, %v1712
          %1714 = vmatmul.mubr.f32.gmra.mxu0 %v1713
          %v1715 = vpop.f32.mrf.mxu0
          %v1716 = vadd.f32 %v1579, %v1715
          %v1717 = vpop.f32.mrf.mxu0
          %1718 = vdwg.mxu0
          %1719 = vmatprep.subr.mxu0 0.0
          %1720 = vmatpush1.msra.mxu0 0.0
          %1721 = vmatprep.subr.mxu0 0.0
          %1722 = vmatpush1.msra.mxu0 0.0
          %1723 = vmatprep.subr.mxu0 0.0
          %1724 = vmatpush1.msra.mxu0 0.0
          %1725 = vmatprep.subr.mxu0 0.0
          %1726 = vmatpush1.msra.mxu0 0.0
          %1727 = vmatprep.subr.mxu0 0.0
          %1728 = vmatpush1.msra.mxu0 0.0
          %1729 = vmatprep.subr.mxu0 0.0
          %1730 = vmatpush1.msra.mxu0 0.0
          %1731 = vmatprep.subr.mxu0 0.0
          %1732 = vmatpush1.msra.mxu0 0.0
          %1733 = vmatprep.subr.mxu0 0.0
          %1734 = vmatpush1.msra.mxu0 0.0
          %1735 = vmatprep.subr.mxu0 0.0
          %v1736 = vand.u32 %v1219, 4294901760
          %1737 = vmatpush1.msra.mxu0 %v1736
          %1738 = vmatprep.subr.mxu0 0.0
          %v1739 = vand.u32 %v1218, 4294901760
          %1740 = vmatpush1.msra.mxu0 %v1739
          %1741 = vmatprep.subr.mxu0 0.0
          %v1742 = vand.u32 %v1217, 4294901760
          %1743 = vmatpush1.msra.mxu0 %v1742
          %1744 = vmatprep.subr.mxu0 0.0
          %v1745 = vand.u32 %v1216, 4294901760
          %1746 = vmatpush1.msra.mxu0 %v1745
          %1747 = vmatprep.subr.mxu0 0.0
          %v1748 = vand.u32 %v1215, 4294901760
          %1749 = vmatpush1.msra.mxu0 %v1748
          %1750 = vmatprep.subr.mxu0 0.0
          %v1751 = vand.u32 %v1214, 4294901760
          %1752 = vmatpush1.msra.mxu0 %v1751
          %1753 = vmatprep.subr.mxu0 0.0
          %v1754 = vand.u32 %v1213, 4294901760
          %1755 = vmatpush1.msra.mxu0 %v1754
          %1756 = vmatprep.subr.mxu0 0.0
          %v1757 = vand.u32 %v1212, 4294901760
          %1758 = vmatpush1.msra.mxu0 %v1757
          %1759 = vmatprep.subr.mxu0 0.0
          %1760 = vmatpush2.msra.mxu0 0.0
          %1761 = vmatprep.subr.mxu0 0.0
          %1762 = vmatpush2.msra.mxu0 0.0
          %1763 = vmatprep.subr.mxu0 0.0
          %1764 = vmatpush2.msra.mxu0 0.0
          %1765 = vmatprep.subr.mxu0 0.0
          %1766 = vmatpush2.msra.mxu0 0.0
          %1767 = vmatprep.subr.mxu0 0.0
          %1768 = vmatpush2.msra.mxu0 0.0
          %1769 = vmatprep.subr.mxu0 0.0
          %1770 = vmatpush2.msra.mxu0 0.0
          %1771 = vmatprep.subr.mxu0 0.0
          %1772 = vmatpush2.msra.mxu0 0.0
          %1773 = vmatprep.subr.mxu0 0.0
          %1774 = vmatpush2.msra.mxu0 0.0
          %1775 = vmatprep.subr.mxu0 0.0
          %1776 = vmatpush2.msra.mxu0 0.0
          %1777 = vmatprep.subr.mxu0 0.0
          %1778 = vmatpush2.msra.mxu0 0.0
          %1779 = vmatprep.subr.mxu0 0.0
          %1780 = vmatpush2.msra.mxu0 0.0
          %1781 = vmatprep.subr.mxu0 0.0
          %1782 = vmatpush2.msra.mxu0 0.0
          %1783 = vmatprep.subr.mxu0 0.0
          %1784 = vmatpush2.msra.mxu0 0.0
          %1785 = vmatprep.subr.mxu0 0.0
          %1786 = vmatpush2.msra.mxu0 0.0
          %1787 = vmatprep.subr.mxu0 0.0
          %1788 = vmatpush2.msra.mxu0 0.0
          %1789 = vmatprep.subr.mxu0 0.0
          %1790 = vmatpush2.msra.mxu0 0.0
          %1791 = vmatprep.mubr.f32.mxu0 0.0
          %v1792 = vand.u32 %v1253, 4294901760
          %v1793 = vsub.f32 %v1253, %v1792
          %v1794 = vand.u32 %v1793, 4294901760
          %1795 = vmatmul.mubr.f32.gmra.mxu0 %v1794
          %v1796 = vpop.f32.mrf.mxu0
          %v1797 = vadd.f32 %v1667, %v1796
          %v1798 = vpop.f32.mrf.mxu0
          %1799 = vmatprep.mubr.f32.mxu0 0.0
          %v1800 = vand.u32 %v1256, 4294901760
          %v1801 = vsub.f32 %v1256, %v1800
          %v1802 = vand.u32 %v1801, 4294901760
          %1803 = vmatmul.mubr.f32.gmra.mxu0 %v1802
          %v1804 = vpop.f32.mrf.mxu0
          %v1805 = vadd.f32 %v1674, %v1804
          %v1806 = vpop.f32.mrf.mxu0
          %1807 = vmatprep.mubr.f32.mxu0 0.0
          %v1808 = vand.u32 %v1259, 4294901760
          %v1809 = vsub.f32 %v1259, %v1808
          %v1810 = vand.u32 %v1809, 4294901760
          %1811 = vmatmul.mubr.f32.gmra.mxu0 %v1810
          %v1812 = vpop.f32.mrf.mxu0
          %v1813 = vadd.f32 %v1681, %v1812
          %v1814 = vpop.f32.mrf.mxu0
          %1815 = vmatprep.mubr.f32.mxu0 0.0
          %v1816 = vand.u32 %v1262, 4294901760
          %v1817 = vsub.f32 %v1262, %v1816
          %v1818 = vand.u32 %v1817, 4294901760
          %1819 = vmatmul.mubr.f32.gmra.mxu0 %v1818
          %v1820 = vpop.f32.mrf.mxu0
          %v1821 = vadd.f32 %v1688, %v1820
          %v1822 = vpop.f32.mrf.mxu0
          %1823 = vmatprep.mubr.f32.mxu0 0.0
          %v1824 = vand.u32 %v1265, 4294901760
          %v1825 = vsub.f32 %v1265, %v1824
          %v1826 = vand.u32 %v1825, 4294901760
          %1827 = vmatmul.mubr.f32.gmra.mxu0 %v1826
          %v1828 = vpop.f32.mrf.mxu0
          %v1829 = vadd.f32 %v1695, %v1828
          %v1830 = vpop.f32.mrf.mxu0
          %1831 = vmatprep.mubr.f32.mxu0 0.0
          %v1832 = vand.u32 %v1268, 4294901760
          %v1833 = vsub.f32 %v1268, %v1832
          %v1834 = vand.u32 %v1833, 4294901760
          %1835 = vmatmul.mubr.f32.gmra.mxu0 %v1834
          %v1836 = vpop.f32.mrf.mxu0
          %v1837 = vadd.f32 %v1702, %v1836
          %v1838 = vpop.f32.mrf.mxu0
          %1839 = vmatprep.mubr.f32.mxu0 0.0
          %v1840 = vand.u32 %v1271, 4294901760
          %v1841 = vsub.f32 %v1271, %v1840
          %v1842 = vand.u32 %v1841, 4294901760
          %1843 = vmatmul.mubr.f32.gmra.mxu0 %v1842
          %v1844 = vpop.f32.mrf.mxu0
          %v1845 = vadd.f32 %v1709, %v1844
          %v1846 = vpop.f32.mrf.mxu0
          %1847 = vmatprep.mubr.f32.mxu0 0.0
          %v1848 = vand.u32 %v1274, 4294901760
          %v1849 = vsub.f32 %v1274, %v1848
          %v1850 = vand.u32 %v1849, 4294901760
          %1851 = vmatmul.mubr.f32.gmra.mxu0 %v1850
          %v1852 = vpop.f32.mrf.mxu0
          %v1853 = vadd.f32 %v1716, %v1852
          %v1854 = vpop.f32.mrf.mxu0
          %1855 = vdwg.mxu0
          %1856 = vmatprep.subr.mxu0 0.0
          %1857 = vmatpush1.msra.mxu0 0.0
          %1858 = vmatprep.subr.mxu0 0.0
          %1859 = vmatpush1.msra.mxu0 0.0
          %1860 = vmatprep.subr.mxu0 0.0
          %1861 = vmatpush1.msra.mxu0 0.0
          %1862 = vmatprep.subr.mxu0 0.0
          %1863 = vmatpush1.msra.mxu0 0.0
          %1864 = vmatprep.subr.mxu0 0.0
          %1865 = vmatpush1.msra.mxu0 0.0
          %1866 = vmatprep.subr.mxu0 0.0
          %1867 = vmatpush1.msra.mxu0 0.0
          %1868 = vmatprep.subr.mxu0 0.0
          %1869 = vmatpush1.msra.mxu0 0.0
          %1870 = vmatprep.subr.mxu0 0.0
          %1871 = vmatpush1.msra.mxu0 0.0
          %1872 = vmatprep.subr.mxu0 0.0
          %v1873 = vand.u32 %v1219, 4294901760
          %v1874 = vsub.f32 %v1219, %v1873
          %v1875 = vand.u32 %v1874, 4294901760
          %1876 = vmatpush1.msra.mxu0 %v1875
          %1877 = vmatprep.subr.mxu0 0.0
          %v1878 = vand.u32 %v1218, 4294901760
          %v1879 = vsub.f32 %v1218, %v1878
          %v1880 = vand.u32 %v1879, 4294901760
          %1881 = vmatpush1.msra.mxu0 %v1880
          %1882 = vmatprep.subr.mxu0 0.0
          %v1883 = vand.u32 %v1217, 4294901760
          %v1884 = vsub.f32 %v1217, %v1883
          %v1885 = vand.u32 %v1884, 4294901760
          %1886 = vmatpush1.msra.mxu0 %v1885
          %1887 = vmatprep.subr.mxu0 0.0
          %v1888 = vand.u32 %v1216, 4294901760
          %v1889 = vsub.f32 %v1216, %v1888
          %v1890 = vand.u32 %v1889, 4294901760
          %1891 = vmatpush1.msra.mxu0 %v1890
          %1892 = vmatprep.subr.mxu0 0.0
          %v1893 = vand.u32 %v1215, 4294901760
          %v1894 = vsub.f32 %v1215, %v1893
          %v1895 = vand.u32 %v1894, 4294901760
          %1896 = vmatpush1.msra.mxu0 %v1895
          %1897 = vmatprep.subr.mxu0 0.0
          %v1898 = vand.u32 %v1214, 4294901760
          %v1899 = vsub.f32 %v1214, %v1898
          %v1900 = vand.u32 %v1899, 4294901760
          %1901 = vmatpush1.msra.mxu0 %v1900
          %1902 = vmatprep.subr.mxu0 0.0
          %v1903 = vand.u32 %v1213, 4294901760
          %v1904 = vsub.f32 %v1213, %v1903
          %v1905 = vand.u32 %v1904, 4294901760
          %1906 = vmatpush1.msra.mxu0 %v1905
          %1907 = vmatprep.subr.mxu0 0.0
          %v1908 = vand.u32 %v1212, 4294901760
          %v1909 = vsub.f32 %v1212, %v1908
          %v1910 = vand.u32 %v1909, 4294901760
          %1911 = vmatpush1.msra.mxu0 %v1910
          %1912 = vmatprep.subr.mxu0 0.0
          %1913 = vmatpush2.msra.mxu0 0.0
          %1914 = vmatprep.subr.mxu0 0.0
          %1915 = vmatpush2.msra.mxu0 0.0
          %1916 = vmatprep.subr.mxu0 0.0
          %1917 = vmatpush2.msra.mxu0 0.0
          %1918 = vmatprep.subr.mxu0 0.0
          %1919 = vmatpush2.msra.mxu0 0.0
          %1920 = vmatprep.subr.mxu0 0.0
          %1921 = vmatpush2.msra.mxu0 0.0
          %1922 = vmatprep.subr.mxu0 0.0
          %1923 = vmatpush2.msra.mxu0 0.0
          %1924 = vmatprep.subr.mxu0 0.0
          %1925 = vmatpush2.msra.mxu0 0.0
          %1926 = vmatprep.subr.mxu0 0.0
          %1927 = vmatpush2.msra.mxu0 0.0
          %1928 = vmatprep.subr.mxu0 0.0
          %1929 = vmatpush2.msra.mxu0 0.0
          %1930 = vmatprep.subr.mxu0 0.0
          %1931 = vmatpush2.msra.mxu0 0.0
          %1932 = vmatprep.subr.mxu0 0.0
          %1933 = vmatpush2.msra.mxu0 0.0
          %1934 = vmatprep.subr.mxu0 0.0
          %1935 = vmatpush2.msra.mxu0 0.0
          %1936 = vmatprep.subr.mxu0 0.0
          %1937 = vmatpush2.msra.mxu0 0.0
          %1938 = vmatprep.subr.mxu0 0.0
          %1939 = vmatpush2.msra.mxu0 0.0
          %1940 = vmatprep.subr.mxu0 0.0
          %1941 = vmatpush2.msra.mxu0 0.0
          %1942 = vmatprep.subr.mxu0 0.0
          %1943 = vmatpush2.msra.mxu0 0.0
          %1944 = vmatprep.mubr.f32.mxu0 0.0
          %v1945 = vand.u32 %v1253, 4294901760
          %1946 = vmatmul.mubr.f32.gmra.mxu0 %v1945
          %v1947 = vpop.f32.mrf.mxu0
          %v1948 = vadd.f32 %v1797, %v1947
          %v1949 = vpop.f32.mrf.mxu0
          %1950 = vmatprep.mubr.f32.mxu0 0.0
          %v1951 = vand.u32 %v1256, 4294901760
          %1952 = vmatmul.mubr.f32.gmra.mxu0 %v1951
          %v1953 = vpop.f32.mrf.mxu0
          %v1954 = vadd.f32 %v1805, %v1953
          %v1955 = vpop.f32.mrf.mxu0
          %1956 = vmatprep.mubr.f32.mxu0 0.0
          %v1957 = vand.u32 %v1259, 4294901760
          %1958 = vmatmul.mubr.f32.gmra.mxu0 %v1957
          %v1959 = vpop.f32.mrf.mxu0
          %v1960 = vadd.f32 %v1813, %v1959
          %v1961 = vpop.f32.mrf.mxu0
          %1962 = vmatprep.mubr.f32.mxu0 0.0
          %v1963 = vand.u32 %v1262, 4294901760
          %1964 = vmatmul.mubr.f32.gmra.mxu0 %v1963
          %v1965 = vpop.f32.mrf.mxu0
          %v1966 = vadd.f32 %v1821, %v1965
          %v1967 = vpop.f32.mrf.mxu0
          %1968 = vmatprep.mubr.f32.mxu0 0.0
          %v1969 = vand.u32 %v1265, 4294901760
          %1970 = vmatmul.mubr.f32.gmra.mxu0 %v1969
          %v1971 = vpop.f32.mrf.mxu0
          %v1972 = vadd.f32 %v1829, %v1971
          %v1973 = vpop.f32.mrf.mxu0
          %1974 = vmatprep.mubr.f32.mxu0 0.0
          %v1975 = vand.u32 %v1268, 4294901760
          %1976 = vmatmul.mubr.f32.gmra.mxu0 %v1975
          %v1977 = vpop.f32.mrf.mxu0
          %v1978 = vadd.f32 %v1837, %v1977
          %v1979 = vpop.f32.mrf.mxu0
          %1980 = vmatprep.mubr.f32.mxu0 0.0
          %v1981 = vand.u32 %v1271, 4294901760
          %1982 = vmatmul.mubr.f32.gmra.mxu0 %v1981
          %v1983 = vpop.f32.mrf.mxu0
          %v1984 = vadd.f32 %v1845, %v1983
          %v1985 = vpop.f32.mrf.mxu0
          %1986 = vmatprep.mubr.f32.mxu0 0.0
          %v1987 = vand.u32 %v1274, 4294901760
          %1988 = vmatmul.mubr.f32.gmra.mxu0 %v1987
          %v1989 = vpop.f32.mrf.mxu0
          %v1990 = vadd.f32 %v1853, %v1989
          %v1991 = vpop.f32.mrf.mxu0
          %1992 = vdwg.mxu0
          %1993 = vmatprep.subr.mxu0 0.0
          %1994 = vmatpush1.msra.mxu0 0.0
          %1995 = vmatprep.subr.mxu0 0.0
          %1996 = vmatpush1.msra.mxu0 0.0
          %1997 = vmatprep.subr.mxu0 0.0
          %1998 = vmatpush1.msra.mxu0 0.0
          %1999 = vmatprep.subr.mxu0 0.0
          %2000 = vmatpush1.msra.mxu0 0.0
          %2001 = vmatprep.subr.mxu0 0.0
          %2002 = vmatpush1.msra.mxu0 0.0
          %2003 = vmatprep.subr.mxu0 0.0
          %2004 = vmatpush1.msra.mxu0 0.0
          %2005 = vmatprep.subr.mxu0 0.0
          %2006 = vmatpush1.msra.mxu0 0.0
          %2007 = vmatprep.subr.mxu0 0.0
          %2008 = vmatpush1.msra.mxu0 0.0
          %2009 = vmatprep.subr.mxu0 0.0
          %v2010 = vand.u32 %v1219, 4294901760
          %2011 = vmatpush1.msra.mxu0 %v2010
          %2012 = vmatprep.subr.mxu0 0.0
          %v2013 = vand.u32 %v1218, 4294901760
          %2014 = vmatpush1.msra.mxu0 %v2013
          %2015 = vmatprep.subr.mxu0 0.0
          %v2016 = vand.u32 %v1217, 4294901760
          %2017 = vmatpush1.msra.mxu0 %v2016
          %2018 = vmatprep.subr.mxu0 0.0
          %v2019 = vand.u32 %v1216, 4294901760
          %2020 = vmatpush1.msra.mxu0 %v2019
          %2021 = vmatprep.subr.mxu0 0.0
          %v2022 = vand.u32 %v1215, 4294901760
          %2023 = vmatpush1.msra.mxu0 %v2022
          %2024 = vmatprep.subr.mxu0 0.0
          %v2025 = vand.u32 %v1214, 4294901760
          %2026 = vmatpush1.msra.mxu0 %v2025
          %2027 = vmatprep.subr.mxu0 0.0
          %v2028 = vand.u32 %v1213, 4294901760
          %2029 = vmatpush1.msra.mxu0 %v2028
          %2030 = vmatprep.subr.mxu0 0.0
          %v2031 = vand.u32 %v1212, 4294901760
          %2032 = vmatpush1.msra.mxu0 %v2031
          %2033 = vmatprep.subr.mxu0 0.0
          %2034 = vmatpush2.msra.mxu0 0.0
          %2035 = vmatprep.subr.mxu0 0.0
          %2036 = vmatpush2.msra.mxu0 0.0
          %2037 = vmatprep.subr.mxu0 0.0
          %2038 = vmatpush2.msra.mxu0 0.0
          %2039 = vmatprep.subr.mxu0 0.0
          %2040 = vmatpush2.msra.mxu0 0.0
          %2041 = vmatprep.subr.mxu0 0.0
          %2042 = vmatpush2.msra.mxu0 0.0
          %2043 = vmatprep.subr.mxu0 0.0
          %2044 = vmatpush2.msra.mxu0 0.0
          %2045 = vmatprep.subr.mxu0 0.0
          %2046 = vmatpush2.msra.mxu0 0.0
          %2047 = vmatprep.subr.mxu0 0.0
          %2048 = vmatpush2.msra.mxu0 0.0
          %2049 = vmatprep.subr.mxu0 0.0
          %2050 = vmatpush2.msra.mxu0 0.0
          %2051 = vmatprep.subr.mxu0 0.0
          %2052 = vmatpush2.msra.mxu0 0.0
          %2053 = vmatprep.subr.mxu0 0.0
          %2054 = vmatpush2.msra.mxu0 0.0
          %2055 = vmatprep.subr.mxu0 0.0
          %2056 = vmatpush2.msra.mxu0 0.0
          %2057 = vmatprep.subr.mxu0 0.0
          %2058 = vmatpush2.msra.mxu0 0.0
          %2059 = vmatprep.subr.mxu0 0.0
          %2060 = vmatpush2.msra.mxu0 0.0
          %2061 = vmatprep.subr.mxu0 0.0
          %2062 = vmatpush2.msra.mxu0 0.0
          %2063 = vmatprep.subr.mxu0 0.0
          %2064 = vmatpush2.msra.mxu0 0.0
          %2065 = vmatprep.mubr.f32.mxu0 0.0
          %v2066 = vand.u32 %v1253, 4294901760
          %2067 = vmatmul.mubr.f32.gmra.mxu0 %v2066
          %v2068 = vpop.f32.mrf.mxu0
          %v2069 = vadd.f32 %v1948, %v2068
          %v2070 = vpop.f32.mrf.mxu0
          %2071 = vmatprep.mubr.f32.mxu0 0.0
          %v2072 = vand.u32 %v1256, 4294901760
          %2073 = vmatmul.mubr.f32.gmra.mxu0 %v2072
          %v2074 = vpop.f32.mrf.mxu0
          %v2075 = vadd.f32 %v1954, %v2074
          %v2076 = vpop.f32.mrf.mxu0
          %2077 = vmatprep.mubr.f32.mxu0 0.0
          %v2078 = vand.u32 %v1259, 4294901760
          %2079 = vmatmul.mubr.f32.gmra.mxu0 %v2078
          %v2080 = vpop.f32.mrf.mxu0
          %v2081 = vadd.f32 %v1960, %v2080
          %v2082 = vpop.f32.mrf.mxu0
          %2083 = vmatprep.mubr.f32.mxu0 0.0
          %v2084 = vand.u32 %v1262, 4294901760
          %2085 = vmatmul.mubr.f32.gmra.mxu0 %v2084
          %v2086 = vpop.f32.mrf.mxu0
          %v2087 = vadd.f32 %v1966, %v2086
          %v2088 = vpop.f32.mrf.mxu0
          %2089 = vmatprep.mubr.f32.mxu0 0.0
          %v2090 = vand.u32 %v1265, 4294901760
          %2091 = vmatmul.mubr.f32.gmra.mxu0 %v2090
          %v2092 = vpop.f32.mrf.mxu0
          %v2093 = vadd.f32 %v1972, %v2092
          %v2094 = vpop.f32.mrf.mxu0
          %2095 = vmatprep.mubr.f32.mxu0 0.0
          %v2096 = vand.u32 %v1268, 4294901760
          %2097 = vmatmul.mubr.f32.gmra.mxu0 %v2096
          %v2098 = vpop.f32.mrf.mxu0
          %v2099 = vadd.f32 %v1978, %v2098
          %v2100 = vpop.f32.mrf.mxu0
          %2101 = vmatprep.mubr.f32.mxu0 0.0
          %v2102 = vand.u32 %v1271, 4294901760
          %2103 = vmatmul.mubr.f32.gmra.mxu0 %v2102
          %v2104 = vpop.f32.mrf.mxu0
          %v2105 = vadd.f32 %v1984, %v2104
          %v2106 = vpop.f32.mrf.mxu0
          %2107 = vmatprep.mubr.f32.mxu0 0.0
          %v2108 = vand.u32 %v1274, 4294901760
          %2109 = vmatmul.mubr.f32.gmra.mxu0 %v2108
          %v2110 = vpop.f32.mrf.mxu0
          %v2111 = vadd.f32 %v1990, %v2110
          %v2112 = vpop.f32.mrf.mxu0
          %2113 = vdwg.mxu0
          %2114 = vst [vmem:[%s266] sm:$0xff] %v2069
          %2115 = vst [vmem:[%s266 + $0x8] sm:$0xff] %v2075
          %2116 = vst [vmem:[%s266 + $0x10] sm:$0xff] %v2081
          %2117 = vst [vmem:[%s266 + $0x18] sm:$0xff] %v2087
          %2118 = vst [vmem:[%s266 + $0x20] sm:$0xff] %v2093
          %2119 = vst [vmem:[%s266 + $0x28] sm:$0xff] %v2099
          %2120 = vst [vmem:[%s266 + $0x30] sm:$0xff] %v2105
          %2121 = vst [vmem:[%s266 + $0x38] sm:$0xff] %v2111
        $region52: #{cross_attention_forward.2} parent=31 // pred_fallthru
          _
        %p2122 = scmp.lt.s32.totalorder %s24, 1
        %s2123 = scalar_select %p2122, %s24, 1
        %s2124 = smul.addr %s2123, 8
        %s2125 = smul.addr %s2124, 8
        %s2126 = scalar_lea.vmem %s3, %s2125
        // Predicated region
        $region53: #{cross_attention_forward.2} parent=31 // pred_check
          %p2127 = pneg %p127
        $region54: #{cross_attention_forward.2} parent=31 // pred_check_branch
          %2129 = sbr.rel (%p2127) target = $region56
        $region55: #{cross_attention_forward.2} parent=31 // pred_region
          _
        $region56: #{cross_attention_forward.2} parent=31 // pred_fallthru
          _
      $region32: #{cross_attention_forward.2} parent=5 // pred_fallthru
        _
      %p2130 = scmp.le.s32.totalorder 2, %s15
      // Predicated region
      $region57: #{cross_attention_forward.2} parent=5 // pred_check
        %p2131 = pneg %p2130
      $region58: #{cross_attention_forward.2} parent=5 // pred_check_branch
        %2133 = sbr.rel (%p2131) target = $region60
      $region59: #{cross_attention_forward.2} parent=5 // pred_region
        %s2134 = ssub.s32 %s15, 2
        // Predicated region
        $region61: #{cross_attention_forward.2} parent=59 // pred_check
          %p2135 = pneg %p133
        $region62: #{cross_attention_forward.2} parent=59 // pred_check_branch
          %2137 = sbr.rel (%p2135) target = $region64
        $region63: #{cross_attention_forward.2} parent=59 // pred_region
          %p2138 = scmp.lt.s32.totalorder %s26, 1
          %s2139 = scalar_select %p2138, %s26, 1
          %s2140 = smul.addr %s2139, 8
          %s2141 = smul.addr %s2140, 8
          %s2142 = scalar_lea.vmem %s3, %s2141
        $region64: #{cross_attention_forward.2} parent=59 // pred_fallthru
          _
      $region60: #{cross_attention_forward.2} parent=5 // pred_fallthru
        _
    $region6: #{cross_attention_forward.2} parent=1 // loop_footer
      %s19 = sadd.s32 1, %s15
    $region7: #{cross_attention_forward.2} parent=1 // loop_footer_branch
      %14 = sbr.rel target = $region3
    $region8: #{cross_attention_forward.2} parent=1 // loop_exit
      _
    %2143 = vsyncpa [#allocation6], 1
    %s2144 = scalar_lea.sflag [#allocation6], 1
    %2145 = vsyncpa %s2144, 1
    %2146 = vsyncpa [#allocation8], 1
    %s2147 = scalar_lea.sflag [#allocation8], 1
    %2148 = vsyncpa %s2147, 1

</llo_original>
